<compile_context>
chip_gen: v6e
topology: v6e:2x2x1
jax: 0.10.0
libtpu: 0.0.40
codegen_flags: <defaults>
</compile_context>

<pallas_src>
import jax
import jax.numpy as jnp
import numpy as np
from jax.experimental import pallas as pl
from jax.experimental.pallas import tpu as pltpu

_EPS = 1e-5


def _round_up(v, m):
    return (v + m - 1) // m * m


# ----------------------------- Pallas kernel ------------------------------- #
def _acs_kernel(x_ref, mask_ref, wm_ref, a_ref, ab_ref, w34_ref, b34_ref,
                o_ref, xe, uext):
    # x_ref  : (C, H*W)        raw (unpadded) image, flattened spatially
    # o_ref  : (C, H*Wp)       interior rows of the padded grid (the wrapper
    #                          drops the 2 border columns)
    # xe     : (Cp,  Np+2)     zero-padded flattened image, +1 lane each side
    # uext   : (M2p, Np+2)     fused-1x1 output of the 3x3/avg branches, +1/-1
    c_in = x_ref.shape[0]
    hw = x_ref.shape[1]
    nout = o_ref.shape[1]                 # H * Wp
    wp = nout // (hw // (nout // (hw // (nout) if False else 1)) if False else 1)  # placeholder, replaced below
    # (compute wp/h/w from static shapes the simple way)
    # nout = h*wp, hw = h*w, wp = w+2  ->  solve statically:
    #   h = hw // w ;  nout = (hw // w) * (w + 2)
    # brute-force the (small, static) solution:
    w = None
    for cand in range(1, hw + 1):
        if hw % cand == 0 and (hw // cand) * (cand + 2) == nout:
            w = cand
            break
    assert w is not None
    h = hw // w
    wp = w + 2
    np_full = (h + 2) * wp                # padded-grid pixel count
    m2p = uext.shape[0]
    cdt = xe.dtype                        # MXU operand dtype (f32 by default)

    def mm(a, b):
        return jnp.dot(a, b, preferred_element_type=jnp.float32)

    def tap(k):                           # static lane offset of 3x3 tap k
        dy, dx = divmod(k, 3)
        return dy * wp + dx

    # ---- stage the zero-padded, flattened image directly in VMEM ----------
    # (the padding ring, the +-1 lane extension and the channel-pad rows all
    #  come from the memset; no wrapper-side jnp.pad / HBM round trip)
    xe[...] = jnp.zeros(xe.shape, cdt)
    for r in range(h):
        xe[pl.ds(0, c_in), pl.ds((r + 1) * wp + 2, w)] = \
            x_ref[:, pl.ds(r * w, w)].astype(cdt)

    # ---- fused 1x1 conv + BN front-end of the 3x3 / avg branches ----------
    # centre tap read straight from the padded image; the interior mask
    # re-creates the zero ring those branches need before their 3x3 / avg op.
    xc = xe[:, pl.ds(1, np_full)]                          # (Cp, Np)
    u = (mm(a_ref[...], xc) + ab_ref[...]) * mask_ref[...]  # (M2p, Np) f32
    uext[:, pl.ds(0, 1)] = jnp.zeros((m2p, 1), cdt)
    uext[:, pl.ds(1 + np_full, 1)] = jnp.zeros((m2p, 1), cdt)
    uext[:, pl.ds(1, np_full)] = u.astype(cdt)

    # ---- 9 per-tap matmuls accumulated directly (no im2col slabs) ----------
    #   y = bias + sum_k Wm_k @ shift_k(x_pad) + sum_k W34_k @ shift_k(u_pad)
    y = b34_ref[...] + mm(wm_ref[0], xe[:, pl.ds(tap(0), nout)])
    y = y + mm(w34_ref[0], uext[:, pl.ds(tap(0), nout)])
    for k in range(1, 9):
        y = y + mm(wm_ref[k], xe[:, pl.ds(tap(k), nout)])
        y = y + mm(w34_ref[k], uext[:, pl.ds(tap(k), nout)])

    # lane-dense store: C sublanes x (H*Wp) lanes (interior rows only).
    o_ref[...] = y.astype(o_ref.dtype)


# ------------------------------- wrapper ------------------------------------ #
def acs_forward_pallas(x_nchw, kparams, compute_dtype=jnp.float32):
    x = x_nchw.astype(jnp.float32)
    b, c, h, w = x.shape
    wp = w + 2
    np_full = (h + 2) * wp
    nout = h * wp

    wm, a_mat, ab, w34, b34 = kparams
    cp = wm.shape[2]                      # input channels padded to mult of 8
    m2p = a_mat.shape[0]                  # 2*mid padded to mult of 8

    # raw flattened input -- padding happens inside the kernel.
    x_flat = x.reshape(b, c, h * w)

    # interior mask on the padded grid (re-creates the zero ring for the
    # intermediate t3 / ta maps of the 3x3 / avg branches).
    mask = jnp.pad(jnp.ones((h, w), jnp.float32),
                   ((1, 1), (1, 1))).reshape(1, np_full)

    # MXU LHS operands in the requested compute dtype (bf16 optional; the
    # VPU epilogue -- mask multiply, bias adds -- stays f32 for v5e).
    wm = wm.astype(compute_dtype)
    a_mat = a_mat.astype(compute_dtype)
    w34 = w34.astype(compute_dtype)

    def full(arr):
        s = arr.shape
        return pl.BlockSpec(s, lambda n, _r=len(s): (0,) * _r)

    grid_spec = pltpu.PrefetchScalarGridSpec(
        num_scalar_prefetch=0,
        grid=(b,),                        # >= 2 steps: both v7x TCs get work
        in_specs=[
            pl.BlockSpec((None, c, h * w), lambda n: (n, 0, 0)),
            full(mask), full(wm), full(a_mat), full(ab), full(w34), full(b34),
        ],
        out_specs=pl.BlockSpec((None, c, nout), lambda n: (n, 0, 0)),
        scratch_shapes=[
            pltpu.VMEM((cp, np_full + 2), compute_dtype),    # padded image
            pltpu.VMEM((m2p, np_full + 2), compute_dtype),   # extended t3/ta
        ],
    )

    # generation-aware VMEM budget (v5e/v6e: 128 MiB, v7x: 64 MiB per core),
    # with ~25% headroom for compiler-internal scratch.
    bpe = int(np.dtype(compute_dtype).itemsize)
    est = (2 * c * h * w * 4 + 2 * c * nout * 4                 # in/out (x2 buf)
           + (cp + m2p) * (np_full + 2) * bpe                   # scratches
           + 2 * (mask.size * 4 + (wm.size + a_mat.size + w34.size) * bpe
                  + (ab.size + b34.size) * 4))
    try:
        cap = int(pltpu.get_tpu_info().vmem_capacity_bytes)
    except Exception:                                           # pragma: no cover
        cap = 64 * 1024 * 1024
    vmem_limit = int(min(max(4 * est, 16 * 1024 * 1024), (cap * 3) // 4))

    out = pl.pallas_call(
        _acs_kernel,
        out_shape=jax.ShapeDtypeStruct((b, c, nout), jnp.float32),
        grid_spec=grid_spec,
        compiler_params=pltpu.CompilerParams(
            dimension_semantics=("parallel",),
            vmem_limit_bytes=vmem_limit),
    )(x_flat, mask, wm, a_mat, ab, w34, b34)

    # (b, C, H*Wp) -> (b, C, H, Wp) -> drop the two padded border columns.
    return out.reshape(b, c, h, wp)[:, :, :, 1:w + 1]


# ------------------------- parameter construction --------------------------- #
def make_params(key, c):
    mid = c // 2
    ks = jax.random.split(key, 22)

    def nrm(k, shape, scale=0.2):
        return scale * jax.random.normal(k, shape, jnp.float32)

    def uni(k, shape):
        return jax.random.uniform(k, shape, jnp.float32, 0.5, 1.5)

    p = dict(
        W_main=nrm(ks[0], (mid, c, 3, 3)),
        W_1x1=nrm(ks[1], (mid, c, 1, 1)),
        W3_1=nrm(ks[2], (mid, c, 1, 1)),
        g31=uni(ks[3], (mid,)), b31=nrm(ks[4], (mid,)),
        m31=nrm(ks[5], (mid,)), v31=uni(ks[6], (mid,)),
        W3_3=nrm(ks[7], (mid, mid, 3, 3)),
        g32=uni(ks[8], (mid,)), b32=nrm(ks[9], (mid,)),
        m32=nrm(ks[10], (mid,)), v32=uni(ks[11], (mid,)),
        Wa_1=nrm(ks[12], (mid, c, 1, 1)),
        ga1=uni(ks[13], (mid,)), ba1=nrm(ks[14], (mid,)),
        ma1=nrm(ks[15], (mid,)), va1=uni(ks[16], (mid,)),
        ga2=uni(ks[17], (mid,)), ba2=nrm(ks[18], (mid,)),
        ma2=nrm(ks[19], (mid,)), va2=uni(ks[20], (mid,)),
        c_score=jax.random.normal(ks[21], (2 * c,), jnp.float32),
    )
    return p


def _fold_bn(gamma, beta, mean, var, eps=_EPS):
    s = gamma / jnp.sqrt(var + eps)
    return s, beta - mean * s


def to_kernel_params(p, c):
    """Fold BN, the 1/9 avg factor and the channel-selection 1x1 conv into
    per-tap dense channels-first weights, zero-padding only the contraction
    (input-channel) dims to multiples of 8 (done once, host-side)."""
    mid = c // 2
    m2 = 2 * mid
    cp = _round_up(c, 8)
    m2p = _round_up(m2, 8)

    s31, t31 = _fold_bn(p['g31'], p['b31'], p['m31'], p['v31'])
    s32, t32 = _fold_bn(p['g32'], p['b32'], p['m32'], p['v32'])
    sa1, ta1 = _fold_bn(p['ga1'], p['ba1'], p['ma1'], p['va1'])
    sa2, ta2 = _fold_bn(p['ga2'], p['ba2'], p['ma2'], p['va2'])

    # channel-selection 1x1 conv as a dense (2c, c) matrix sel_T
    sig = jax.nn.sigmoid(p['c_score'])
    ind = jax.lax.top_k(p['c_score'], c)[1]
    sel_T = jnp.zeros((2 * c, c), jnp.float32).at[ind, jnp.arange(c)].set(sig[ind])
    sel0 = sel_T[0 * mid:1 * mid]        # acs_main rows of the concat
    sel1 = sel_T[1 * mid:2 * mid]        # acs_1x1
    sel2 = sel_T[2 * mid:3 * mid]        # acs_3x3
    sel3 = sel_T[3 * mid:4 * mid]        # acs_avg

    # ---- per-tap (c, c) weights: selection-folded acs_main (+ 1x1 on centre)
    wm_taps = []
    for k in range(9):
        dy, dx = divmod(k, 3)
        wk = sel0.T @ p['W_main'][:, :, dy, dx]            # (c, c)
        if k == 4:                                         # 1x1 == centre tap
            wk = wk + sel1.T @ p['W_1x1'][:, :, 0, 0]
        wm_taps.append(wk)
    wm = jnp.pad(jnp.stack(wm_taps), ((0, 0), (0, 0), (0, cp - c)))   # (9,c,cp)

    # ---- fused front-end 1x1 conv + BN of the 3x3 / avg branches -----------
    a3 = s31[:, None] * p['W3_1'][:, :, 0, 0]              # (mid, c)
    aa = sa1[:, None] * p['Wa_1'][:, :, 0, 0]              # (mid, c)
    a_mat = jnp.pad(jnp.concatenate([a3, aa], axis=0),
                    ((0, m2p - m2), (0, cp - c)))          # (m2p, cp)
    ab = jnp.pad(jnp.concatenate([t31, ta1])[:, None],
                 ((0, m2p - m2), (0, 0)))                  # (m2p, 1)

    # ---- per-tap (c, 2*mid) weights: 3x3 conv + avg-pool (+BN+selection) ----
    m23_t = sel2.T * s32[None, :]                          # sel2^T diag(s32)
    mav_t = sel3.T * (sa2 / 9.0)[None, :]                  # sel3^T diag(sa2)/9
    w34_taps = []
    for k in range(9):
        dy, dx = divmod(k, 3)
        w34_taps.append(jnp.concatenate(
            [m23_t @ p['W3_3'][:, :, dy, dx], mav_t], axis=1))   # (c, 2*mid)
    w34 = jnp.pad(jnp.stack(w34_taps), ((0, 0), (0, 0), (0, m2p - m2)))
    b34 = (sel2.T @ t32 + sel3.T @ ta2)[:, None]           # (c, 1)

    return (wm, a_mat, ab, w34, b34)


# ------------------------- pure-JAX reference (NCHW) ------------------------ #
def acs_forward_reference(x, p, c):
    mid = c // 2

    def conv(xx, w, pad=0, groups=1):
        return jax.lax.conv_general_dilated(
            xx, w, (1, 1), [(pad, pad), (pad, pad)],
            dimension_numbers=('NCHW', 'OIHW', 'NCHW'),
            feature_group_count=groups)

    def bn(xx, g, b, m, v, eps=_EPS):
        s = g / jnp.sqrt(v + eps)
        return xx * s[None, :, None, None] + (b - m * s)[None, :, None, None]

    main = conv(x, p['W_main'], pad=1)
    one = conv(x, p['W_1x1'])
    t = bn(conv(x, p['W3_1']), p['g31'], p['b31'], p['m31'], p['v31'])
    three = bn(conv(t, p['W3_3'], pad=1), p['g32'], p['b32'], p['m32'], p['v32'])
    ta = bn(conv(x, p['Wa_1']), p['ga1'], p['ba1'], p['ma1'], p['va1'])
    ones_k = jnp.ones((mid, 1, 3, 3), jnp.float32) / 9.0   # count_include_pad avg
    av = conv(ta, ones_k, pad=1, groups=mid)
    av = bn(av, p['ga2'], p['ba2'], p['ma2'], p['va2'])
    cat = jnp.concatenate([main, one, three, av], axis=1)
    sig = jax.nn.sigmoid(p['c_score'])
    ind = jax.lax.top_k(p['c_score'], c)[1]
    sel = jnp.zeros((c, 2 * c), jnp.float32).at[jnp.arange(c), ind].set(sig[ind])
    return jnp.einsum('bkhw,ck->bchw', cat, sel)


# ---------------------------------- main ------------------------------------ #
if __name__ == "__main__":
    key = jax.random.PRNGKey(0)
    b, c, h, w = 2, 4, 16, 16
    kx, kp = jax.random.split(key)
    x = jax.random.normal(kx, (b, c, h, w), jnp.float32)

    p = make_params(kp, c)
    kparams = to_kernel_params(p, c)

    out = acs_forward_pallas(x, kparams)          # compute_dtype=jnp.bfloat16 for prod
    out = jax.block_until_ready(out)

    ref = acs_forward_reference(x, p, c)
    assert out.shape == (b, c, h, w)
    np.testing.assert_allclose(np.asarray(out), np.asarray(ref),
                               atol=1e-4, rtol=1e-4)
    print("KERNEL_OK")
</pallas_src>

<mosaic_0001>
module attributes {stable_mosaic.version = 11 : i64} {
  func.func @_acs_kernel(%arg0: i32, %arg1: memref<1x4x256xf32, #tpu.memory_space<vmem>>, %arg2: memref<1x324xf32, #tpu.memory_space<vmem>>, %arg3: memref<9x4x8xf32, #tpu.memory_space<vmem>>, %arg4: memref<8x8xf32, #tpu.memory_space<vmem>>, %arg5: memref<8x1xf32, #tpu.memory_space<vmem>>, %arg6: memref<9x4x8xf32, #tpu.memory_space<vmem>>, %arg7: memref<4x1xf32, #tpu.memory_space<vmem>>, %arg8: memref<1x4x288xf32, #tpu.memory_space<vmem>>, %arg9: memref<8x326xf32, #tpu.memory_space<vmem>>, %arg10: memref<8x326xf32, #tpu.memory_space<vmem>>) attributes {dimension_semantics = [#tpu.dimension_semantics<parallel>], iteration_bounds = array<i64: 2>, scalar_prefetch = 0 : i64, scratch_operands = 2 : i64, tpu.core_type = #tpu.core_type<tc>, window_params = [{transform_indices = @transform_0, window_bounds = array<i64: 1, 4, 256>}, {pipeline_mode = #tpu.pipeline_mode<synchronous>, transform_indices = @transform_1, window_bounds = array<i64: 1, 324>}, {pipeline_mode = #tpu.pipeline_mode<synchronous>, transform_indices = @transform_2, window_bounds = array<i64: 9, 4, 8>}, {pipeline_mode = #tpu.pipeline_mode<synchronous>, transform_indices = @transform_3, window_bounds = array<i64: 8, 8>}, {pipeline_mode = #tpu.pipeline_mode<synchronous>, transform_indices = @transform_4, window_bounds = array<i64: 8, 1>}, {pipeline_mode = #tpu.pipeline_mode<synchronous>, transform_indices = @transform_5, window_bounds = array<i64: 9, 4, 8>}, {pipeline_mode = #tpu.pipeline_mode<synchronous>, transform_indices = @transform_6, window_bounds = array<i64: 4, 1>}, {transform_indices = @transform_7, window_bounds = array<i64: 1, 4, 288>}]} {
    %cst = arith.constant 0.000000e+00 : f32
    %0 = vector.broadcast %cst : f32 to vector<8x326xf32>
    %c0 = arith.constant 0 : index
    %c0_0 = arith.constant 0 : index
    %1 = vector.load %arg9[%c0, %c0_0] : memref<8x326xf32, #tpu.memory_space<vmem>>, vector<8x326xf32>
    tpu.vector_store %arg9[%c0, %c0_0], %0 {strides = array<i32>} : memref<8x326xf32, #tpu.memory_space<vmem>>, vector<8x326xf32>,
    %c0_1 = arith.constant 0 : index
    %c0_2 = arith.constant 0 : index
    %c0_3 = arith.constant 0 : index
    %2 = vector.load %arg1[%c0_1, %c0_2, %c0_3] : memref<1x4x256xf32, #tpu.memory_space<vmem>>, vector<1x4x16xf32>
    %3 = vector.shape_cast %2 : vector<1x4x16xf32> to vector<4x16xf32>
    %c0_4 = arith.constant 0 : index
    %c20 = arith.constant 20 : index
    %4 = vector.load %arg9[%c0_4, %c20] : memref<8x326xf32, #tpu.memory_space<vmem>>, vector<4x16xf32>
    tpu.vector_store %arg9[%c0_4, %c20], %3 {strides = array<i32>} : memref<8x326xf32, #tpu.memory_space<vmem>>, vector<4x16xf32>,
    %c0_5 = arith.constant 0 : index
    %c0_6 = arith.constant 0 : index
    %c16 = arith.constant 16 : index
    %5 = vector.load %arg1[%c0_5, %c0_6, %c16] : memref<1x4x256xf32, #tpu.memory_space<vmem>>, vector<1x4x16xf32>
    %6 = vector.shape_cast %5 : vector<1x4x16xf32> to vector<4x16xf32>
    %c0_7 = arith.constant 0 : index
    %c38 = arith.constant 38 : index
    %7 = vector.load %arg9[%c0_7, %c38] : memref<8x326xf32, #tpu.memory_space<vmem>>, vector<4x16xf32>
    tpu.vector_store %arg9[%c0_7, %c38], %6 {strides = array<i32>} : memref<8x326xf32, #tpu.memory_space<vmem>>, vector<4x16xf32>,
    %c0_8 = arith.constant 0 : index
    %c0_9 = arith.constant 0 : index
    %c32 = arith.constant 32 : index
    %8 = vector.load %arg1[%c0_8, %c0_9, %c32] : memref<1x4x256xf32, #tpu.memory_space<vmem>>, vector<1x4x16xf32>
    %9 = vector.shape_cast %8 : vector<1x4x16xf32> to vector<4x16xf32>
    %c0_10 = arith.constant 0 : index
    %c56 = arith.constant 56 : index
    %10 = vector.load %arg9[%c0_10, %c56] : memref<8x326xf32, #tpu.memory_space<vmem>>, vector<4x16xf32>
    tpu.vector_store %arg9[%c0_10, %c56], %9 {strides = array<i32>} : memref<8x326xf32, #tpu.memory_space<vmem>>, vector<4x16xf32>,
    %c0_11 = arith.constant 0 : index
    %c0_12 = arith.constant 0 : index
    %c48 = arith.constant 48 : index
    %11 = vector.load %arg1[%c0_11, %c0_12, %c48] : memref<1x4x256xf32, #tpu.memory_space<vmem>>, vector<1x4x16xf32>
    %12 = vector.shape_cast %11 : vector<1x4x16xf32> to vector<4x16xf32>
    %c0_13 = arith.constant 0 : index
    %c74 = arith.constant 74 : index
    %13 = vector.load %arg9[%c0_13, %c74] : memref<8x326xf32, #tpu.memory_space<vmem>>, vector<4x16xf32>
    tpu.vector_store %arg9[%c0_13, %c74], %12 {strides = array<i32>} : memref<8x326xf32, #tpu.memory_space<vmem>>, vector<4x16xf32>,
    %c0_14 = arith.constant 0 : index
    %c0_15 = arith.constant 0 : index
    %c64 = arith.constant 64 : index
    %14 = vector.load %arg1[%c0_14, %c0_15, %c64] : memref<1x4x256xf32, #tpu.memory_space<vmem>>, vector<1x4x16xf32>
    %15 = vector.shape_cast %14 : vector<1x4x16xf32> to vector<4x16xf32>
    %c0_16 = arith.constant 0 : index
    %c92 = arith.constant 92 : index
    %16 = vector.load %arg9[%c0_16, %c92] : memref<8x326xf32, #tpu.memory_space<vmem>>, vector<4x16xf32>
    tpu.vector_store %arg9[%c0_16, %c92], %15 {strides = array<i32>} : memref<8x326xf32, #tpu.memory_space<vmem>>, vector<4x16xf32>,
    %c0_17 = arith.constant 0 : index
    %c0_18 = arith.constant 0 : index
    %c80 = arith.constant 80 : index
    %17 = vector.load %arg1[%c0_17, %c0_18, %c80] : memref<1x4x256xf32, #tpu.memory_space<vmem>>, vector<1x4x16xf32>
    %18 = vector.shape_cast %17 : vector<1x4x16xf32> to vector<4x16xf32>
    %c0_19 = arith.constant 0 : index
    %c110 = arith.constant 110 : index
    %19 = vector.load %arg9[%c0_19, %c110] : memref<8x326xf32, #tpu.memory_space<vmem>>, vector<4x16xf32>
    tpu.vector_store %arg9[%c0_19, %c110], %18 {strides = array<i32>} : memref<8x326xf32, #tpu.memory_space<vmem>>, vector<4x16xf32>,
    %c0_20 = arith.constant 0 : index
    %c0_21 = arith.constant 0 : index
    %c96 = arith.constant 96 : index
    %20 = vector.load %arg1[%c0_20, %c0_21, %c96] : memref<1x4x256xf32, #tpu.memory_space<vmem>>, vector<1x4x16xf32>
    %21 = vector.shape_cast %20 : vector<1x4x16xf32> to vector<4x16xf32>
    %c0_22 = arith.constant 0 : index
    %c128 = arith.constant 128 : index
    %22 = vector.load %arg9[%c0_22, %c128] : memref<8x326xf32, #tpu.memory_space<vmem>>, vector<4x16xf32>
    tpu.vector_store %arg9[%c0_22, %c128], %21 {strides = array<i32>} : memref<8x326xf32, #tpu.memory_space<vmem>>, vector<4x16xf32>,
    %c0_23 = arith.constant 0 : index
    %c0_24 = arith.constant 0 : index
    %c112 = arith.constant 112 : index
    %23 = vector.load %arg1[%c0_23, %c0_24, %c112] : memref<1x4x256xf32, #tpu.memory_space<vmem>>, vector<1x4x16xf32>
    %24 = vector.shape_cast %23 : vector<1x4x16xf32> to vector<4x16xf32>
    %c0_25 = arith.constant 0 : index
    %c146 = arith.constant 146 : index
    %25 = vector.load %arg9[%c0_25, %c146] : memref<8x326xf32, #tpu.memory_space<vmem>>, vector<4x16xf32>
    tpu.vector_store %arg9[%c0_25, %c146], %24 {strides = array<i32>} : memref<8x326xf32, #tpu.memory_space<vmem>>, vector<4x16xf32>,
    %c0_26 = arith.constant 0 : index
    %c0_27 = arith.constant 0 : index
    %c128_28 = arith.constant 128 : index
    %26 = vector.load %arg1[%c0_26, %c0_27, %c128_28] : memref<1x4x256xf32, #tpu.memory_space<vmem>>, vector<1x4x16xf32>
    %27 = vector.shape_cast %26 : vector<1x4x16xf32> to vector<4x16xf32>
    %c0_29 = arith.constant 0 : index
    %c164 = arith.constant 164 : index
    %28 = vector.load %arg9[%c0_29, %c164] : memref<8x326xf32, #tpu.memory_space<vmem>>, vector<4x16xf32>
    tpu.vector_store %arg9[%c0_29, %c164], %27 {strides = array<i32>} : memref<8x326xf32, #tpu.memory_space<vmem>>, vector<4x16xf32>,
    %c0_30 = arith.constant 0 : index
    %c0_31 = arith.constant 0 : index
    %c144 = arith.constant 144 : index
    %29 = vector.load %arg1[%c0_30, %c0_31, %c144] : memref<1x4x256xf32, #tpu.memory_space<vmem>>, vector<1x4x16xf32>
    %30 = vector.shape_cast %29 : vector<1x4x16xf32> to vector<4x16xf32>
    %c0_32 = arith.constant 0 : index
    %c182 = arith.constant 182 : index
    %31 = vector.load %arg9[%c0_32, %c182] : memref<8x326xf32, #tpu.memory_space<vmem>>, vector<4x16xf32>
    tpu.vector_store %arg9[%c0_32, %c182], %30 {strides = array<i32>} : memref<8x326xf32, #tpu.memory_space<vmem>>, vector<4x16xf32>,
    %c0_33 = arith.constant 0 : index
    %c0_34 = arith.constant 0 : index
    %c160 = arith.constant 160 : index
    %32 = vector.load %arg1[%c0_33, %c0_34, %c160] : memref<1x4x256xf32, #tpu.memory_space<vmem>>, vector<1x4x16xf32>
    %33 = vector.shape_cast %32 : vector<1x4x16xf32> to vector<4x16xf32>
    %c0_35 = arith.constant 0 : index
    %c200 = arith.constant 200 : index
    %34 = vector.load %arg9[%c0_35, %c200] : memref<8x326xf32, #tpu.memory_space<vmem>>, vector<4x16xf32>
    tpu.vector_store %arg9[%c0_35, %c200], %33 {strides = array<i32>} : memref<8x326xf32, #tpu.memory_space<vmem>>, vector<4x16xf32>,
    %c0_36 = arith.constant 0 : index
    %c0_37 = arith.constant 0 : index
    %c176 = arith.constant 176 : index
    %35 = vector.load %arg1[%c0_36, %c0_37, %c176] : memref<1x4x256xf32, #tpu.memory_space<vmem>>, vector<1x4x16xf32>
    %36 = vector.shape_cast %35 : vector<1x4x16xf32> to vector<4x16xf32>
    %c0_38 = arith.constant 0 : index
    %c218 = arith.constant 218 : index
    %37 = vector.load %arg9[%c0_38, %c218] : memref<8x326xf32, #tpu.memory_space<vmem>>, vector<4x16xf32>
    tpu.vector_store %arg9[%c0_38, %c218], %36 {strides = array<i32>} : memref<8x326xf32, #tpu.memory_space<vmem>>, vector<4x16xf32>,
    %c0_39 = arith.constant 0 : index
    %c0_40 = arith.constant 0 : index
    %c192 = arith.constant 192 : index
    %38 = vector.load %arg1[%c0_39, %c0_40, %c192] : memref<1x4x256xf32, #tpu.memory_space<vmem>>, vector<1x4x16xf32>
    %39 = vector.shape_cast %38 : vector<1x4x16xf32> to vector<4x16xf32>
    %c0_41 = arith.constant 0 : index
    %c236 = arith.constant 236 : index
    %40 = vector.load %arg9[%c0_41, %c236] : memref<8x326xf32, #tpu.memory_space<vmem>>, vector<4x16xf32>
    tpu.vector_store %arg9[%c0_41, %c236], %39 {strides = array<i32>} : memref<8x326xf32, #tpu.memory_space<vmem>>, vector<4x16xf32>,
    %c0_42 = arith.constant 0 : index
    %c0_43 = arith.constant 0 : index
    %c208 = arith.constant 208 : index
    %41 = vector.load %arg1[%c0_42, %c0_43, %c208] : memref<1x4x256xf32, #tpu.memory_space<vmem>>, vector<1x4x16xf32>
    %42 = vector.shape_cast %41 : vector<1x4x16xf32> to vector<4x16xf32>
    %c0_44 = arith.constant 0 : index
    %c254 = arith.constant 254 : index
    %43 = vector.load %arg9[%c0_44, %c254] : memref<8x326xf32, #tpu.memory_space<vmem>>, vector<4x16xf32>
    tpu.vector_store %arg9[%c0_44, %c254], %42 {strides = array<i32>} : memref<8x326xf32, #tpu.memory_space<vmem>>, vector<4x16xf32>,
    %c0_45 = arith.constant 0 : index
    %c0_46 = arith.constant 0 : index
    %c224 = arith.constant 224 : index
    %44 = vector.load %arg1[%c0_45, %c0_46, %c224] : memref<1x4x256xf32, #tpu.memory_space<vmem>>, vector<1x4x16xf32>
    %45 = vector.shape_cast %44 : vector<1x4x16xf32> to vector<4x16xf32>
    %c0_47 = arith.constant 0 : index
    %c272 = arith.constant 272 : index
    %46 = vector.load %arg9[%c0_47, %c272] : memref<8x326xf32, #tpu.memory_space<vmem>>, vector<4x16xf32>
    tpu.vector_store %arg9[%c0_47, %c272], %45 {strides = array<i32>} : memref<8x326xf32, #tpu.memory_space<vmem>>, vector<4x16xf32>,
    %c0_48 = arith.constant 0 : index
    %c0_49 = arith.constant 0 : index
    %c240 = arith.constant 240 : index
    %47 = vector.load %arg1[%c0_48, %c0_49, %c240] : memref<1x4x256xf32, #tpu.memory_space<vmem>>, vector<1x4x16xf32>
    %48 = vector.shape_cast %47 : vector<1x4x16xf32> to vector<4x16xf32>
    %c0_50 = arith.constant 0 : index
    %c290 = arith.constant 290 : index
    %49 = vector.load %arg9[%c0_50, %c290] : memref<8x326xf32, #tpu.memory_space<vmem>>, vector<4x16xf32>
    tpu.vector_store %arg9[%c0_50, %c290], %48 {strides = array<i32>} : memref<8x326xf32, #tpu.memory_space<vmem>>, vector<4x16xf32>,
    %c0_51 = arith.constant 0 : index
    %c1 = arith.constant 1 : index
    %50 = vector.load %arg9[%c0_51, %c1] : memref<8x326xf32, #tpu.memory_space<vmem>>, vector<8x324xf32>
    %c0_52 = arith.constant 0 : index
    %c0_53 = arith.constant 0 : index
    %51 = vector.load %arg4[%c0_52, %c0_53] : memref<8x8xf32, #tpu.memory_space<vmem>>, vector<8x8xf32>
    %cst_54 = arith.constant dense<0.000000e+00> : vector<8x324xf32>
    %52 = tpu.matmul %51, %50, %cst_54 {dimension_numbers = #tpu.dot_dimension_numbers<[1], [0], [0], [1], [0, 0, 1, 1], [], []>} : vector<8x8xf32>, vector<8x324xf32>, vector<8x324xf32> -> vector<8x324xf32>
    %c0_55 = arith.constant 0 : index
    %c0_56 = arith.constant 0 : index
    %53 = vector.load %arg5[%c0_55, %c0_56] : memref<8x1xf32, #tpu.memory_space<vmem>>, vector<8x1xf32>
    %54 = vector.broadcast %53 : vector<8x1xf32> to vector<8x324xf32>
    %55 = arith.addf %52, %54 : vector<8x324xf32>
    %c0_57 = arith.constant 0 : index
    %c0_58 = arith.constant 0 : index
    %56 = vector.load %arg2[%c0_57, %c0_58] : memref<1x324xf32, #tpu.memory_space<vmem>>, vector<1x324xf32>
    %57 = vector.broadcast %56 : vector<1x324xf32> to vector<8x324xf32>
    %58 = arith.mulf %55, %57 : vector<8x324xf32>
    %cst_59 = arith.constant 0.000000e+00 : f32
    %59 = vector.broadcast %cst_59 : f32 to vector<8x1xf32>
    %c0_60 = arith.constant 0 : index
    %c0_61 = arith.constant 0 : index
    %60 = vector.load %arg10[%c0_60, %c0_61] : memref<8x326xf32, #tpu.memory_space<vmem>>, vector<8x1xf32>
    tpu.vector_store %arg10[%c0_60, %c0_61], %59 {strides = array<i32>} : memref<8x326xf32, #tpu.memory_space<vmem>>, vector<8x1xf32>,
    %cst_62 = arith.constant 0.000000e+00 : f32
    %61 = vector.broadcast %cst_62 : f32 to vector<8x1xf32>
    %c0_63 = arith.constant 0 : index
    %c325 = arith.constant 325 : index
    %62 = vector.load %arg10[%c0_63, %c325] : memref<8x326xf32, #tpu.memory_space<vmem>>, vector<8x1xf32>
    tpu.vector_store %arg10[%c0_63, %c325], %61 {strides = array<i32>} : memref<8x326xf32, #tpu.memory_space<vmem>>, vector<8x1xf32>,
    %c0_64 = arith.constant 0 : index
    %c1_65 = arith.constant 1 : index
    %63 = vector.load %arg10[%c0_64, %c1_65] : memref<8x326xf32, #tpu.memory_space<vmem>>, vector<8x324xf32>
    tpu.vector_store %arg10[%c0_64, %c1_65], %58 {strides = array<i32>} : memref<8x326xf32, #tpu.memory_space<vmem>>, vector<8x324xf32>,
    %c0_66 = arith.constant 0 : index
    %c0_67 = arith.constant 0 : index
    %64 = vector.load %arg7[%c0_66, %c0_67] : memref<4x1xf32, #tpu.memory_space<vmem>>, vector<4x1xf32>
    %c0_68 = arith.constant 0 : index
    %c0_69 = arith.constant 0 : index
    %c0_70 = arith.constant 0 : index
    %65 = vector.load %arg3[%c0_68, %c0_69, %c0_70] : memref<9x4x8xf32, #tpu.memory_space<vmem>>, vector<1x4x8xf32>
    %66 = vector.shape_cast %65 : vector<1x4x8xf32> to vector<4x8xf32>
    %c0_71 = arith.constant 0 : index
    %c0_72 = arith.constant 0 : index
    %67 = vector.load %arg9[%c0_71, %c0_72] : memref<8x326xf32, #tpu.memory_space<vmem>>, vector<8x288xf32>
    %cst_73 = arith.constant dense<0.000000e+00> : vector<4x288xf32>
    %68 = tpu.matmul %66, %67, %cst_73 {dimension_numbers = #tpu.dot_dimension_numbers<[1], [0], [0], [1], [0, 0, 1, 1], [], []>} : vector<4x8xf32>, vector<8x288xf32>, vector<4x288xf32> -> vector<4x288xf32>
    %69 = vector.broadcast %64 : vector<4x1xf32> to vector<4x288xf32>
    %70 = arith.addf %69, %68 : vector<4x288xf32>
    %c0_74 = arith.constant 0 : index
    %c0_75 = arith.constant 0 : index
    %c0_76 = arith.constant 0 : index
    %71 = vector.load %arg6[%c0_74, %c0_75, %c0_76] : memref<9x4x8xf32, #tpu.memory_space<vmem>>, vector<1x4x8xf32>
    %72 = vector.shape_cast %71 : vector<1x4x8xf32> to vector<4x8xf32>
    %c0_77 = arith.constant 0 : index
    %c0_78 = arith.constant 0 : index
    %73 = vector.load %arg10[%c0_77, %c0_78] : memref<8x326xf32, #tpu.memory_space<vmem>>, vector<8x288xf32>
    %cst_79 = arith.constant dense<0.000000e+00> : vector<4x288xf32>
    %74 = tpu.matmul %72, %73, %cst_79 {dimension_numbers = #tpu.dot_dimension_numbers<[1], [0], [0], [1], [0, 0, 1, 1], [], []>} : vector<4x8xf32>, vector<8x288xf32>, vector<4x288xf32> -> vector<4x288xf32>
    %75 = arith.addf %70, %74 : vector<4x288xf32>
    %c1_80 = arith.constant 1 : index
    %c0_81 = arith.constant 0 : index
    %c0_82 = arith.constant 0 : index
    %76 = vector.load %arg3[%c1_80, %c0_81, %c0_82] : memref<9x4x8xf32, #tpu.memory_space<vmem>>, vector<1x4x8xf32>
    %77 = vector.shape_cast %76 : vector<1x4x8xf32> to vector<4x8xf32>
    %c0_83 = arith.constant 0 : index
    %c1_84 = arith.constant 1 : index
    %78 = vector.load %arg9[%c0_83, %c1_84] : memref<8x326xf32, #tpu.memory_space<vmem>>, vector<8x288xf32>
    %cst_85 = arith.constant dense<0.000000e+00> : vector<4x288xf32>
    %79 = tpu.matmul %77, %78, %cst_85 {dimension_numbers = #tpu.dot_dimension_numbers<[1], [0], [0], [1], [0, 0, 1, 1], [], []>} : vector<4x8xf32>, vector<8x288xf32>, vector<4x288xf32> -> vector<4x288xf32>
    %80 = arith.addf %75, %79 : vector<4x288xf32>
    %c1_86 = arith.constant 1 : index
    %c0_87 = arith.constant 0 : index
    %c0_88 = arith.constant 0 : index
    %81 = vector.load %arg6[%c1_86, %c0_87, %c0_88] : memref<9x4x8xf32, #tpu.memory_space<vmem>>, vector<1x4x8xf32>
    %82 = vector.shape_cast %81 : vector<1x4x8xf32> to vector<4x8xf32>
    %c0_89 = arith.constant 0 : index
    %c1_90 = arith.constant 1 : index
    %83 = vector.load %arg10[%c0_89, %c1_90] : memref<8x326xf32, #tpu.memory_space<vmem>>, vector<8x288xf32>
    %cst_91 = arith.constant dense<0.000000e+00> : vector<4x288xf32>
    %84 = tpu.matmul %82, %83, %cst_91 {dimension_numbers = #tpu.dot_dimension_numbers<[1], [0], [0], [1], [0, 0, 1, 1], [], []>} : vector<4x8xf32>, vector<8x288xf32>, vector<4x288xf32> -> vector<4x288xf32>
    %85 = arith.addf %80, %84 : vector<4x288xf32>
    %c2 = arith.constant 2 : index
    %c0_92 = arith.constant 0 : index
    %c0_93 = arith.constant 0 : index
    %86 = vector.load %arg3[%c2, %c0_92, %c0_93] : memref<9x4x8xf32, #tpu.memory_space<vmem>>, vector<1x4x8xf32>
    %87 = vector.shape_cast %86 : vector<1x4x8xf32> to vector<4x8xf32>
    %c0_94 = arith.constant 0 : index
    %c2_95 = arith.constant 2 : index
    %88 = vector.load %arg9[%c0_94, %c2_95] : memref<8x326xf32, #tpu.memory_space<vmem>>, vector<8x288xf32>
    %cst_96 = arith.constant dense<0.000000e+00> : vector<4x288xf32>
    %89 = tpu.matmul %87, %88, %cst_96 {dimension_numbers = #tpu.dot_dimension_numbers<[1], [0], [0], [1], [0, 0, 1, 1], [], []>} : vector<4x8xf32>, vector<8x288xf32>, vector<4x288xf32> -> vector<4x288xf32>
    %90 = arith.addf %85, %89 : vector<4x288xf32>
    %c2_97 = arith.constant 2 : index
    %c0_98 = arith.constant 0 : index
    %c0_99 = arith.constant 0 : index
    %91 = vector.load %arg6[%c2_97, %c0_98, %c0_99] : memref<9x4x8xf32, #tpu.memory_space<vmem>>, vector<1x4x8xf32>
    %92 = vector.shape_cast %91 : vector<1x4x8xf32> to vector<4x8xf32>
    %c0_100 = arith.constant 0 : index
    %c2_101 = arith.constant 2 : index
    %93 = vector.load %arg10[%c0_100, %c2_101] : memref<8x326xf32, #tpu.memory_space<vmem>>, vector<8x288xf32>
    %cst_102 = arith.constant dense<0.000000e+00> : vector<4x288xf32>
    %94 = tpu.matmul %92, %93, %cst_102 {dimension_numbers = #tpu.dot_dimension_numbers<[1], [0], [0], [1], [0, 0, 1, 1], [], []>} : vector<4x8xf32>, vector<8x288xf32>, vector<4x288xf32> -> vector<4x288xf32>
    %95 = arith.addf %90, %94 : vector<4x288xf32>
    %c3 = arith.constant 3 : index
    %c0_103 = arith.constant 0 : index
    %c0_104 = arith.constant 0 : index
    %96 = vector.load %arg3[%c3, %c0_103, %c0_104] : memref<9x4x8xf32, #tpu.memory_space<vmem>>, vector<1x4x8xf32>
    %97 = vector.shape_cast %96 : vector<1x4x8xf32> to vector<4x8xf32>
    %c0_105 = arith.constant 0 : index
    %c18 = arith.constant 18 : index
    %98 = vector.load %arg9[%c0_105, %c18] : memref<8x326xf32, #tpu.memory_space<vmem>>, vector<8x288xf32>
    %cst_106 = arith.constant dense<0.000000e+00> : vector<4x288xf32>
    %99 = tpu.matmul %97, %98, %cst_106 {dimension_numbers = #tpu.dot_dimension_numbers<[1], [0], [0], [1], [0, 0, 1, 1], [], []>} : vector<4x8xf32>, vector<8x288xf32>, vector<4x288xf32> -> vector<4x288xf32>
    %100 = arith.addf %95, %99 : vector<4x288xf32>
    %c3_107 = arith.constant 3 : index
    %c0_108 = arith.constant 0 : index
    %c0_109 = arith.constant 0 : index
    %101 = vector.load %arg6[%c3_107, %c0_108, %c0_109] : memref<9x4x8xf32, #tpu.memory_space<vmem>>, vector<1x4x8xf32>
    %102 = vector.shape_cast %101 : vector<1x4x8xf32> to vector<4x8xf32>
    %c0_110 = arith.constant 0 : index
    %c18_111 = arith.constant 18 : index
    %103 = vector.load %arg10[%c0_110, %c18_111] : memref<8x326xf32, #tpu.memory_space<vmem>>, vector<8x288xf32>
    %cst_112 = arith.constant dense<0.000000e+00> : vector<4x288xf32>
    %104 = tpu.matmul %102, %103, %cst_112 {dimension_numbers = #tpu.dot_dimension_numbers<[1], [0], [0], [1], [0, 0, 1, 1], [], []>} : vector<4x8xf32>, vector<8x288xf32>, vector<4x288xf32> -> vector<4x288xf32>
    %105 = arith.addf %100, %104 : vector<4x288xf32>
    %c4 = arith.constant 4 : index
    %c0_113 = arith.constant 0 : index
    %c0_114 = arith.constant 0 : index
    %106 = vector.load %arg3[%c4, %c0_113, %c0_114] : memref<9x4x8xf32, #tpu.memory_space<vmem>>, vector<1x4x8xf32>
    %107 = vector.shape_cast %106 : vector<1x4x8xf32> to vector<4x8xf32>
    %c0_115 = arith.constant 0 : index
    %c19 = arith.constant 19 : index
    %108 = vector.load %arg9[%c0_115, %c19] : memref<8x326xf32, #tpu.memory_space<vmem>>, vector<8x288xf32>
    %cst_116 = arith.constant dense<0.000000e+00> : vector<4x288xf32>
    %109 = tpu.matmul %107, %108, %cst_116 {dimension_numbers = #tpu.dot_dimension_numbers<[1], [0], [0], [1], [0, 0, 1, 1], [], []>} : vector<4x8xf32>, vector<8x288xf32>, vector<4x288xf32> -> vector<4x288xf32>
    %110 = arith.addf %105, %109 : vector<4x288xf32>
    %c4_117 = arith.constant 4 : index
    %c0_118 = arith.constant 0 : index
    %c0_119 = arith.constant 0 : index
    %111 = vector.load %arg6[%c4_117, %c0_118, %c0_119] : memref<9x4x8xf32, #tpu.memory_space<vmem>>, vector<1x4x8xf32>
    %112 = vector.shape_cast %111 : vector<1x4x8xf32> to vector<4x8xf32>
    %c0_120 = arith.constant 0 : index
    %c19_121 = arith.constant 19 : index
    %113 = vector.load %arg10[%c0_120, %c19_121] : memref<8x326xf32, #tpu.memory_space<vmem>>, vector<8x288xf32>
    %cst_122 = arith.constant dense<0.000000e+00> : vector<4x288xf32>
    %114 = tpu.matmul %112, %113, %cst_122 {dimension_numbers = #tpu.dot_dimension_numbers<[1], [0], [0], [1], [0, 0, 1, 1], [], []>} : vector<4x8xf32>, vector<8x288xf32>, vector<4x288xf32> -> vector<4x288xf32>
    %115 = arith.addf %110, %114 : vector<4x288xf32>
    %c5 = arith.constant 5 : index
    %c0_123 = arith.constant 0 : index
    %c0_124 = arith.constant 0 : index
    %116 = vector.load %arg3[%c5, %c0_123, %c0_124] : memref<9x4x8xf32, #tpu.memory_space<vmem>>, vector<1x4x8xf32>
    %117 = vector.shape_cast %116 : vector<1x4x8xf32> to vector<4x8xf32>
    %c0_125 = arith.constant 0 : index
    %c20_126 = arith.constant 20 : index
    %118 = vector.load %arg9[%c0_125, %c20_126] : memref<8x326xf32, #tpu.memory_space<vmem>>, vector<8x288xf32>
    %cst_127 = arith.constant dense<0.000000e+00> : vector<4x288xf32>
    %119 = tpu.matmul %117, %118, %cst_127 {dimension_numbers = #tpu.dot_dimension_numbers<[1], [0], [0], [1], [0, 0, 1, 1], [], []>} : vector<4x8xf32>, vector<8x288xf32>, vector<4x288xf32> -> vector<4x288xf32>
    %120 = arith.addf %115, %119 : vector<4x288xf32>
    %c5_128 = arith.constant 5 : index
    %c0_129 = arith.constant 0 : index
    %c0_130 = arith.constant 0 : index
    %121 = vector.load %arg6[%c5_128, %c0_129, %c0_130] : memref<9x4x8xf32, #tpu.memory_space<vmem>>, vector<1x4x8xf32>
    %122 = vector.shape_cast %121 : vector<1x4x8xf32> to vector<4x8xf32>
    %c0_131 = arith.constant 0 : index
    %c20_132 = arith.constant 20 : index
    %123 = vector.load %arg10[%c0_131, %c20_132] : memref<8x326xf32, #tpu.memory_space<vmem>>, vector<8x288xf32>
    %cst_133 = arith.constant dense<0.000000e+00> : vector<4x288xf32>
    %124 = tpu.matmul %122, %123, %cst_133 {dimension_numbers = #tpu.dot_dimension_numbers<[1], [0], [0], [1], [0, 0, 1, 1], [], []>} : vector<4x8xf32>, vector<8x288xf32>, vector<4x288xf32> -> vector<4x288xf32>
    %125 = arith.addf %120, %124 : vector<4x288xf32>
    %c6 = arith.constant 6 : index
    %c0_134 = arith.constant 0 : index
    %c0_135 = arith.constant 0 : index
    %126 = vector.load %arg3[%c6, %c0_134, %c0_135] : memref<9x4x8xf32, #tpu.memory_space<vmem>>, vector<1x4x8xf32>
    %127 = vector.shape_cast %126 : vector<1x4x8xf32> to vector<4x8xf32>
    %c0_136 = arith.constant 0 : index
    %c36 = arith.constant 36 : index
    %128 = vector.load %arg9[%c0_136, %c36] : memref<8x326xf32, #tpu.memory_space<vmem>>, vector<8x288xf32>
    %cst_137 = arith.constant dense<0.000000e+00> : vector<4x288xf32>
    %129 = tpu.matmul %127, %128, %cst_137 {dimension_numbers = #tpu.dot_dimension_numbers<[1], [0], [0], [1], [0, 0, 1, 1], [], []>} : vector<4x8xf32>, vector<8x288xf32>, vector<4x288xf32> -> vector<4x288xf32>
    %130 = arith.addf %125, %129 : vector<4x288xf32>
    %c6_138 = arith.constant 6 : index
    %c0_139 = arith.constant 0 : index
    %c0_140 = arith.constant 0 : index
    %131 = vector.load %arg6[%c6_138, %c0_139, %c0_140] : memref<9x4x8xf32, #tpu.memory_space<vmem>>, vector<1x4x8xf32>
    %132 = vector.shape_cast %131 : vector<1x4x8xf32> to vector<4x8xf32>
    %c0_141 = arith.constant 0 : index
    %c36_142 = arith.constant 36 : index
    %133 = vector.load %arg10[%c0_141, %c36_142] : memref<8x326xf32, #tpu.memory_space<vmem>>, vector<8x288xf32>
    %cst_143 = arith.constant dense<0.000000e+00> : vector<4x288xf32>
    %134 = tpu.matmul %132, %133, %cst_143 {dimension_numbers = #tpu.dot_dimension_numbers<[1], [0], [0], [1], [0, 0, 1, 1], [], []>} : vector<4x8xf32>, vector<8x288xf32>, vector<4x288xf32> -> vector<4x288xf32>
    %135 = arith.addf %130, %134 : vector<4x288xf32>
    %c7 = arith.constant 7 : index
    %c0_144 = arith.constant 0 : index
    %c0_145 = arith.constant 0 : index
    %136 = vector.load %arg3[%c7, %c0_144, %c0_145] : memref<9x4x8xf32, #tpu.memory_space<vmem>>, vector<1x4x8xf32>
    %137 = vector.shape_cast %136 : vector<1x4x8xf32> to vector<4x8xf32>
    %c0_146 = arith.constant 0 : index
    %c37 = arith.constant 37 : index
    %138 = vector.load %arg9[%c0_146, %c37] : memref<8x326xf32, #tpu.memory_space<vmem>>, vector<8x288xf32>
    %cst_147 = arith.constant dense<0.000000e+00> : vector<4x288xf32>
    %139 = tpu.matmul %137, %138, %cst_147 {dimension_numbers = #tpu.dot_dimension_numbers<[1], [0], [0], [1], [0, 0, 1, 1], [], []>} : vector<4x8xf32>, vector<8x288xf32>, vector<4x288xf32> -> vector<4x288xf32>
    %140 = arith.addf %135, %139 : vector<4x288xf32>
    %c7_148 = arith.constant 7 : index
    %c0_149 = arith.constant 0 : index
    %c0_150 = arith.constant 0 : index
    %141 = vector.load %arg6[%c7_148, %c0_149, %c0_150] : memref<9x4x8xf32, #tpu.memory_space<vmem>>, vector<1x4x8xf32>
    %142 = vector.shape_cast %141 : vector<1x4x8xf32> to vector<4x8xf32>
    %c0_151 = arith.constant 0 : index
    %c37_152 = arith.constant 37 : index
    %143 = vector.load %arg10[%c0_151, %c37_152] : memref<8x326xf32, #tpu.memory_space<vmem>>, vector<8x288xf32>
    %cst_153 = arith.constant dense<0.000000e+00> : vector<4x288xf32>
    %144 = tpu.matmul %142, %143, %cst_153 {dimension_numbers = #tpu.dot_dimension_numbers<[1], [0], [0], [1], [0, 0, 1, 1], [], []>} : vector<4x8xf32>, vector<8x288xf32>, vector<4x288xf32> -> vector<4x288xf32>
    %145 = arith.addf %140, %144 : vector<4x288xf32>
    %c8 = arith.constant 8 : index
    %c0_154 = arith.constant 0 : index
    %c0_155 = arith.constant 0 : index
    %146 = vector.load %arg3[%c8, %c0_154, %c0_155] : memref<9x4x8xf32, #tpu.memory_space<vmem>>, vector<1x4x8xf32>
    %147 = vector.shape_cast %146 : vector<1x4x8xf32> to vector<4x8xf32>
    %c0_156 = arith.constant 0 : index
    %c38_157 = arith.constant 38 : index
    %148 = vector.load %arg9[%c0_156, %c38_157] : memref<8x326xf32, #tpu.memory_space<vmem>>, vector<8x288xf32>
    %cst_158 = arith.constant dense<0.000000e+00> : vector<4x288xf32>
    %149 = tpu.matmul %147, %148, %cst_158 {dimension_numbers = #tpu.dot_dimension_numbers<[1], [0], [0], [1], [0, 0, 1, 1], [], []>} : vector<4x8xf32>, vector<8x288xf32>, vector<4x288xf32> -> vector<4x288xf32>
    %150 = arith.addf %145, %149 : vector<4x288xf32>
    %c8_159 = arith.constant 8 : index
    %c0_160 = arith.constant 0 : index
    %c0_161 = arith.constant 0 : index
    %151 = vector.load %arg6[%c8_159, %c0_160, %c0_161] : memref<9x4x8xf32, #tpu.memory_space<vmem>>, vector<1x4x8xf32>
    %152 = vector.shape_cast %151 : vector<1x4x8xf32> to vector<4x8xf32>
    %c0_162 = arith.constant 0 : index
    %c38_163 = arith.constant 38 : index
    %153 = vector.load %arg10[%c0_162, %c38_163] : memref<8x326xf32, #tpu.memory_space<vmem>>, vector<8x288xf32>
    %cst_164 = arith.constant dense<0.000000e+00> : vector<4x288xf32>
    %154 = tpu.matmul %152, %153, %cst_164 {dimension_numbers = #tpu.dot_dimension_numbers<[1], [0], [0], [1], [0, 0, 1, 1], [], []>} : vector<4x8xf32>, vector<8x288xf32>, vector<4x288xf32> -> vector<4x288xf32>
    %155 = arith.addf %150, %154 : vector<4x288xf32>
    %c0_165 = arith.constant 0 : index
    %c0_166 = arith.constant 0 : index
    %c0_167 = arith.constant 0 : index
    %156 = vector.load %arg8[%c0_165, %c0_166, %c0_167] : memref<1x4x288xf32, #tpu.memory_space<vmem>>, vector<1x4x288xf32>
    %157 = vector.shape_cast %156 : vector<1x4x288xf32> to vector<4x288xf32>
    %158 = vector.shape_cast %155 : vector<4x288xf32> to vector<1x4x288xf32>
    tpu.vector_store %arg8[%c0_165, %c0_166, %c0_167], %158 {strides = array<i32>} : memref<1x4x288xf32, #tpu.memory_space<vmem>>, vector<1x4x288xf32>,
    return
  }
  func.func @transform_0(%arg0: i32) -> (i32, i32, i32) {
    %c0_i32 = arith.constant 0 : i32
    %c0_i32_0 = arith.constant 0 : i32
    %c0_i32_1 = arith.constant 0 : i32
    return %arg0, %c0_i32, %c0_i32_0 : i32, i32, i32
  }
  func.func @transform_1(%arg0: i32) -> (i32, i32) {
    %c0_i32 = arith.constant 0 : i32
    %c0_i32_0 = arith.constant 0 : i32
    %c0_i32_1 = arith.constant 0 : i32
    return %c0_i32, %c0_i32_0 : i32, i32
  }
  func.func @transform_2(%arg0: i32) -> (i32, i32, i32) {
    %c0_i32 = arith.constant 0 : i32
    %c0_i32_0 = arith.constant 0 : i32
    %c0_i32_1 = arith.constant 0 : i32
    %c0_i32_2 = arith.constant 0 : i32
    return %c0_i32, %c0_i32_0, %c0_i32_1 : i32, i32, i32
  }
  func.func @transform_3(%arg0: i32) -> (i32, i32) {
    %c0_i32 = arith.constant 0 : i32
    %c0_i32_0 = arith.constant 0 : i32
    %c0_i32_1 = arith.constant 0 : i32
    return %c0_i32, %c0_i32_0 : i32, i32
  }
  func.func @transform_4(%arg0: i32) -> (i32, i32) {
    %c0_i32 = arith.constant 0 : i32
    %c0_i32_0 = arith.constant 0 : i32
    %c0_i32_1 = arith.constant 0 : i32
    return %c0_i32, %c0_i32_0 : i32, i32
  }
  func.func @transform_5(%arg0: i32) -> (i32, i32, i32) {
    %c0_i32 = arith.constant 0 : i32
    %c0_i32_0 = arith.constant 0 : i32
    %c0_i32_1 = arith.constant 0 : i32
    %c0_i32_2 = arith.constant 0 : i32
    return %c0_i32, %c0_i32_0, %c0_i32_1 : i32, i32, i32
  }
  func.func @transform_6(%arg0: i32) -> (i32, i32) {
    %c0_i32 = arith.constant 0 : i32
    %c0_i32_0 = arith.constant 0 : i32
    %c0_i32_1 = arith.constant 0 : i32
    return %c0_i32, %c0_i32_0 : i32, i32
  }
  func.func @transform_7(%arg0: i32) -> (i32, i32, i32) {
    %c0_i32 = arith.constant 0 : i32
    %c0_i32_0 = arith.constant 0 : i32
    %c0_i32_1 = arith.constant 0 : i32
    return %arg0, %c0_i32, %c0_i32_0 : i32, i32, i32
  }
}

</mosaic_0001>

<llo_original>
// kernel: tpu_custom_call.1
$region0: #{tpu_custom_call.1}
  #allocation0 [shape = 'u32[]', space=smem, size = 0x4, offset = 0x4, fixed_abs, tag = 'smem constant byte address 0x4 - core index']
  #allocation1 [shape = 'u32[144,128]{1,0:T(1,128)}', space=vmem, size = 0x12000, scoped, tag = 'internal scratch']
  #allocation2 [shape = 'f32[8,326]{1,0:T(8,128)}', space=vmem, size = 0x3000, scoped, tag = 'scratch operand']
  #allocation3 [shape = 'f32[8,326]{1,0:T(8,128)}', space=vmem, size = 0x3000, scoped, tag = 'scratch operand']
  %s0 = inlined_call_operand.vmem [shape: f32[2,4,256], index: 0, kind: input, shape index: {}]
  %s1 = inlined_call_operand.vmem [shape: f32[1,324], index: 1, kind: input, shape index: {}]
  %s2 = inlined_call_operand.vmem [shape: f32[9,4,8], index: 2, kind: input, shape index: {}]
  %s3 = inlined_call_operand.vmem [shape: f32[8,8], index: 3, kind: input, shape index: {}]
  %s4 = inlined_call_operand.vmem [shape: f32[8,1], index: 4, kind: input, shape index: {}]
  %s5 = inlined_call_operand.vmem [shape: f32[9,4,8], index: 5, kind: input, shape index: {}]
  %s6 = inlined_call_operand.vmem [shape: f32[4,1], index: 6, kind: input, shape index: {}]
  %s7 = inlined_call_operand.hbm [shape: f32[2,4,288], index: 7, kind: output, shape index: {}]
  %s8 = sld [smem:[#allocation0]]
  $region61: #{tpu_custom_call.1} parent=0
    _
  %s10 = ssub.s32 1, %s8
  %s11 = scalar_select 0, %s10, %s8
  $region1: #{tpu_custom_call.1} parent=0
    #allocation4 [shape = 'u8[12288]{0}', space=vmem, size = 0x3000, scoped, tag = 'output window, operand 0']
    #allocation5 [shape = 's32[2]{0}', space=sflag, size = 0x8, scoped, tag = 'scoped memory for tpu_custom_call.1']
    %12 = vsyncpa [#allocation5], 0
    %s13 = scalar_lea.sflag [#allocation5], 1
    %14 = vsyncpa %s13, 0
    loop: start=0, step=1, limit=4
    $region2: #{tpu_custom_call.1} parent=1 // loop_pre_header
      _
    $region3: #{tpu_custom_call.1} parent=1 // loop_header
      %s16 = sphi 0, %s20
      %p17 = scmp.ge.s32.totalorder %s16, 4
      %s26 = sphi 0, %s28
      %s29 = sphi 0, %s26
      %s30 = sphi 0, %s29
      %s46 = sphi 0, %s30
      %s50 = sphi 0, %s50
      %s52 = sphi 0, %s50
      %s53 = sphi 0, %s52
      %s67 = sphi 0, %s53
      %s71 = sphi 0, %s71
      %s73 = sphi 0, %s71
      %s74 = sphi 0, %s73
      %s88 = sphi 0, %s74
      %s92 = sphi 0, %s92
      %s94 = sphi 0, %s92
      %s95 = sphi 0, %s94
      %s109 = sphi 0, %s95
      %s113 = sphi 0, %s113
      %s115 = sphi 0, %s113
      %s116 = sphi 0, %s115
      %s130 = sphi 0, %s116
      %s134 = sphi 0, %s134
      %s136 = sphi 0, %s134
      %s137 = sphi 0, %s136
      %s151 = sphi 0, %s137
      %s155 = sphi 0, %s155
      %s157 = sphi 0, %s155
      %s158 = sphi 0, %s157
      %s172 = sphi 0, %s158
      %s178 = sphi 0, %s180
      %s181 = sphi 0, %s178
      %s182 = sphi 0, %s181
      %s198 = sphi 0, %s182
    $region4: #{tpu_custom_call.1} parent=1 // loop_header_branch
      %19 = sbr.rel (%p17) target = $region8
    $region5: #{tpu_custom_call.1} parent=1 // loop_body
      %s21 = ssub.s32 %s16, 1
      %s22 = ssub.s32 %s16, 2
      %s23 = sadd.s32 %s16, 1
      %s24 = ssub.s32 %s16, %s23
      %p25 = scmp.eq.s32.totalorder %s24, 0
      %s27 = sadd.s32 %s26, 1
      %s28 = scalar_select %p25, %s26, %s27
      %p31 = pneg %p25
      %p32 = scmp.eq.s32.totalorder %s16, 1
      %p33 = por %p31, %p32
      %p34 = scmp.ne.s32.totalorder %s26, %s29
      %p35 = scmp.eq.s32.totalorder %s16, 0
      %p36 = por %p34, %p35
      %p37 = scmp.ne.s32.totalorder %s26, %s29
      %p38 = scmp.eq.s32.totalorder %s21, 1
      %p39 = por %p37, %p38
      %p40 = scmp.ne.s32.totalorder %s29, %s30
      %p41 = scmp.eq.s32.totalorder %s21, 0
      %p42 = por %p40, %p41
      %p43 = scmp.ne.s32.totalorder %s29, %s30
      %p44 = scmp.eq.s32.totalorder %s22, 1
      %p45 = por %p43, %p44
      %p47 = scmp.ne.s32.totalorder %s30, %s46
      %p48 = scmp.eq.s32.totalorder %s22, 0
      %p49 = por %p47, %p48
      %s51 = sadd.s32 %s50, 1
      %p54 = scmp.eq.s32.totalorder %s16, 1
      %p55 = scmp.ne.s32.totalorder %s50, %s52
      %p56 = scmp.eq.s32.totalorder %s16, 0
      %p57 = por %p55, %p56
      %p58 = scmp.ne.s32.totalorder %s50, %s52
      %p59 = scmp.eq.s32.totalorder %s21, 1
      %p60 = por %p58, %p59
      %p61 = scmp.ne.s32.totalorder %s52, %s53
      %p62 = scmp.eq.s32.totalorder %s21, 0
      %p63 = por %p61, %p62
      %p64 = scmp.ne.s32.totalorder %s52, %s53
      %p65 = scmp.eq.s32.totalorder %s22, 1
      %p66 = por %p64, %p65
      %p68 = scmp.ne.s32.totalorder %s53, %s67
      %p69 = scmp.eq.s32.totalorder %s22, 0
      %p70 = por %p68, %p69
      %s72 = sadd.s32 %s71, 1
      %p75 = scmp.eq.s32.totalorder %s16, 1
      %p76 = scmp.ne.s32.totalorder %s71, %s73
      %p77 = scmp.eq.s32.totalorder %s16, 0
      %p78 = por %p76, %p77
      %p79 = scmp.ne.s32.totalorder %s71, %s73
      %p80 = scmp.eq.s32.totalorder %s21, 1
      %p81 = por %p79, %p80
      %p82 = scmp.ne.s32.totalorder %s73, %s74
      %p83 = scmp.eq.s32.totalorder %s21, 0
      %p84 = por %p82, %p83
      %p85 = scmp.ne.s32.totalorder %s73, %s74
      %p86 = scmp.eq.s32.totalorder %s22, 1
      %p87 = por %p85, %p86
      %p89 = scmp.ne.s32.totalorder %s74, %s88
      %p90 = scmp.eq.s32.totalorder %s22, 0
      %p91 = por %p89, %p90
      %s93 = sadd.s32 %s92, 1
      %p96 = scmp.eq.s32.totalorder %s16, 1
      %p97 = scmp.ne.s32.totalorder %s92, %s94
      %p98 = scmp.eq.s32.totalorder %s16, 0
      %p99 = por %p97, %p98
      %p100 = scmp.ne.s32.totalorder %s92, %s94
      %p101 = scmp.eq.s32.totalorder %s21, 1
      %p102 = por %p100, %p101
      %p103 = scmp.ne.s32.totalorder %s94, %s95
      %p104 = scmp.eq.s32.totalorder %s21, 0
      %p105 = por %p103, %p104
      %p106 = scmp.ne.s32.totalorder %s94, %s95
      %p107 = scmp.eq.s32.totalorder %s22, 1
      %p108 = por %p106, %p107
      %p110 = scmp.ne.s32.totalorder %s95, %s109
      %p111 = scmp.eq.s32.totalorder %s22, 0
      %p112 = por %p110, %p111
      %s114 = sadd.s32 %s113, 1
      %p117 = scmp.eq.s32.totalorder %s16, 1
      %p118 = scmp.ne.s32.totalorder %s113, %s115
      %p119 = scmp.eq.s32.totalorder %s16, 0
      %p120 = por %p118, %p119
      %p121 = scmp.ne.s32.totalorder %s113, %s115
      %p122 = scmp.eq.s32.totalorder %s21, 1
      %p123 = por %p121, %p122
      %p124 = scmp.ne.s32.totalorder %s115, %s116
      %p125 = scmp.eq.s32.totalorder %s21, 0
      %p126 = por %p124, %p125
      %p127 = scmp.ne.s32.totalorder %s115, %s116
      %p128 = scmp.eq.s32.totalorder %s22, 1
      %p129 = por %p127, %p128
      %p131 = scmp.ne.s32.totalorder %s116, %s130
      %p132 = scmp.eq.s32.totalorder %s22, 0
      %p133 = por %p131, %p132
      %s135 = sadd.s32 %s134, 1
      %p138 = scmp.eq.s32.totalorder %s16, 1
      %p139 = scmp.ne.s32.totalorder %s134, %s136
      %p140 = scmp.eq.s32.totalorder %s16, 0
      %p141 = por %p139, %p140
      %p142 = scmp.ne.s32.totalorder %s134, %s136
      %p143 = scmp.eq.s32.totalorder %s21, 1
      %p144 = por %p142, %p143
      %p145 = scmp.ne.s32.totalorder %s136, %s137
      %p146 = scmp.eq.s32.totalorder %s21, 0
      %p147 = por %p145, %p146
      %p148 = scmp.ne.s32.totalorder %s136, %s137
      %p149 = scmp.eq.s32.totalorder %s22, 1
      %p150 = por %p148, %p149
      %p152 = scmp.ne.s32.totalorder %s137, %s151
      %p153 = scmp.eq.s32.totalorder %s22, 0
      %p154 = por %p152, %p153
      %s156 = sadd.s32 %s155, 1
      %p159 = scmp.eq.s32.totalorder %s16, 1
      %p160 = scmp.ne.s32.totalorder %s155, %s157
      %p161 = scmp.eq.s32.totalorder %s16, 0
      %p162 = por %p160, %p161
      %p163 = scmp.ne.s32.totalorder %s155, %s157
      %p164 = scmp.eq.s32.totalorder %s21, 1
      %p165 = por %p163, %p164
      %p166 = scmp.ne.s32.totalorder %s157, %s158
      %p167 = scmp.eq.s32.totalorder %s21, 0
      %p168 = por %p166, %p167
      %p169 = scmp.ne.s32.totalorder %s157, %s158
      %p170 = scmp.eq.s32.totalorder %s22, 1
      %p171 = por %p169, %p170
      %p173 = scmp.ne.s32.totalorder %s158, %s172
      %p174 = scmp.eq.s32.totalorder %s22, 0
      %p175 = por %p173, %p174
      %s176 = ssub.s32 %s16, %s23
      %p177 = scmp.eq.s32.totalorder %s176, 0
      %s179 = sadd.s32 %s178, 1
      %s180 = scalar_select %p177, %s178, %s179
      %p183 = pneg %p177
      %p184 = scmp.eq.s32.totalorder %s16, 1
      %p185 = por %p183, %p184
      %p186 = scmp.ne.s32.totalorder %s178, %s181
      %p187 = scmp.eq.s32.totalorder %s16, 0
      %p188 = por %p186, %p187
      %p189 = scmp.ne.s32.totalorder %s178, %s181
      %p190 = scmp.eq.s32.totalorder %s21, 1
      %p191 = por %p189, %p190
      %p192 = scmp.ne.s32.totalorder %s181, %s182
      %p193 = scmp.eq.s32.totalorder %s21, 0
      %p194 = por %p192, %p193
      %p195 = scmp.ne.s32.totalorder %s181, %s182
      %p196 = scmp.eq.s32.totalorder %s22, 1
      %p197 = por %p195, %p196
      %p199 = scmp.ne.s32.totalorder %s182, %s198
      %p200 = scmp.eq.s32.totalorder %s22, 0
      %p201 = por %p199, %p200
      %p202 = scmp.le.s32.totalorder 1, %s16
      %p203 = scmp.lt.s32.totalorder %s16, 3
      %p204 = pnand %p202, %p203
      %p205 = pneg %p204
      // Predicated region
      $region9: #{tpu_custom_call.1} parent=5 // pred_check
        _
      $region10: #{tpu_custom_call.1} parent=5 // pred_check_branch
        %207 = sbr.rel (%p204) target = $region12
      $region11: #{tpu_custom_call.1} parent=5 // pred_region
        %s208 = ssub.s32 %s16, 1
        // Predicated region
        $region13: #{tpu_custom_call.1} parent=11 // pred_check
          %p209 = pneg %p63
        $region14: #{tpu_custom_call.1} parent=11 // pred_check_branch
          %211 = sbr.rel (%p209) target = $region16
        $region15: #{tpu_custom_call.1} parent=11 // pred_region
          _
        $region16: #{tpu_custom_call.1} parent=11 // pred_fallthru
          _
        // Predicated region
        $region17: #{tpu_custom_call.1} parent=11 // pred_check
          %p212 = pneg %p84
        $region18: #{tpu_custom_call.1} parent=11 // pred_check_branch
          %214 = sbr.rel (%p212) target = $region20
        $region19: #{tpu_custom_call.1} parent=11 // pred_region
          _
        $region20: #{tpu_custom_call.1} parent=11 // pred_fallthru
          _
        // Predicated region
        $region21: #{tpu_custom_call.1} parent=11 // pred_check
          %p215 = pneg %p105
        $region22: #{tpu_custom_call.1} parent=11 // pred_check_branch
          %217 = sbr.rel (%p215) target = $region24
        $region23: #{tpu_custom_call.1} parent=11 // pred_region
          _
        $region24: #{tpu_custom_call.1} parent=11 // pred_fallthru
          _
        // Predicated region
        $region25: #{tpu_custom_call.1} parent=11 // pred_check
          %p218 = pneg %p126
        $region26: #{tpu_custom_call.1} parent=11 // pred_check_branch
          %220 = sbr.rel (%p218) target = $region28
        $region27: #{tpu_custom_call.1} parent=11 // pred_region
          _
        $region28: #{tpu_custom_call.1} parent=11 // pred_fallthru
          _
        // Predicated region
        $region29: #{tpu_custom_call.1} parent=11 // pred_check
          %p221 = pneg %p147
        $region30: #{tpu_custom_call.1} parent=11 // pred_check_branch
          %223 = sbr.rel (%p221) target = $region32
        $region31: #{tpu_custom_call.1} parent=11 // pred_region
          _
        $region32: #{tpu_custom_call.1} parent=11 // pred_fallthru
          _
        // Predicated region
        $region33: #{tpu_custom_call.1} parent=11 // pred_check
          %p224 = pneg %p168
        $region34: #{tpu_custom_call.1} parent=11 // pred_check_branch
          %226 = sbr.rel (%p224) target = $region36
        $region35: #{tpu_custom_call.1} parent=11 // pred_region
          _
        $region36: #{tpu_custom_call.1} parent=11 // pred_fallthru
          _
      $region12: #{tpu_custom_call.1} parent=5 // pred_fallthru
        _
      %p227 = scmp.lt.s32.totalorder %s16, 2
      // Predicated region
      $region37: #{tpu_custom_call.1} parent=5 // pred_check
        %p228 = pneg %p227
      $region38: #{tpu_custom_call.1} parent=5 // pred_check_branch
        %230 = sbr.rel (%p228) target = $region40
      $region39: #{tpu_custom_call.1} parent=5 // pred_region
        // Predicated region
        $region41: #{tpu_custom_call.1} parent=39 // pred_check
          %p231 = pneg %p36
        $region42: #{tpu_custom_call.1} parent=39 // pred_check_branch
          %233 = sbr.rel (%p231) target = $region44
        $region43: #{tpu_custom_call.1} parent=39 // pred_region
          %p234 = scmp.lt.s32.totalorder %s16, 1
          %s235 = scalar_select %p234, %s16, 1
          %s236 = smul.addr %s235, 2
          %s237 = smul.addr %s236, 4
          %s238 = scalar_lea.vmem %s0, %s237
        $region44: #{tpu_custom_call.1} parent=39 // pred_fallthru
          _
      $region40: #{tpu_custom_call.1} parent=5 // pred_fallthru
        _
      %p239 = scmp.le.s32.totalorder 1, %s16
      %p240 = scmp.lt.s32.totalorder %s16, 3
      %p241 = pnand %p239, %p240
      %p242 = pneg %p241
      // Predicated region
      $region45: #{tpu_custom_call.1} parent=5 // pred_check
        _
      $region46: #{tpu_custom_call.1} parent=5 // pred_check_branch
        %244 = sbr.rel (%p241) target = $region48
      $region47: #{tpu_custom_call.1} parent=5 // pred_region
        %s245 = ssub.s32 %s16, 1
        %p246 = scmp.lt.s32.totalorder %s21, 1
        %s247 = scalar_select %p246, %s21, 1
        %s248 = smul.addr %s247, 2
        %s249 = smul.addr %s248, 4
        %s250 = scalar_lea.vmem %s0, %s249
        %p251 = pneg %p42
        %p252 = pneg %p39
        %p253 = pneg %p63
        %p254 = pneg %p60
        %p255 = pneg %p84
        %p256 = pneg %p81
        %p257 = pneg %p105
        %p258 = pneg %p102
        %p259 = pneg %p126
        %p260 = pneg %p123
        %p261 = pneg %p147
        %p262 = pneg %p144
        %p263 = pneg %p168
        %p264 = pneg %p165
        %p265 = pneg %p194
        %p266 = pneg %p191
        %s267 = sand.u32 %s181, 1
        %s268 = scalar_lea.sflag [#allocation5], %s267
        %s269 = sand.u32 %s181, 1
        %s270 = smul.addr %s269, 12
        %s271 = scalar_lea.vmem [#allocation4], %s270
        %p272 = scmp.lt.s32.totalorder %s21, 1
        %s273 = scalar_select %p272, %s21, 1
        %s274 = smul.addr %s273, 2
        %s275 = smul.addr %s274, 4
        %s276 = scalar_lea.vmem %s0, %s275
        %277 = vst [vmem:[#allocation2] sm:$0xff] 0.0
        %278 = vst [vmem:[#allocation2 + $0x8] sm:$0xff] 0.0
        %vm279 = vcmask 572416
        %280 = vst.msk [vmem:[#allocation2 + $0x10] sm:$0xff] %vm279, 0.0
        %v281 = vld [vmem:[%s276] sm:$0xf]
        %283 = vrot.lane.b32.xlu0 %v281, 20
        %v284 = vpop.permute.xlu0 %283
        %vm286 = vcmask 289952
        %287 = vst.msk [vmem:[#allocation2] sm:$0xf] %vm286, %v284
        %v288 = vld [vmem:[%s276] sm:$0xf]
        %290 = vrot.lane.b32.xlu0 %v288, 22
        %v291 = vpop.permute.xlu0 %290
        %vm293 = vcmask 437552
        %294 = vst.msk [vmem:[#allocation2] sm:$0xf] %vm293, %v291
        %v295 = vld [vmem:[%s276] sm:$0xf]
        %297 = vrot.lane.b32.xlu0 %v295, 24
        %v298 = vpop.permute.xlu0 %297
        %vm300 = vcmask 585152
        %301 = vst.msk [vmem:[#allocation2] sm:$0xf] %vm300, %v298
        %v302 = vld [vmem:[%s276] sm:$0xf]
        %304 = vrot.lane.b32.xlu0 %v302, 26
        %v305 = vpop.permute.xlu0 %304
        %vm307 = vcmask 732752
        %308 = vst.msk [vmem:[#allocation2] sm:$0xf] %vm307, %v305
        %v309 = vld [vmem:[%s276] sm:$0xf]
        %311 = vrot.lane.b32.xlu0 %v309, 28
        %v312 = vpop.permute.xlu0 %311
        %vm314 = vcmask 880352
        %315 = vst.msk [vmem:[#allocation2] sm:$0xf] %vm314, %v312
        %v316 = vld [vmem:[%s276] sm:$0xf]
        %318 = vrot.lane.b32.xlu0 %v316, 30
        %v319 = vpop.permute.xlu0 %318
        %vm321 = vcmask 1027952
        %322 = vst.msk [vmem:[#allocation2] sm:$0xf] %vm321, %v319
        %v323 = vld [vmem:[%s276] sm:$0xf]
        %325 = vrot.lane.b32.xlu0 %v323, 32
        %v326 = vpop.permute.xlu0 %325
        %vm328 = vcmask 125952
        %329 = vst.msk [vmem:[#allocation2 + $0x8] sm:$0xf] %vm328, %v326
        %v330 = vld [vmem:[%s276] sm:$0xf]
        %332 = vrot.lane.b32.xlu0 %v330, 34
        %v333 = vpop.permute.xlu0 %332
        %vm335 = vcmask 273552
        %336 = vst.msk [vmem:[#allocation2 + $0x8] sm:$0xf] %vm335, %v333
        %v337 = vld [vmem:[%s276 + $0x4] sm:$0xf]
        %339 = vrot.lane.b32.xlu0 %v337, 36
        %v340 = vpop.permute.xlu0 %339
        %vm342 = vcmask 421152
        %343 = vst.msk [vmem:[#allocation2 + $0x8] sm:$0xf] %vm342, %v340
        %v344 = vld [vmem:[%s276 + $0x4] sm:$0xf]
        %346 = vrot.lane.b32.xlu0 %v344, 38
        %v347 = vpop.permute.xlu0 %346
        %vm349 = vcmask 568752
        %350 = vst.msk [vmem:[#allocation2 + $0x8] sm:$0xf] %vm349, %v347
        %v351 = vld [vmem:[%s276 + $0x4] sm:$0xf]
        %353 = vrot.lane.b32.xlu0 %v351, 40
        %v354 = vpop.permute.xlu0 %353
        %vm356 = vcmask 716352
        %357 = vst.msk [vmem:[#allocation2 + $0x8] sm:$0xf] %vm356, %v354
        %v358 = vld [vmem:[%s276 + $0x4] sm:$0xf]
        %360 = vrot.lane.b32.xlu0 %v358, 42
        %v361 = vpop.permute.xlu0 %360
        %vm363 = vcmask 863952
        %364 = vst.msk [vmem:[#allocation2 + $0x8] sm:$0xf] %vm363, %v361
        %v365 = vld [vmem:[%s276 + $0x4] sm:$0xf]
        %367 = vrot.lane.b32.xlu0 %v365, 44
        %v368 = vpop.permute.xlu0 %367
        %vm370 = vcmask 1011552
        %371 = vst.msk [vmem:[#allocation2 + $0x8] sm:$0xf] %vm370, %v368
        %v372 = vld [vmem:[%s276 + $0x4] sm:$0xf]
        %374 = vrot.lane.b32.xlu0 %v372, 46
        %v375 = vpop.permute.xlu0 %374
        %vm377 = vcmask 1044464
        %378 = vst.msk [vmem:[#allocation2 + $0x8] sm:$0xf] %vm377, %v375
        %vm379 = vcmask 109568
        %380 = vst.msk [vmem:[#allocation2 + $0x10] sm:$0xf] %vm379, %v375
        %v381 = vld [vmem:[%s276 + $0x4] sm:$0xf]
        %383 = vrot.lane.b32.xlu0 %v381, 48
        %v384 = vpop.permute.xlu0 %383
        %vm386 = vcmask 257152
        %387 = vst.msk [vmem:[#allocation2 + $0x10] sm:$0xf] %vm386, %v384
        %v388 = vld [vmem:[%s276 + $0x4] sm:$0xf]
        %390 = vrot.lane.b32.xlu0 %v388, 50
        %v391 = vpop.permute.xlu0 %390
        %vm393 = vcmask 404752
        %394 = vst.msk [vmem:[#allocation2 + $0x10] sm:$0xf] %vm393, %v391
        %v395 = vld [vmem:[#allocation2] sm:$0xff]
        %v396 = vld [vmem:[#allocation2 + $0x8] sm:$0xff]
        %v397 = vld [vmem:[#allocation2 + $0x10] sm:$0xff]
        %v398 = vld [vmem:[%s3] sm:$0xff]
        %v399 = vld [vmem:[%s4] sm:$0xff]
        %401 = vset.pattern.permute.xlu0 0
        %402 = vperm.xlu0 %401, %v399
        %v403 = vpop.permute.xlu0 %402
        %408 = vrot.lane.b32.xlu0 %v395, 127
        %v409 = vpop.permute.xlu0 %408
        %410 = vrot.lane.b32.xlu0 %v396, 127
        %v411 = vpop.permute.xlu0 %410
        %412 = vrot.lane.b32.xlu0 %v397, 127
        %v413 = vpop.permute.xlu0 %412
        %vm414 = vcmask 1039360
        %v415 = vsel %vm414, %v409, %v411
        %v416 = vsel %vm414, %v411, %v413
        %vm420 = vcmask 64512
        %v422 = vsel %vm420, %v398, 0
        %424 = vmatprep.subr.mxu0 0.0
        %425 = vmatpush1.msra.mxu0 0.0
        %426 = vmatprep.subr.mxu0 0.0
        %427 = vmatpush1.msra.mxu0 0.0
        %428 = vmatprep.subr.mxu0 0.0
        %429 = vmatpush1.msra.mxu0 0.0
        %430 = vmatprep.subr.mxu0 0.0
        %431 = vmatpush1.msra.mxu0 0.0
        %432 = vmatprep.subr.mxu0 0.0
        %433 = vmatpush1.msra.mxu0 0.0
        %434 = vmatprep.subr.mxu0 0.0
        %435 = vmatpush1.msra.mxu0 0.0
        %436 = vmatprep.subr.mxu0 0.0
        %437 = vmatpush1.msra.mxu0 0.0
        %438 = vmatprep.subr.mxu0 0.0
        %439 = vmatpush1.msra.mxu0 0.0
        %440 = vmatprep.subr.mxu0 0.0
        %441 = vmatpush1.msra.mxu0 0.0
        %442 = vmatprep.subr.mxu0 0.0
        %443 = vmatpush1.msra.mxu0 0.0
        %444 = vmatprep.subr.mxu0 0.0
        %445 = vmatpush1.msra.mxu0 0.0
        %446 = vmatprep.subr.mxu0 0.0
        %447 = vmatpush1.msra.mxu0 0.0
        %448 = vmatprep.subr.mxu0 0.0
        %449 = vmatpush1.msra.mxu0 0.0
        %450 = vmatprep.subr.mxu0 0.0
        %451 = vmatpush1.msra.mxu0 0.0
        %452 = vmatprep.subr.mxu0 0.0
        %453 = vmatpush1.msra.mxu0 0.0
        %454 = vmatprep.subr.mxu0 %v416
        %455 = vmatpush1.msra.mxu0 %v415
        %456 = vmatprep.subr.mxu0 0.0
        %457 = vmatpush2.msra.mxu0 0.0
        %458 = vmatprep.subr.mxu0 0.0
        %459 = vmatpush2.msra.mxu0 0.0
        %460 = vmatprep.subr.mxu0 0.0
        %461 = vmatpush2.msra.mxu0 0.0
        %462 = vmatprep.subr.mxu0 0.0
        %463 = vmatpush2.msra.mxu0 0.0
        %464 = vmatprep.subr.mxu0 0.0
        %465 = vmatpush2.msra.mxu0 0.0
        %466 = vmatprep.subr.mxu0 0.0
        %467 = vmatpush2.msra.mxu0 0.0
        %468 = vmatprep.subr.mxu0 0.0
        %469 = vmatpush2.msra.mxu0 0.0
        %470 = vmatprep.subr.mxu0 0.0
        %471 = vmatpush2.msra.mxu0 0.0
        %472 = vmatprep.subr.mxu0 0.0
        %473 = vmatpush2.msra.mxu0 0.0
        %474 = vmatprep.subr.mxu0 0.0
        %475 = vmatpush2.msra.mxu0 0.0
        %476 = vmatprep.subr.mxu0 0.0
        %477 = vmatpush2.msra.mxu0 0.0
        %478 = vmatprep.subr.mxu0 0.0
        %479 = vmatpush2.msra.mxu0 0.0
        %480 = vmatprep.subr.mxu0 0.0
        %481 = vmatpush2.msra.mxu0 0.0
        %482 = vmatprep.subr.mxu0 0.0
        %483 = vmatpush2.msra.mxu0 0.0
        %484 = vmatprep.subr.mxu0 0.0
        %485 = vmatpush2.msra.mxu0 0.0
        %486 = vmatprep.subr.mxu0 0.0
        %487 = vmatpush2.msra.mxu0 0.0
        %488 = vmatprep.mubr.f32.mxu0 0.0
        %489 = vmatmul.mubr.f32.gmra.mxu0 %v422
        %v490 = vpop.f32.mrf.mxu0
        %v491 = vadd.f32 %v403, %v490
        %v492 = vpop.f32.mrf.mxu0
        %v493 = vadd.f32 %v403, %v492
        %494 = vdwg.mxu0
        %495 = vmatprep.subr.mxu0 0.0
        %496 = vmatpush1.msra.mxu0 0.0
        %497 = vmatprep.subr.mxu0 0.0
        %498 = vmatpush1.msra.mxu0 0.0
        %499 = vmatprep.subr.mxu0 0.0
        %500 = vmatpush1.msra.mxu0 0.0
        %501 = vmatprep.subr.mxu0 0.0
        %502 = vmatpush1.msra.mxu0 0.0
        %503 = vmatprep.subr.mxu0 0.0
        %504 = vmatpush1.msra.mxu0 0.0
        %505 = vmatprep.subr.mxu0 0.0
        %506 = vmatpush1.msra.mxu0 0.0
        %507 = vmatprep.subr.mxu0 0.0
        %508 = vmatpush1.msra.mxu0 0.0
        %509 = vmatprep.subr.mxu0 0.0
        %510 = vmatpush1.msra.mxu0 0.0
        %511 = vmatprep.subr.mxu0 0.0
        %512 = vmatpush1.msra.mxu0 0.0
        %513 = vmatprep.subr.mxu0 0.0
        %514 = vmatpush1.msra.mxu0 0.0
        %515 = vmatprep.subr.mxu0 0.0
        %516 = vmatpush1.msra.mxu0 0.0
        %517 = vmatprep.subr.mxu0 0.0
        %518 = vmatpush1.msra.mxu0 0.0
        %519 = vmatprep.subr.mxu0 0.0
        %520 = vmatpush1.msra.mxu0 0.0
        %521 = vmatprep.subr.mxu0 0.0
        %522 = vmatpush1.msra.mxu0 0.0
        %523 = vmatprep.subr.mxu0 0.0
        %524 = vmatpush1.msra.mxu0 0.0
        %525 = vmatprep.subr.mxu0 0.0
        %526 = vmatpush1.msra.mxu0 %v413
        %527 = vmatprep.subr.mxu0 0.0
        %528 = vmatpush2.msra.mxu0 0.0
        %529 = vmatprep.subr.mxu0 0.0
        %530 = vmatpush2.msra.mxu0 0.0
        %531 = vmatprep.subr.mxu0 0.0
        %532 = vmatpush2.msra.mxu0 0.0
        %533 = vmatprep.subr.mxu0 0.0
        %534 = vmatpush2.msra.mxu0 0.0
        %535 = vmatprep.subr.mxu0 0.0
        %536 = vmatpush2.msra.mxu0 0.0
        %537 = vmatprep.subr.mxu0 0.0
        %538 = vmatpush2.msra.mxu0 0.0
        %539 = vmatprep.subr.mxu0 0.0
        %540 = vmatpush2.msra.mxu0 0.0
        %541 = vmatprep.subr.mxu0 0.0
        %542 = vmatpush2.msra.mxu0 0.0
        %543 = vmatprep.subr.mxu0 0.0
        %544 = vmatpush2.msra.mxu0 0.0
        %545 = vmatprep.subr.mxu0 0.0
        %546 = vmatpush2.msra.mxu0 0.0
        %547 = vmatprep.subr.mxu0 0.0
        %548 = vmatpush2.msra.mxu0 0.0
        %549 = vmatprep.subr.mxu0 0.0
        %550 = vmatpush2.msra.mxu0 0.0
        %551 = vmatprep.subr.mxu0 0.0
        %552 = vmatpush2.msra.mxu0 0.0
        %553 = vmatprep.subr.mxu0 0.0
        %554 = vmatpush2.msra.mxu0 0.0
        %555 = vmatprep.subr.mxu0 0.0
        %556 = vmatpush2.msra.mxu0 0.0
        %557 = vmatprep.subr.mxu0 0.0
        %558 = vmatpush2.msra.mxu0 0.0
        %559 = vmatprep.mubr.f32.mxu0 0.0
        %560 = vmatmul.mubr.f32.gmra.mxu0 %v422
        %v561 = vpop.f32.mrf.mxu0
        %v562 = vadd.f32 %v403, %v561
        %v563 = vpop.f32.mrf.mxu0
        %564 = vdwg.mxu0
        %v565 = vld [vmem:[%s1] sm:$0x7]
        %v567 = vlaneseq
        %v568 = vshrl.u32 %v567, 7
        %v569 = vsub.s32 0, %v568
        %v570 = vrot.slane %v565, %v569
        %v571 = vlaneseq
        %v572 = vshrl.u32 %v571, 7
        %v573 = vsub.s32 1, %v572
        %v574 = vrot.slane %v565, %v573
        %v575 = vlaneseq
        %v576 = vshrl.u32 %v575, 7
        %v577 = vsub.s32 2, %v576
        %v578 = vrot.slane %v565, %v577
        %v582 = vmul.f32 %v491, %v570
        %v583 = vmul.f32 %v493, %v574
        %v584 = vmul.f32 %v562, %v578
        %vm585 = vcmask 7168
        %586 = vst.msk [vmem:[#allocation3] sm:$0xff] %vm585, 0.0
        %vm587 = vcmask 572968
        %588 = vst.msk [vmem:[#allocation3 + $0x10] sm:$0xff] %vm587, 0.0
        %592 = vrot.lane.b32.xlu0 %v582, 1
        %v593 = vpop.permute.xlu0 %592
        %594 = vrot.lane.b32.xlu0 %v583, 1
        %v595 = vpop.permute.xlu0 %594
        %596 = vrot.lane.b32.xlu0 %v584, 1
        %v597 = vpop.permute.xlu0 %596
        %v598 = vsel %vm585, %v593, %v595
        %v599 = vsel %vm585, %v595, %v597
        %vm603 = vcmask 1047560
        %604 = vst.msk [vmem:[#allocation3] sm:$0xff] %vm603, %v593
        %605 = vst [vmem:[#allocation3 + $0x8] sm:$0xff] %v598
        %vm606 = vcmask 564224
        %607 = vst.msk [vmem:[#allocation3 + $0x10] sm:$0xff] %vm606, %v599
        %v608 = vld [vmem:[%s6] sm:$0xf]
        %v609 = vld [vmem:[%s2] sm:$0xf]
        %v610 = vld [vmem:[#allocation2] sm:$0xff]
        %v611 = vld [vmem:[#allocation2 + $0x8] sm:$0xff]
        %v612 = vld [vmem:[#allocation2 + $0x10] sm:$0xff]
        %v614 = vsel %vm420, %v609, 0
        %616 = vmatprep.subr.mxu0 0.0
        %617 = vmatpush1.msra.mxu0 0.0
        %618 = vmatprep.subr.mxu0 0.0
        %619 = vmatpush1.msra.mxu0 0.0
        %620 = vmatprep.subr.mxu0 0.0
        %621 = vmatpush1.msra.mxu0 0.0
        %622 = vmatprep.subr.mxu0 0.0
        %623 = vmatpush1.msra.mxu0 0.0
        %624 = vmatprep.subr.mxu0 0.0
        %625 = vmatpush1.msra.mxu0 0.0
        %626 = vmatprep.subr.mxu0 0.0
        %627 = vmatpush1.msra.mxu0 0.0
        %628 = vmatprep.subr.mxu0 0.0
        %629 = vmatpush1.msra.mxu0 0.0
        %630 = vmatprep.subr.mxu0 0.0
        %631 = vmatpush1.msra.mxu0 0.0
        %632 = vmatprep.subr.mxu0 0.0
        %633 = vmatpush1.msra.mxu0 0.0
        %634 = vmatprep.subr.mxu0 0.0
        %635 = vmatpush1.msra.mxu0 0.0
        %636 = vmatprep.subr.mxu0 0.0
        %637 = vmatpush1.msra.mxu0 0.0
        %638 = vmatprep.subr.mxu0 0.0
        %639 = vmatpush1.msra.mxu0 0.0
        %640 = vmatprep.subr.mxu0 0.0
        %641 = vmatpush1.msra.mxu0 0.0
        %642 = vmatprep.subr.mxu0 0.0
        %643 = vmatpush1.msra.mxu0 0.0
        %644 = vmatprep.subr.mxu0 0.0
        %645 = vmatpush1.msra.mxu0 0.0
        %646 = vmatprep.subr.mxu0 %v611
        %647 = vmatpush1.msra.mxu0 %v610
        %648 = vmatprep.subr.mxu0 0.0
        %649 = vmatpush2.msra.mxu0 0.0
        %650 = vmatprep.subr.mxu0 0.0
        %651 = vmatpush2.msra.mxu0 0.0
        %652 = vmatprep.subr.mxu0 0.0
        %653 = vmatpush2.msra.mxu0 0.0
        %654 = vmatprep.subr.mxu0 0.0
        %655 = vmatpush2.msra.mxu0 0.0
        %656 = vmatprep.subr.mxu0 0.0
        %657 = vmatpush2.msra.mxu0 0.0
        %658 = vmatprep.subr.mxu0 0.0
        %659 = vmatpush2.msra.mxu0 0.0
        %660 = vmatprep.subr.mxu0 0.0
        %661 = vmatpush2.msra.mxu0 0.0
        %662 = vmatprep.subr.mxu0 0.0
        %663 = vmatpush2.msra.mxu0 0.0
        %664 = vmatprep.subr.mxu0 0.0
        %665 = vmatpush2.msra.mxu0 0.0
        %666 = vmatprep.subr.mxu0 0.0
        %667 = vmatpush2.msra.mxu0 0.0
        %668 = vmatprep.subr.mxu0 0.0
        %669 = vmatpush2.msra.mxu0 0.0
        %670 = vmatprep.subr.mxu0 0.0
        %671 = vmatpush2.msra.mxu0 0.0
        %672 = vmatprep.subr.mxu0 0.0
        %673 = vmatpush2.msra.mxu0 0.0
        %674 = vmatprep.subr.mxu0 0.0
        %675 = vmatpush2.msra.mxu0 0.0
        %676 = vmatprep.subr.mxu0 0.0
        %677 = vmatpush2.msra.mxu0 0.0
        %678 = vmatprep.subr.mxu0 0.0
        %679 = vmatpush2.msra.mxu0 0.0
        %680 = vmatprep.mubr.f32.mxu0 0.0
        %681 = vmatmul.mubr.f32.gmra.mxu0 %v614
        %v682 = vpop.f32.mrf.mxu0
        %v683 = vadd.f32 0.0, %v682
        %v684 = vpop.f32.mrf.mxu0
        %v685 = vadd.f32 0.0, %v684
        %686 = vdwg.mxu0
        %687 = vmatprep.subr.mxu0 0.0
        %688 = vmatpush1.msra.mxu0 0.0
        %689 = vmatprep.subr.mxu0 0.0
        %690 = vmatpush1.msra.mxu0 0.0
        %691 = vmatprep.subr.mxu0 0.0
        %692 = vmatpush1.msra.mxu0 0.0
        %693 = vmatprep.subr.mxu0 0.0
        %694 = vmatpush1.msra.mxu0 0.0
        %695 = vmatprep.subr.mxu0 0.0
        %696 = vmatpush1.msra.mxu0 0.0
        %697 = vmatprep.subr.mxu0 0.0
        %698 = vmatpush1.msra.mxu0 0.0
        %699 = vmatprep.subr.mxu0 0.0
        %700 = vmatpush1.msra.mxu0 0.0
        %701 = vmatprep.subr.mxu0 0.0
        %702 = vmatpush1.msra.mxu0 0.0
        %703 = vmatprep.subr.mxu0 0.0
        %704 = vmatpush1.msra.mxu0 0.0
        %705 = vmatprep.subr.mxu0 0.0
        %706 = vmatpush1.msra.mxu0 0.0
        %707 = vmatprep.subr.mxu0 0.0
        %708 = vmatpush1.msra.mxu0 0.0
        %709 = vmatprep.subr.mxu0 0.0
        %710 = vmatpush1.msra.mxu0 0.0
        %711 = vmatprep.subr.mxu0 0.0
        %712 = vmatpush1.msra.mxu0 0.0
        %713 = vmatprep.subr.mxu0 0.0
        %714 = vmatpush1.msra.mxu0 0.0
        %715 = vmatprep.subr.mxu0 0.0
        %716 = vmatpush1.msra.mxu0 0.0
        %717 = vmatprep.subr.mxu0 0.0
        %718 = vmatpush1.msra.mxu0 %v612
        %719 = vmatprep.subr.mxu0 0.0
        %720 = vmatpush2.msra.mxu0 0.0
        %721 = vmatprep.subr.mxu0 0.0
        %722 = vmatpush2.msra.mxu0 0.0
        %723 = vmatprep.subr.mxu0 0.0
        %724 = vmatpush2.msra.mxu0 0.0
        %725 = vmatprep.subr.mxu0 0.0
        %726 = vmatpush2.msra.mxu0 0.0
        %727 = vmatprep.subr.mxu0 0.0
        %728 = vmatpush2.msra.mxu0 0.0
        %729 = vmatprep.subr.mxu0 0.0
        %730 = vmatpush2.msra.mxu0 0.0
        %731 = vmatprep.subr.mxu0 0.0
        %732 = vmatpush2.msra.mxu0 0.0
        %733 = vmatprep.subr.mxu0 0.0
        %734 = vmatpush2.msra.mxu0 0.0
        %735 = vmatprep.subr.mxu0 0.0
        %736 = vmatpush2.msra.mxu0 0.0
        %737 = vmatprep.subr.mxu0 0.0
        %738 = vmatpush2.msra.mxu0 0.0
        %739 = vmatprep.subr.mxu0 0.0
        %740 = vmatpush2.msra.mxu0 0.0
        %741 = vmatprep.subr.mxu0 0.0
        %742 = vmatpush2.msra.mxu0 0.0
        %743 = vmatprep.subr.mxu0 0.0
        %744 = vmatpush2.msra.mxu0 0.0
        %745 = vmatprep.subr.mxu0 0.0
        %746 = vmatpush2.msra.mxu0 0.0
        %747 = vmatprep.subr.mxu0 0.0
        %748 = vmatpush2.msra.mxu0 0.0
        %749 = vmatprep.subr.mxu0 0.0
        %750 = vmatpush2.msra.mxu0 0.0
        %751 = vmatprep.mubr.f32.mxu0 0.0
        %752 = vmatmul.mubr.f32.gmra.mxu0 %v614
        %v753 = vpop.f32.mrf.mxu0
        %v754 = vadd.f32 0.0, %v753
        %v755 = vpop.f32.mrf.mxu0
        %756 = vdwg.mxu0
        %758 = vset.pattern.permute.xlu0 0
        %759 = vperm.xlu0 %758, %v608
        %v760 = vpop.permute.xlu0 %759
        %v762 = vadd.f32 %v760, %v683
        %v763 = vadd.f32 %v760, %v685
        %v764 = vadd.f32 %v760, %v754
        %v765 = vld [vmem:[%s5] sm:$0xf]
        %v766 = vld [vmem:[#allocation3] sm:$0xff]
        %v767 = vld [vmem:[#allocation3 + $0x8] sm:$0xff]
        %v768 = vld [vmem:[#allocation3 + $0x10] sm:$0xff]
        %v770 = vsel %vm420, %v765, 0
        %772 = vmatprep.subr.mxu0 0.0
        %773 = vmatpush1.msra.mxu0 0.0
        %774 = vmatprep.subr.mxu0 0.0
        %775 = vmatpush1.msra.mxu0 0.0
        %776 = vmatprep.subr.mxu0 0.0
        %777 = vmatpush1.msra.mxu0 0.0
        %778 = vmatprep.subr.mxu0 0.0
        %779 = vmatpush1.msra.mxu0 0.0
        %780 = vmatprep.subr.mxu0 0.0
        %781 = vmatpush1.msra.mxu0 0.0
        %782 = vmatprep.subr.mxu0 0.0
        %783 = vmatpush1.msra.mxu0 0.0
        %784 = vmatprep.subr.mxu0 0.0
        %785 = vmatpush1.msra.mxu0 0.0
        %786 = vmatprep.subr.mxu0 0.0
        %787 = vmatpush1.msra.mxu0 0.0
        %788 = vmatprep.subr.mxu0 0.0
        %789 = vmatpush1.msra.mxu0 0.0
        %790 = vmatprep.subr.mxu0 0.0
        %791 = vmatpush1.msra.mxu0 0.0
        %792 = vmatprep.subr.mxu0 0.0
        %793 = vmatpush1.msra.mxu0 0.0
        %794 = vmatprep.subr.mxu0 0.0
        %795 = vmatpush1.msra.mxu0 0.0
        %796 = vmatprep.subr.mxu0 0.0
        %797 = vmatpush1.msra.mxu0 0.0
        %798 = vmatprep.subr.mxu0 0.0
        %799 = vmatpush1.msra.mxu0 0.0
        %800 = vmatprep.subr.mxu0 0.0
        %801 = vmatpush1.msra.mxu0 0.0
        %802 = vmatprep.subr.mxu0 %v767
        %803 = vmatpush1.msra.mxu0 %v766
        %804 = vmatprep.subr.mxu0 0.0
        %805 = vmatpush2.msra.mxu0 0.0
        %806 = vmatprep.subr.mxu0 0.0
        %807 = vmatpush2.msra.mxu0 0.0
        %808 = vmatprep.subr.mxu0 0.0
        %809 = vmatpush2.msra.mxu0 0.0
        %810 = vmatprep.subr.mxu0 0.0
        %811 = vmatpush2.msra.mxu0 0.0
        %812 = vmatprep.subr.mxu0 0.0
        %813 = vmatpush2.msra.mxu0 0.0
        %814 = vmatprep.subr.mxu0 0.0
        %815 = vmatpush2.msra.mxu0 0.0
        %816 = vmatprep.subr.mxu0 0.0
        %817 = vmatpush2.msra.mxu0 0.0
        %818 = vmatprep.subr.mxu0 0.0
        %819 = vmatpush2.msra.mxu0 0.0
        %820 = vmatprep.subr.mxu0 0.0
        %821 = vmatpush2.msra.mxu0 0.0
        %822 = vmatprep.subr.mxu0 0.0
        %823 = vmatpush2.msra.mxu0 0.0
        %824 = vmatprep.subr.mxu0 0.0
        %825 = vmatpush2.msra.mxu0 0.0
        %826 = vmatprep.subr.mxu0 0.0
        %827 = vmatpush2.msra.mxu0 0.0
        %828 = vmatprep.subr.mxu0 0.0
        %829 = vmatpush2.msra.mxu0 0.0
        %830 = vmatprep.subr.mxu0 0.0
        %831 = vmatpush2.msra.mxu0 0.0
        %832 = vmatprep.subr.mxu0 0.0
        %833 = vmatpush2.msra.mxu0 0.0
        %834 = vmatprep.subr.mxu0 0.0
        %835 = vmatpush2.msra.mxu0 0.0
        %836 = vmatprep.mubr.f32.mxu0 0.0
        %837 = vmatmul.mubr.f32.gmra.mxu0 %v770
        %v838 = vpop.f32.mrf.mxu0
        %v839 = vadd.f32 0.0, %v838
        %v840 = vpop.f32.mrf.mxu0
        %v841 = vadd.f32 0.0, %v840
        %842 = vdwg.mxu0
        %843 = vmatprep.subr.mxu0 0.0
        %844 = vmatpush1.msra.mxu0 0.0
        %845 = vmatprep.subr.mxu0 0.0
        %846 = vmatpush1.msra.mxu0 0.0
        %847 = vmatprep.subr.mxu0 0.0
        %848 = vmatpush1.msra.mxu0 0.0
        %849 = vmatprep.subr.mxu0 0.0
        %850 = vmatpush1.msra.mxu0 0.0
        %851 = vmatprep.subr.mxu0 0.0
        %852 = vmatpush1.msra.mxu0 0.0
        %853 = vmatprep.subr.mxu0 0.0
        %854 = vmatpush1.msra.mxu0 0.0
        %855 = vmatprep.subr.mxu0 0.0
        %856 = vmatpush1.msra.mxu0 0.0
        %857 = vmatprep.subr.mxu0 0.0
        %858 = vmatpush1.msra.mxu0 0.0
        %859 = vmatprep.subr.mxu0 0.0
        %860 = vmatpush1.msra.mxu0 0.0
        %861 = vmatprep.subr.mxu0 0.0
        %862 = vmatpush1.msra.mxu0 0.0
        %863 = vmatprep.subr.mxu0 0.0
        %864 = vmatpush1.msra.mxu0 0.0
        %865 = vmatprep.subr.mxu0 0.0
        %866 = vmatpush1.msra.mxu0 0.0
        %867 = vmatprep.subr.mxu0 0.0
        %868 = vmatpush1.msra.mxu0 0.0
        %869 = vmatprep.subr.mxu0 0.0
        %870 = vmatpush1.msra.mxu0 0.0
        %871 = vmatprep.subr.mxu0 0.0
        %872 = vmatpush1.msra.mxu0 0.0
        %873 = vmatprep.subr.mxu0 0.0
        %874 = vmatpush1.msra.mxu0 %v768
        %875 = vmatprep.subr.mxu0 0.0
        %876 = vmatpush2.msra.mxu0 0.0
        %877 = vmatprep.subr.mxu0 0.0
        %878 = vmatpush2.msra.mxu0 0.0
        %879 = vmatprep.subr.mxu0 0.0
        %880 = vmatpush2.msra.mxu0 0.0
        %881 = vmatprep.subr.mxu0 0.0
        %882 = vmatpush2.msra.mxu0 0.0
        %883 = vmatprep.subr.mxu0 0.0
        %884 = vmatpush2.msra.mxu0 0.0
        %885 = vmatprep.subr.mxu0 0.0
        %886 = vmatpush2.msra.mxu0 0.0
        %887 = vmatprep.subr.mxu0 0.0
        %888 = vmatpush2.msra.mxu0 0.0
        %889 = vmatprep.subr.mxu0 0.0
        %890 = vmatpush2.msra.mxu0 0.0
        %891 = vmatprep.subr.mxu0 0.0
        %892 = vmatpush2.msra.mxu0 0.0
        %893 = vmatprep.subr.mxu0 0.0
        %894 = vmatpush2.msra.mxu0 0.0
        %895 = vmatprep.subr.mxu0 0.0
        %896 = vmatpush2.msra.mxu0 0.0
        %897 = vmatprep.subr.mxu0 0.0
        %898 = vmatpush2.msra.mxu0 0.0
        %899 = vmatprep.subr.mxu0 0.0
        %900 = vmatpush2.msra.mxu0 0.0
        %901 = vmatprep.subr.mxu0 0.0
        %902 = vmatpush2.msra.mxu0 0.0
        %903 = vmatprep.subr.mxu0 0.0
        %904 = vmatpush2.msra.mxu0 0.0
        %905 = vmatprep.subr.mxu0 0.0
        %906 = vmatpush2.msra.mxu0 0.0
        %907 = vmatprep.mubr.f32.mxu0 0.0
        %908 = vmatmul.mubr.f32.gmra.mxu0 %v770
        %v909 = vpop.f32.mrf.mxu0
        %v910 = vadd.f32 0.0, %v909
        %v911 = vpop.f32.mrf.mxu0
        %912 = vdwg.mxu0
        %v913 = vadd.f32 %v762, %v839
        %v914 = vadd.f32 %v763, %v841
        %v915 = vadd.f32 %v764, %v910
        %s916 = scalar_lea.vmem %s2, 4
        %v917 = vld [vmem:[%s916] sm:$0xf]
        %921 = vrot.lane.b32.xlu0 %v610, 127
        %v922 = vpop.permute.xlu0 %921
        %923 = vrot.lane.b32.xlu0 %v611, 127
        %v924 = vpop.permute.xlu0 %923
        %925 = vrot.lane.b32.xlu0 %v612, 127
        %v926 = vpop.permute.xlu0 %925
        %v927 = vsel %vm414, %v922, %v924
        %v928 = vsel %vm414, %v924, %v926
        %v933 = vsel %vm420, %v917, 0
        %935 = vmatprep.subr.mxu0 0.0
        %936 = vmatpush1.msra.mxu0 0.0
        %937 = vmatprep.subr.mxu0 0.0
        %938 = vmatpush1.msra.mxu0 0.0
        %939 = vmatprep.subr.mxu0 0.0
        %940 = vmatpush1.msra.mxu0 0.0
        %941 = vmatprep.subr.mxu0 0.0
        %942 = vmatpush1.msra.mxu0 0.0
        %943 = vmatprep.subr.mxu0 0.0
        %944 = vmatpush1.msra.mxu0 0.0
        %945 = vmatprep.subr.mxu0 0.0
        %946 = vmatpush1.msra.mxu0 0.0
        %947 = vmatprep.subr.mxu0 0.0
        %948 = vmatpush1.msra.mxu0 0.0
        %949 = vmatprep.subr.mxu0 0.0
        %950 = vmatpush1.msra.mxu0 0.0
        %951 = vmatprep.subr.mxu0 0.0
        %952 = vmatpush1.msra.mxu0 0.0
        %953 = vmatprep.subr.mxu0 0.0
        %954 = vmatpush1.msra.mxu0 0.0
        %955 = vmatprep.subr.mxu0 0.0
        %956 = vmatpush1.msra.mxu0 0.0
        %957 = vmatprep.subr.mxu0 0.0
        %958 = vmatpush1.msra.mxu0 0.0
        %959 = vmatprep.subr.mxu0 0.0
        %960 = vmatpush1.msra.mxu0 0.0
        %961 = vmatprep.subr.mxu0 0.0
        %962 = vmatpush1.msra.mxu0 0.0
        %963 = vmatprep.subr.mxu0 0.0
        %964 = vmatpush1.msra.mxu0 0.0
        %965 = vmatprep.subr.mxu0 %v928
        %966 = vmatpush1.msra.mxu0 %v927
        %967 = vmatprep.subr.mxu0 0.0
        %968 = vmatpush2.msra.mxu0 0.0
        %969 = vmatprep.subr.mxu0 0.0
        %970 = vmatpush2.msra.mxu0 0.0
        %971 = vmatprep.subr.mxu0 0.0
        %972 = vmatpush2.msra.mxu0 0.0
        %973 = vmatprep.subr.mxu0 0.0
        %974 = vmatpush2.msra.mxu0 0.0
        %975 = vmatprep.subr.mxu0 0.0
        %976 = vmatpush2.msra.mxu0 0.0
        %977 = vmatprep.subr.mxu0 0.0
        %978 = vmatpush2.msra.mxu0 0.0
        %979 = vmatprep.subr.mxu0 0.0
        %980 = vmatpush2.msra.mxu0 0.0
        %981 = vmatprep.subr.mxu0 0.0
        %982 = vmatpush2.msra.mxu0 0.0
        %983 = vmatprep.subr.mxu0 0.0
        %984 = vmatpush2.msra.mxu0 0.0
        %985 = vmatprep.subr.mxu0 0.0
        %986 = vmatpush2.msra.mxu0 0.0
        %987 = vmatprep.subr.mxu0 0.0
        %988 = vmatpush2.msra.mxu0 0.0
        %989 = vmatprep.subr.mxu0 0.0
        %990 = vmatpush2.msra.mxu0 0.0
        %991 = vmatprep.subr.mxu0 0.0
        %992 = vmatpush2.msra.mxu0 0.0
        %993 = vmatprep.subr.mxu0 0.0
        %994 = vmatpush2.msra.mxu0 0.0
        %995 = vmatprep.subr.mxu0 0.0
        %996 = vmatpush2.msra.mxu0 0.0
        %997 = vmatprep.subr.mxu0 0.0
        %998 = vmatpush2.msra.mxu0 0.0
        %999 = vmatprep.mubr.f32.mxu0 0.0
        %1000 = vmatmul.mubr.f32.gmra.mxu0 %v933
        %v1001 = vpop.f32.mrf.mxu0
        %v1002 = vadd.f32 0.0, %v1001
        %v1003 = vpop.f32.mrf.mxu0
        %v1004 = vadd.f32 0.0, %v1003
        %1005 = vdwg.mxu0
        %1006 = vmatprep.subr.mxu0 0.0
        %1007 = vmatpush1.msra.mxu0 0.0
        %1008 = vmatprep.subr.mxu0 0.0
        %1009 = vmatpush1.msra.mxu0 0.0
        %1010 = vmatprep.subr.mxu0 0.0
        %1011 = vmatpush1.msra.mxu0 0.0
        %1012 = vmatprep.subr.mxu0 0.0
        %1013 = vmatpush1.msra.mxu0 0.0
        %1014 = vmatprep.subr.mxu0 0.0
        %1015 = vmatpush1.msra.mxu0 0.0
        %1016 = vmatprep.subr.mxu0 0.0
        %1017 = vmatpush1.msra.mxu0 0.0
        %1018 = vmatprep.subr.mxu0 0.0
        %1019 = vmatpush1.msra.mxu0 0.0
        %1020 = vmatprep.subr.mxu0 0.0
        %1021 = vmatpush1.msra.mxu0 0.0
        %1022 = vmatprep.subr.mxu0 0.0
        %1023 = vmatpush1.msra.mxu0 0.0
        %1024 = vmatprep.subr.mxu0 0.0
        %1025 = vmatpush1.msra.mxu0 0.0
        %1026 = vmatprep.subr.mxu0 0.0
        %1027 = vmatpush1.msra.mxu0 0.0
        %1028 = vmatprep.subr.mxu0 0.0
        %1029 = vmatpush1.msra.mxu0 0.0
        %1030 = vmatprep.subr.mxu0 0.0
        %1031 = vmatpush1.msra.mxu0 0.0
        %1032 = vmatprep.subr.mxu0 0.0
        %1033 = vmatpush1.msra.mxu0 0.0
        %1034 = vmatprep.subr.mxu0 0.0
        %1035 = vmatpush1.msra.mxu0 0.0
        %1036 = vmatprep.subr.mxu0 0.0
        %1037 = vmatpush1.msra.mxu0 %v926
        %1038 = vmatprep.subr.mxu0 0.0
        %1039 = vmatpush2.msra.mxu0 0.0
        %1040 = vmatprep.subr.mxu0 0.0
        %1041 = vmatpush2.msra.mxu0 0.0
        %1042 = vmatprep.subr.mxu0 0.0
        %1043 = vmatpush2.msra.mxu0 0.0
        %1044 = vmatprep.subr.mxu0 0.0
        %1045 = vmatpush2.msra.mxu0 0.0
        %1046 = vmatprep.subr.mxu0 0.0
        %1047 = vmatpush2.msra.mxu0 0.0
        %1048 = vmatprep.subr.mxu0 0.0
        %1049 = vmatpush2.msra.mxu0 0.0
        %1050 = vmatprep.subr.mxu0 0.0
        %1051 = vmatpush2.msra.mxu0 0.0
        %1052 = vmatprep.subr.mxu0 0.0
        %1053 = vmatpush2.msra.mxu0 0.0
        %1054 = vmatprep.subr.mxu0 0.0
        %1055 = vmatpush2.msra.mxu0 0.0
        %1056 = vmatprep.subr.mxu0 0.0
        %1057 = vmatpush2.msra.mxu0 0.0
        %1058 = vmatprep.subr.mxu0 0.0
        %1059 = vmatpush2.msra.mxu0 0.0
        %1060 = vmatprep.subr.mxu0 0.0
        %1061 = vmatpush2.msra.mxu0 0.0
        %1062 = vmatprep.subr.mxu0 0.0
        %1063 = vmatpush2.msra.mxu0 0.0
        %1064 = vmatprep.subr.mxu0 0.0
        %1065 = vmatpush2.msra.mxu0 0.0
        %1066 = vmatprep.subr.mxu0 0.0
        %1067 = vmatpush2.msra.mxu0 0.0
        %1068 = vmatprep.subr.mxu0 0.0
        %1069 = vmatpush2.msra.mxu0 0.0
        %1070 = vmatprep.mubr.f32.mxu0 0.0
        %1071 = vmatmul.mubr.f32.gmra.mxu0 %v933
        %v1072 = vpop.f32.mrf.mxu0
        %v1073 = vadd.f32 0.0, %v1072
        %v1074 = vpop.f32.mrf.mxu0
        %1075 = vdwg.mxu0
        %v1076 = vadd.f32 %v913, %v1002
        %v1077 = vadd.f32 %v914, %v1004
        %v1078 = vadd.f32 %v915, %v1073
        %s1079 = scalar_lea.vmem %s5, 4
        %v1080 = vld [vmem:[%s1079] sm:$0xf]
        %1084 = vrot.lane.b32.xlu0 %v766, 127
        %v1085 = vpop.permute.xlu0 %1084
        %1086 = vrot.lane.b32.xlu0 %v767, 127
        %v1087 = vpop.permute.xlu0 %1086
        %1088 = vrot.lane.b32.xlu0 %v768, 127
        %v1089 = vpop.permute.xlu0 %1088
        %v1090 = vsel %vm414, %v1085, %v1087
        %v1091 = vsel %vm414, %v1087, %v1089
        %v1096 = vsel %vm420, %v1080, 0
        %1098 = vmatprep.subr.mxu0 0.0
        %1099 = vmatpush1.msra.mxu0 0.0
        %1100 = vmatprep.subr.mxu0 0.0
        %1101 = vmatpush1.msra.mxu0 0.0
        %1102 = vmatprep.subr.mxu0 0.0
        %1103 = vmatpush1.msra.mxu0 0.0
        %1104 = vmatprep.subr.mxu0 0.0
        %1105 = vmatpush1.msra.mxu0 0.0
        %1106 = vmatprep.subr.mxu0 0.0
        %1107 = vmatpush1.msra.mxu0 0.0
        %1108 = vmatprep.subr.mxu0 0.0
        %1109 = vmatpush1.msra.mxu0 0.0
        %1110 = vmatprep.subr.mxu0 0.0
        %1111 = vmatpush1.msra.mxu0 0.0
        %1112 = vmatprep.subr.mxu0 0.0
        %1113 = vmatpush1.msra.mxu0 0.0
        %1114 = vmatprep.subr.mxu0 0.0
        %1115 = vmatpush1.msra.mxu0 0.0
        %1116 = vmatprep.subr.mxu0 0.0
        %1117 = vmatpush1.msra.mxu0 0.0
        %1118 = vmatprep.subr.mxu0 0.0
        %1119 = vmatpush1.msra.mxu0 0.0
        %1120 = vmatprep.subr.mxu0 0.0
        %1121 = vmatpush1.msra.mxu0 0.0
        %1122 = vmatprep.subr.mxu0 0.0
        %1123 = vmatpush1.msra.mxu0 0.0
        %1124 = vmatprep.subr.mxu0 0.0
        %1125 = vmatpush1.msra.mxu0 0.0
        %1126 = vmatprep.subr.mxu0 0.0
        %1127 = vmatpush1.msra.mxu0 0.0
        %1128 = vmatprep.subr.mxu0 %v1091
        %1129 = vmatpush1.msra.mxu0 %v1090
        %1130 = vmatprep.subr.mxu0 0.0
        %1131 = vmatpush2.msra.mxu0 0.0
        %1132 = vmatprep.subr.mxu0 0.0
        %1133 = vmatpush2.msra.mxu0 0.0
        %1134 = vmatprep.subr.mxu0 0.0
        %1135 = vmatpush2.msra.mxu0 0.0
        %1136 = vmatprep.subr.mxu0 0.0
        %1137 = vmatpush2.msra.mxu0 0.0
        %1138 = vmatprep.subr.mxu0 0.0
        %1139 = vmatpush2.msra.mxu0 0.0
        %1140 = vmatprep.subr.mxu0 0.0
        %1141 = vmatpush2.msra.mxu0 0.0
        %1142 = vmatprep.subr.mxu0 0.0
        %1143 = vmatpush2.msra.mxu0 0.0
        %1144 = vmatprep.subr.mxu0 0.0
        %1145 = vmatpush2.msra.mxu0 0.0
        %1146 = vmatprep.subr.mxu0 0.0
        %1147 = vmatpush2.msra.mxu0 0.0
        %1148 = vmatprep.subr.mxu0 0.0
        %1149 = vmatpush2.msra.mxu0 0.0
        %1150 = vmatprep.subr.mxu0 0.0
        %1151 = vmatpush2.msra.mxu0 0.0
        %1152 = vmatprep.subr.mxu0 0.0
        %1153 = vmatpush2.msra.mxu0 0.0
        %1154 = vmatprep.subr.mxu0 0.0
        %1155 = vmatpush2.msra.mxu0 0.0
        %1156 = vmatprep.subr.mxu0 0.0
        %1157 = vmatpush2.msra.mxu0 0.0
        %1158 = vmatprep.subr.mxu0 0.0
        %1159 = vmatpush2.msra.mxu0 0.0
        %1160 = vmatprep.subr.mxu0 0.0
        %1161 = vmatpush2.msra.mxu0 0.0
        %1162 = vmatprep.mubr.f32.mxu0 0.0
        %1163 = vmatmul.mubr.f32.gmra.mxu0 %v1096
        %v1164 = vpop.f32.mrf.mxu0
        %v1165 = vadd.f32 0.0, %v1164
        %v1166 = vpop.f32.mrf.mxu0
        %v1167 = vadd.f32 0.0, %v1166
        %1168 = vdwg.mxu0
        %1169 = vmatprep.subr.mxu0 0.0
        %1170 = vmatpush1.msra.mxu0 0.0
        %1171 = vmatprep.subr.mxu0 0.0
        %1172 = vmatpush1.msra.mxu0 0.0
        %1173 = vmatprep.subr.mxu0 0.0
        %1174 = vmatpush1.msra.mxu0 0.0
        %1175 = vmatprep.subr.mxu0 0.0
        %1176 = vmatpush1.msra.mxu0 0.0
        %1177 = vmatprep.subr.mxu0 0.0
        %1178 = vmatpush1.msra.mxu0 0.0
        %1179 = vmatprep.subr.mxu0 0.0
        %1180 = vmatpush1.msra.mxu0 0.0
        %1181 = vmatprep.subr.mxu0 0.0
        %1182 = vmatpush1.msra.mxu0 0.0
        %1183 = vmatprep.subr.mxu0 0.0
        %1184 = vmatpush1.msra.mxu0 0.0
        %1185 = vmatprep.subr.mxu0 0.0
        %1186 = vmatpush1.msra.mxu0 0.0
        %1187 = vmatprep.subr.mxu0 0.0
        %1188 = vmatpush1.msra.mxu0 0.0
        %1189 = vmatprep.subr.mxu0 0.0
        %1190 = vmatpush1.msra.mxu0 0.0
        %1191 = vmatprep.subr.mxu0 0.0
        %1192 = vmatpush1.msra.mxu0 0.0
        %1193 = vmatprep.subr.mxu0 0.0
        %1194 = vmatpush1.msra.mxu0 0.0
        %1195 = vmatprep.subr.mxu0 0.0
        %1196 = vmatpush1.msra.mxu0 0.0
        %1197 = vmatprep.subr.mxu0 0.0
        %1198 = vmatpush1.msra.mxu0 0.0
        %1199 = vmatprep.subr.mxu0 0.0
        %1200 = vmatpush1.msra.mxu0 %v1089
        %1201 = vmatprep.subr.mxu0 0.0
        %1202 = vmatpush2.msra.mxu0 0.0
        %1203 = vmatprep.subr.mxu0 0.0
        %1204 = vmatpush2.msra.mxu0 0.0
        %1205 = vmatprep.subr.mxu0 0.0
        %1206 = vmatpush2.msra.mxu0 0.0
        %1207 = vmatprep.subr.mxu0 0.0
        %1208 = vmatpush2.msra.mxu0 0.0
        %1209 = vmatprep.subr.mxu0 0.0
        %1210 = vmatpush2.msra.mxu0 0.0
        %1211 = vmatprep.subr.mxu0 0.0
        %1212 = vmatpush2.msra.mxu0 0.0
        %1213 = vmatprep.subr.mxu0 0.0
        %1214 = vmatpush2.msra.mxu0 0.0
        %1215 = vmatprep.subr.mxu0 0.0
        %1216 = vmatpush2.msra.mxu0 0.0
        %1217 = vmatprep.subr.mxu0 0.0
        %1218 = vmatpush2.msra.mxu0 0.0
        %1219 = vmatprep.subr.mxu0 0.0
        %1220 = vmatpush2.msra.mxu0 0.0
        %1221 = vmatprep.subr.mxu0 0.0
        %1222 = vmatpush2.msra.mxu0 0.0
        %1223 = vmatprep.subr.mxu0 0.0
        %1224 = vmatpush2.msra.mxu0 0.0
        %1225 = vmatprep.subr.mxu0 0.0
        %1226 = vmatpush2.msra.mxu0 0.0
        %1227 = vmatprep.subr.mxu0 0.0
        %1228 = vmatpush2.msra.mxu0 0.0
        %1229 = vmatprep.subr.mxu0 0.0
        %1230 = vmatpush2.msra.mxu0 0.0
        %1231 = vmatprep.subr.mxu0 0.0
        %1232 = vmatpush2.msra.mxu0 0.0
        %1233 = vmatprep.mubr.f32.mxu0 0.0
        %1234 = vmatmul.mubr.f32.gmra.mxu0 %v1096
        %v1235 = vpop.f32.mrf.mxu0
        %v1236 = vadd.f32 0.0, %v1235
        %v1237 = vpop.f32.mrf.mxu0
        %1238 = vdwg.mxu0
        %v1239 = vadd.f32 %v1076, %v1165
        %v1240 = vadd.f32 %v1077, %v1167
        %v1241 = vadd.f32 %v1078, %v1236
        %s1242 = scalar_lea.vmem %s2, 8
        %v1243 = vld [vmem:[%s1242] sm:$0xf]
        %1244 = vrot.lane.b32.xlu0 %v610, 126
        %v1245 = vpop.permute.xlu0 %1244
        %1246 = vrot.lane.b32.xlu0 %v611, 126
        %v1247 = vpop.permute.xlu0 %1246
        %1248 = vrot.lane.b32.xlu0 %v612, 126
        %v1249 = vpop.permute.xlu0 %1248
        %vm1250 = vcmask 1031168
        %v1251 = vsel %vm1250, %v1245, %v1247
        %v1252 = vsel %vm1250, %v1247, %v1249
        %v1257 = vsel %vm420, %v1243, 0
        %1259 = vmatprep.subr.mxu0 0.0
        %1260 = vmatpush1.msra.mxu0 0.0
        %1261 = vmatprep.subr.mxu0 0.0
        %1262 = vmatpush1.msra.mxu0 0.0
        %1263 = vmatprep.subr.mxu0 0.0
        %1264 = vmatpush1.msra.mxu0 0.0
        %1265 = vmatprep.subr.mxu0 0.0
        %1266 = vmatpush1.msra.mxu0 0.0
        %1267 = vmatprep.subr.mxu0 0.0
        %1268 = vmatpush1.msra.mxu0 0.0
        %1269 = vmatprep.subr.mxu0 0.0
        %1270 = vmatpush1.msra.mxu0 0.0
        %1271 = vmatprep.subr.mxu0 0.0
        %1272 = vmatpush1.msra.mxu0 0.0
        %1273 = vmatprep.subr.mxu0 0.0
        %1274 = vmatpush1.msra.mxu0 0.0
        %1275 = vmatprep.subr.mxu0 0.0
        %1276 = vmatpush1.msra.mxu0 0.0
        %1277 = vmatprep.subr.mxu0 0.0
        %1278 = vmatpush1.msra.mxu0 0.0
        %1279 = vmatprep.subr.mxu0 0.0
        %1280 = vmatpush1.msra.mxu0 0.0
        %1281 = vmatprep.subr.mxu0 0.0
        %1282 = vmatpush1.msra.mxu0 0.0
        %1283 = vmatprep.subr.mxu0 0.0
        %1284 = vmatpush1.msra.mxu0 0.0
        %1285 = vmatprep.subr.mxu0 0.0
        %1286 = vmatpush1.msra.mxu0 0.0
        %1287 = vmatprep.subr.mxu0 0.0
        %1288 = vmatpush1.msra.mxu0 0.0
        %1289 = vmatprep.subr.mxu0 %v1252
        %1290 = vmatpush1.msra.mxu0 %v1251
        %1291 = vmatprep.subr.mxu0 0.0
        %1292 = vmatpush2.msra.mxu0 0.0
        %1293 = vmatprep.subr.mxu0 0.0
        %1294 = vmatpush2.msra.mxu0 0.0
        %1295 = vmatprep.subr.mxu0 0.0
        %1296 = vmatpush2.msra.mxu0 0.0
        %1297 = vmatprep.subr.mxu0 0.0
        %1298 = vmatpush2.msra.mxu0 0.0
        %1299 = vmatprep.subr.mxu0 0.0
        %1300 = vmatpush2.msra.mxu0 0.0
        %1301 = vmatprep.subr.mxu0 0.0
        %1302 = vmatpush2.msra.mxu0 0.0
        %1303 = vmatprep.subr.mxu0 0.0
        %1304 = vmatpush2.msra.mxu0 0.0
        %1305 = vmatprep.subr.mxu0 0.0
        %1306 = vmatpush2.msra.mxu0 0.0
        %1307 = vmatprep.subr.mxu0 0.0
        %1308 = vmatpush2.msra.mxu0 0.0
        %1309 = vmatprep.subr.mxu0 0.0
        %1310 = vmatpush2.msra.mxu0 0.0
        %1311 = vmatprep.subr.mxu0 0.0
        %1312 = vmatpush2.msra.mxu0 0.0
        %1313 = vmatprep.subr.mxu0 0.0
        %1314 = vmatpush2.msra.mxu0 0.0
        %1315 = vmatprep.subr.mxu0 0.0
        %1316 = vmatpush2.msra.mxu0 0.0
        %1317 = vmatprep.subr.mxu0 0.0
        %1318 = vmatpush2.msra.mxu0 0.0
        %1319 = vmatprep.subr.mxu0 0.0
        %1320 = vmatpush2.msra.mxu0 0.0
        %1321 = vmatprep.subr.mxu0 0.0
        %1322 = vmatpush2.msra.mxu0 0.0
        %1323 = vmatprep.mubr.f32.mxu0 0.0
        %1324 = vmatmul.mubr.f32.gmra.mxu0 %v1257
        %v1325 = vpop.f32.mrf.mxu0
        %v1326 = vadd.f32 0.0, %v1325
        %v1327 = vpop.f32.mrf.mxu0
        %v1328 = vadd.f32 0.0, %v1327
        %1329 = vdwg.mxu0
        %1330 = vmatprep.subr.mxu0 0.0
        %1331 = vmatpush1.msra.mxu0 0.0
        %1332 = vmatprep.subr.mxu0 0.0
        %1333 = vmatpush1.msra.mxu0 0.0
        %1334 = vmatprep.subr.mxu0 0.0
        %1335 = vmatpush1.msra.mxu0 0.0
        %1336 = vmatprep.subr.mxu0 0.0
        %1337 = vmatpush1.msra.mxu0 0.0
        %1338 = vmatprep.subr.mxu0 0.0
        %1339 = vmatpush1.msra.mxu0 0.0
        %1340 = vmatprep.subr.mxu0 0.0
        %1341 = vmatpush1.msra.mxu0 0.0
        %1342 = vmatprep.subr.mxu0 0.0
        %1343 = vmatpush1.msra.mxu0 0.0
        %1344 = vmatprep.subr.mxu0 0.0
        %1345 = vmatpush1.msra.mxu0 0.0
        %1346 = vmatprep.subr.mxu0 0.0
        %1347 = vmatpush1.msra.mxu0 0.0
        %1348 = vmatprep.subr.mxu0 0.0
        %1349 = vmatpush1.msra.mxu0 0.0
        %1350 = vmatprep.subr.mxu0 0.0
        %1351 = vmatpush1.msra.mxu0 0.0
        %1352 = vmatprep.subr.mxu0 0.0
        %1353 = vmatpush1.msra.mxu0 0.0
        %1354 = vmatprep.subr.mxu0 0.0
        %1355 = vmatpush1.msra.mxu0 0.0
        %1356 = vmatprep.subr.mxu0 0.0
        %1357 = vmatpush1.msra.mxu0 0.0
        %1358 = vmatprep.subr.mxu0 0.0
        %1359 = vmatpush1.msra.mxu0 0.0
        %1360 = vmatprep.subr.mxu0 0.0
        %1361 = vmatpush1.msra.mxu0 %v1249
        %1362 = vmatprep.subr.mxu0 0.0
        %1363 = vmatpush2.msra.mxu0 0.0
        %1364 = vmatprep.subr.mxu0 0.0
        %1365 = vmatpush2.msra.mxu0 0.0
        %1366 = vmatprep.subr.mxu0 0.0
        %1367 = vmatpush2.msra.mxu0 0.0
        %1368 = vmatprep.subr.mxu0 0.0
        %1369 = vmatpush2.msra.mxu0 0.0
        %1370 = vmatprep.subr.mxu0 0.0
        %1371 = vmatpush2.msra.mxu0 0.0
        %1372 = vmatprep.subr.mxu0 0.0
        %1373 = vmatpush2.msra.mxu0 0.0
        %1374 = vmatprep.subr.mxu0 0.0
        %1375 = vmatpush2.msra.mxu0 0.0
        %1376 = vmatprep.subr.mxu0 0.0
        %1377 = vmatpush2.msra.mxu0 0.0
        %1378 = vmatprep.subr.mxu0 0.0
        %1379 = vmatpush2.msra.mxu0 0.0
        %1380 = vmatprep.subr.mxu0 0.0
        %1381 = vmatpush2.msra.mxu0 0.0
        %1382 = vmatprep.subr.mxu0 0.0
        %1383 = vmatpush2.msra.mxu0 0.0
        %1384 = vmatprep.subr.mxu0 0.0
        %1385 = vmatpush2.msra.mxu0 0.0
        %1386 = vmatprep.subr.mxu0 0.0
        %1387 = vmatpush2.msra.mxu0 0.0
        %1388 = vmatprep.subr.mxu0 0.0
        %1389 = vmatpush2.msra.mxu0 0.0
        %1390 = vmatprep.subr.mxu0 0.0
        %1391 = vmatpush2.msra.mxu0 0.0
        %1392 = vmatprep.subr.mxu0 0.0
        %1393 = vmatpush2.msra.mxu0 0.0
        %1394 = vmatprep.mubr.f32.mxu0 0.0
        %1395 = vmatmul.mubr.f32.gmra.mxu0 %v1257
        %v1396 = vpop.f32.mrf.mxu0
        %v1397 = vadd.f32 0.0, %v1396
        %v1398 = vpop.f32.mrf.mxu0
        %1399 = vdwg.mxu0
        %v1400 = vadd.f32 %v1239, %v1326
        %v1401 = vadd.f32 %v1240, %v1328
        %v1402 = vadd.f32 %v1241, %v1397
        %s1403 = scalar_lea.vmem %s5, 8
        %v1404 = vld [vmem:[%s1403] sm:$0xf]
        %1405 = vrot.lane.b32.xlu0 %v766, 126
        %v1406 = vpop.permute.xlu0 %1405
        %1407 = vrot.lane.b32.xlu0 %v767, 126
        %v1408 = vpop.permute.xlu0 %1407
        %1409 = vrot.lane.b32.xlu0 %v768, 126
        %v1410 = vpop.permute.xlu0 %1409
        %v1411 = vsel %vm1250, %v1406, %v1408
        %v1412 = vsel %vm1250, %v1408, %v1410
        %v1417 = vsel %vm420, %v1404, 0
        %1419 = vmatprep.subr.mxu0 0.0
        %1420 = vmatpush1.msra.mxu0 0.0
        %1421 = vmatprep.subr.mxu0 0.0
        %1422 = vmatpush1.msra.mxu0 0.0
        %1423 = vmatprep.subr.mxu0 0.0
        %1424 = vmatpush1.msra.mxu0 0.0
        %1425 = vmatprep.subr.mxu0 0.0
        %1426 = vmatpush1.msra.mxu0 0.0
        %1427 = vmatprep.subr.mxu0 0.0
        %1428 = vmatpush1.msra.mxu0 0.0
        %1429 = vmatprep.subr.mxu0 0.0
        %1430 = vmatpush1.msra.mxu0 0.0
        %1431 = vmatprep.subr.mxu0 0.0
        %1432 = vmatpush1.msra.mxu0 0.0
        %1433 = vmatprep.subr.mxu0 0.0
        %1434 = vmatpush1.msra.mxu0 0.0
        %1435 = vmatprep.subr.mxu0 0.0
        %1436 = vmatpush1.msra.mxu0 0.0
        %1437 = vmatprep.subr.mxu0 0.0
        %1438 = vmatpush1.msra.mxu0 0.0
        %1439 = vmatprep.subr.mxu0 0.0
        %1440 = vmatpush1.msra.mxu0 0.0
        %1441 = vmatprep.subr.mxu0 0.0
        %1442 = vmatpush1.msra.mxu0 0.0
        %1443 = vmatprep.subr.mxu0 0.0
        %1444 = vmatpush1.msra.mxu0 0.0
        %1445 = vmatprep.subr.mxu0 0.0
        %1446 = vmatpush1.msra.mxu0 0.0
        %1447 = vmatprep.subr.mxu0 0.0
        %1448 = vmatpush1.msra.mxu0 0.0
        %1449 = vmatprep.subr.mxu0 %v1412
        %1450 = vmatpush1.msra.mxu0 %v1411
        %1451 = vmatprep.subr.mxu0 0.0
        %1452 = vmatpush2.msra.mxu0 0.0
        %1453 = vmatprep.subr.mxu0 0.0
        %1454 = vmatpush2.msra.mxu0 0.0
        %1455 = vmatprep.subr.mxu0 0.0
        %1456 = vmatpush2.msra.mxu0 0.0
        %1457 = vmatprep.subr.mxu0 0.0
        %1458 = vmatpush2.msra.mxu0 0.0
        %1459 = vmatprep.subr.mxu0 0.0
        %1460 = vmatpush2.msra.mxu0 0.0
        %1461 = vmatprep.subr.mxu0 0.0
        %1462 = vmatpush2.msra.mxu0 0.0
        %1463 = vmatprep.subr.mxu0 0.0
        %1464 = vmatpush2.msra.mxu0 0.0
        %1465 = vmatprep.subr.mxu0 0.0
        %1466 = vmatpush2.msra.mxu0 0.0
        %1467 = vmatprep.subr.mxu0 0.0
        %1468 = vmatpush2.msra.mxu0 0.0
        %1469 = vmatprep.subr.mxu0 0.0
        %1470 = vmatpush2.msra.mxu0 0.0
        %1471 = vmatprep.subr.mxu0 0.0
        %1472 = vmatpush2.msra.mxu0 0.0
        %1473 = vmatprep.subr.mxu0 0.0
        %1474 = vmatpush2.msra.mxu0 0.0
        %1475 = vmatprep.subr.mxu0 0.0
        %1476 = vmatpush2.msra.mxu0 0.0
        %1477 = vmatprep.subr.mxu0 0.0
        %1478 = vmatpush2.msra.mxu0 0.0
        %1479 = vmatprep.subr.mxu0 0.0
        %1480 = vmatpush2.msra.mxu0 0.0
        %1481 = vmatprep.subr.mxu0 0.0
        %1482 = vmatpush2.msra.mxu0 0.0
        %1483 = vmatprep.mubr.f32.mxu0 0.0
        %1484 = vmatmul.mubr.f32.gmra.mxu0 %v1417
        %v1485 = vpop.f32.mrf.mxu0
        %v1486 = vadd.f32 0.0, %v1485
        %v1487 = vpop.f32.mrf.mxu0
        %v1488 = vadd.f32 0.0, %v1487
        %1489 = vdwg.mxu0
        %1490 = vmatprep.subr.mxu0 0.0
        %1491 = vmatpush1.msra.mxu0 0.0
        %1492 = vmatprep.subr.mxu0 0.0
        %1493 = vmatpush1.msra.mxu0 0.0
        %1494 = vmatprep.subr.mxu0 0.0
        %1495 = vmatpush1.msra.mxu0 0.0
        %1496 = vmatprep.subr.mxu0 0.0
        %1497 = vmatpush1.msra.mxu0 0.0
        %1498 = vmatprep.subr.mxu0 0.0
        %1499 = vmatpush1.msra.mxu0 0.0
        %1500 = vmatprep.subr.mxu0 0.0
        %1501 = vmatpush1.msra.mxu0 0.0
        %1502 = vmatprep.subr.mxu0 0.0
        %1503 = vmatpush1.msra.mxu0 0.0
        %1504 = vmatprep.subr.mxu0 0.0
        %1505 = vmatpush1.msra.mxu0 0.0
        %1506 = vmatprep.subr.mxu0 0.0
        %1507 = vmatpush1.msra.mxu0 0.0
        %1508 = vmatprep.subr.mxu0 0.0
        %1509 = vmatpush1.msra.mxu0 0.0
        %1510 = vmatprep.subr.mxu0 0.0
        %1511 = vmatpush1.msra.mxu0 0.0
        %1512 = vmatprep.subr.mxu0 0.0
        %1513 = vmatpush1.msra.mxu0 0.0
        %1514 = vmatprep.subr.mxu0 0.0
        %1515 = vmatpush1.msra.mxu0 0.0
        %1516 = vmatprep.subr.mxu0 0.0
        %1517 = vmatpush1.msra.mxu0 0.0
        %1518 = vmatprep.subr.mxu0 0.0
        %1519 = vmatpush1.msra.mxu0 0.0
        %1520 = vmatprep.subr.mxu0 0.0
        %1521 = vmatpush1.msra.mxu0 %v1410
        %1522 = vmatprep.subr.mxu0 0.0
        %1523 = vmatpush2.msra.mxu0 0.0
        %1524 = vmatprep.subr.mxu0 0.0
        %1525 = vmatpush2.msra.mxu0 0.0
        %1526 = vmatprep.subr.mxu0 0.0
        %1527 = vmatpush2.msra.mxu0 0.0
        %1528 = vmatprep.subr.mxu0 0.0
        %1529 = vmatpush2.msra.mxu0 0.0
        %1530 = vmatprep.subr.mxu0 0.0
        %1531 = vmatpush2.msra.mxu0 0.0
        %1532 = vmatprep.subr.mxu0 0.0
        %1533 = vmatpush2.msra.mxu0 0.0
        %1534 = vmatprep.subr.mxu0 0.0
        %1535 = vmatpush2.msra.mxu0 0.0
        %1536 = vmatprep.subr.mxu0 0.0
        %1537 = vmatpush2.msra.mxu0 0.0
        %1538 = vmatprep.subr.mxu0 0.0
        %1539 = vmatpush2.msra.mxu0 0.0
        %1540 = vmatprep.subr.mxu0 0.0
        %1541 = vmatpush2.msra.mxu0 0.0
        %1542 = vmatprep.subr.mxu0 0.0
        %1543 = vmatpush2.msra.mxu0 0.0
        %1544 = vmatprep.subr.mxu0 0.0
        %1545 = vmatpush2.msra.mxu0 0.0
        %1546 = vmatprep.subr.mxu0 0.0
        %1547 = vmatpush2.msra.mxu0 0.0
        %1548 = vmatprep.subr.mxu0 0.0
        %1549 = vmatpush2.msra.mxu0 0.0
        %1550 = vmatprep.subr.mxu0 0.0
        %1551 = vmatpush2.msra.mxu0 0.0
        %1552 = vmatprep.subr.mxu0 0.0
        %1553 = vmatpush2.msra.mxu0 0.0
        %1554 = vmatprep.mubr.f32.mxu0 0.0
        %1555 = vmatmul.mubr.f32.gmra.mxu0 %v1417
        %v1556 = vpop.f32.mrf.mxu0
        %v1557 = vadd.f32 0.0, %v1556
        %v1558 = vpop.f32.mrf.mxu0
        %1559 = vdwg.mxu0
        %v1560 = vadd.f32 %v1400, %v1486
        %v1561 = vadd.f32 %v1401, %v1488
        %v1562 = vadd.f32 %v1402, %v1557
        %s1563 = scalar_lea.vmem %s2, 12
        %v1564 = vld [vmem:[%s1563] sm:$0xf]
        %1565 = vrot.lane.b32.xlu0 %v610, 110
        %v1566 = vpop.permute.xlu0 %1565
        %1567 = vrot.lane.b32.xlu0 %v611, 110
        %v1568 = vpop.permute.xlu0 %1567
        %1569 = vrot.lane.b32.xlu0 %v612, 110
        %v1570 = vpop.permute.xlu0 %1569
        %vm1571 = vcmask 900096
        %v1572 = vsel %vm1571, %v1566, %v1568
        %v1573 = vsel %vm1571, %v1568, %v1570
        %v1578 = vsel %vm420, %v1564, 0
        %1580 = vmatprep.subr.mxu0 0.0
        %1581 = vmatpush1.msra.mxu0 0.0
        %1582 = vmatprep.subr.mxu0 0.0
        %1583 = vmatpush1.msra.mxu0 0.0
        %1584 = vmatprep.subr.mxu0 0.0
        %1585 = vmatpush1.msra.mxu0 0.0
        %1586 = vmatprep.subr.mxu0 0.0
        %1587 = vmatpush1.msra.mxu0 0.0
        %1588 = vmatprep.subr.mxu0 0.0
        %1589 = vmatpush1.msra.mxu0 0.0
        %1590 = vmatprep.subr.mxu0 0.0
        %1591 = vmatpush1.msra.mxu0 0.0
        %1592 = vmatprep.subr.mxu0 0.0
        %1593 = vmatpush1.msra.mxu0 0.0
        %1594 = vmatprep.subr.mxu0 0.0
        %1595 = vmatpush1.msra.mxu0 0.0
        %1596 = vmatprep.subr.mxu0 0.0
        %1597 = vmatpush1.msra.mxu0 0.0
        %1598 = vmatprep.subr.mxu0 0.0
        %1599 = vmatpush1.msra.mxu0 0.0
        %1600 = vmatprep.subr.mxu0 0.0
        %1601 = vmatpush1.msra.mxu0 0.0
        %1602 = vmatprep.subr.mxu0 0.0
        %1603 = vmatpush1.msra.mxu0 0.0
        %1604 = vmatprep.subr.mxu0 0.0
        %1605 = vmatpush1.msra.mxu0 0.0
        %1606 = vmatprep.subr.mxu0 0.0
        %1607 = vmatpush1.msra.mxu0 0.0
        %1608 = vmatprep.subr.mxu0 0.0
        %1609 = vmatpush1.msra.mxu0 0.0
        %1610 = vmatprep.subr.mxu0 %v1573
        %1611 = vmatpush1.msra.mxu0 %v1572
        %1612 = vmatprep.subr.mxu0 0.0
        %1613 = vmatpush2.msra.mxu0 0.0
        %1614 = vmatprep.subr.mxu0 0.0
        %1615 = vmatpush2.msra.mxu0 0.0
        %1616 = vmatprep.subr.mxu0 0.0
        %1617 = vmatpush2.msra.mxu0 0.0
        %1618 = vmatprep.subr.mxu0 0.0
        %1619 = vmatpush2.msra.mxu0 0.0
        %1620 = vmatprep.subr.mxu0 0.0
        %1621 = vmatpush2.msra.mxu0 0.0
        %1622 = vmatprep.subr.mxu0 0.0
        %1623 = vmatpush2.msra.mxu0 0.0
        %1624 = vmatprep.subr.mxu0 0.0
        %1625 = vmatpush2.msra.mxu0 0.0
        %1626 = vmatprep.subr.mxu0 0.0
        %1627 = vmatpush2.msra.mxu0 0.0
        %1628 = vmatprep.subr.mxu0 0.0
        %1629 = vmatpush2.msra.mxu0 0.0
        %1630 = vmatprep.subr.mxu0 0.0
        %1631 = vmatpush2.msra.mxu0 0.0
        %1632 = vmatprep.subr.mxu0 0.0
        %1633 = vmatpush2.msra.mxu0 0.0
        %1634 = vmatprep.subr.mxu0 0.0
        %1635 = vmatpush2.msra.mxu0 0.0
        %1636 = vmatprep.subr.mxu0 0.0
        %1637 = vmatpush2.msra.mxu0 0.0
        %1638 = vmatprep.subr.mxu0 0.0
        %1639 = vmatpush2.msra.mxu0 0.0
        %1640 = vmatprep.subr.mxu0 0.0
        %1641 = vmatpush2.msra.mxu0 0.0
        %1642 = vmatprep.subr.mxu0 0.0
        %1643 = vmatpush2.msra.mxu0 0.0
        %1644 = vmatprep.mubr.f32.mxu0 0.0
        %1645 = vmatmul.mubr.f32.gmra.mxu0 %v1578
        %v1646 = vpop.f32.mrf.mxu0
        %v1647 = vadd.f32 0.0, %v1646
        %v1648 = vpop.f32.mrf.mxu0
        %v1649 = vadd.f32 0.0, %v1648
        %1650 = vdwg.mxu0
        %1651 = vmatprep.subr.mxu0 0.0
        %1652 = vmatpush1.msra.mxu0 0.0
        %1653 = vmatprep.subr.mxu0 0.0
        %1654 = vmatpush1.msra.mxu0 0.0
        %1655 = vmatprep.subr.mxu0 0.0
        %1656 = vmatpush1.msra.mxu0 0.0
        %1657 = vmatprep.subr.mxu0 0.0
        %1658 = vmatpush1.msra.mxu0 0.0
        %1659 = vmatprep.subr.mxu0 0.0
        %1660 = vmatpush1.msra.mxu0 0.0
        %1661 = vmatprep.subr.mxu0 0.0
        %1662 = vmatpush1.msra.mxu0 0.0
        %1663 = vmatprep.subr.mxu0 0.0
        %1664 = vmatpush1.msra.mxu0 0.0
        %1665 = vmatprep.subr.mxu0 0.0
        %1666 = vmatpush1.msra.mxu0 0.0
        %1667 = vmatprep.subr.mxu0 0.0
        %1668 = vmatpush1.msra.mxu0 0.0
        %1669 = vmatprep.subr.mxu0 0.0
        %1670 = vmatpush1.msra.mxu0 0.0
        %1671 = vmatprep.subr.mxu0 0.0
        %1672 = vmatpush1.msra.mxu0 0.0
        %1673 = vmatprep.subr.mxu0 0.0
        %1674 = vmatpush1.msra.mxu0 0.0
        %1675 = vmatprep.subr.mxu0 0.0
        %1676 = vmatpush1.msra.mxu0 0.0
        %1677 = vmatprep.subr.mxu0 0.0
        %1678 = vmatpush1.msra.mxu0 0.0
        %1679 = vmatprep.subr.mxu0 0.0
        %1680 = vmatpush1.msra.mxu0 0.0
        %1681 = vmatprep.subr.mxu0 0.0
        %1682 = vmatpush1.msra.mxu0 %v1570
        %1683 = vmatprep.subr.mxu0 0.0
        %1684 = vmatpush2.msra.mxu0 0.0
        %1685 = vmatprep.subr.mxu0 0.0
        %1686 = vmatpush2.msra.mxu0 0.0
        %1687 = vmatprep.subr.mxu0 0.0
        %1688 = vmatpush2.msra.mxu0 0.0
        %1689 = vmatprep.subr.mxu0 0.0
        %1690 = vmatpush2.msra.mxu0 0.0
        %1691 = vmatprep.subr.mxu0 0.0
        %1692 = vmatpush2.msra.mxu0 0.0
        %1693 = vmatprep.subr.mxu0 0.0
        %1694 = vmatpush2.msra.mxu0 0.0
        %1695 = vmatprep.subr.mxu0 0.0
        %1696 = vmatpush2.msra.mxu0 0.0
        %1697 = vmatprep.subr.mxu0 0.0
        %1698 = vmatpush2.msra.mxu0 0.0
        %1699 = vmatprep.subr.mxu0 0.0
        %1700 = vmatpush2.msra.mxu0 0.0
        %1701 = vmatprep.subr.mxu0 0.0
        %1702 = vmatpush2.msra.mxu0 0.0
        %1703 = vmatprep.subr.mxu0 0.0
        %1704 = vmatpush2.msra.mxu0 0.0
        %1705 = vmatprep.subr.mxu0 0.0
        %1706 = vmatpush2.msra.mxu0 0.0
        %1707 = vmatprep.subr.mxu0 0.0
        %1708 = vmatpush2.msra.mxu0 0.0
        %1709 = vmatprep.subr.mxu0 0.0
        %1710 = vmatpush2.msra.mxu0 0.0
        %1711 = vmatprep.subr.mxu0 0.0
        %1712 = vmatpush2.msra.mxu0 0.0
        %1713 = vmatprep.subr.mxu0 0.0
        %1714 = vmatpush2.msra.mxu0 0.0
        %1715 = vmatprep.mubr.f32.mxu0 0.0
        %1716 = vmatmul.mubr.f32.gmra.mxu0 %v1578
        %v1717 = vpop.f32.mrf.mxu0
        %v1718 = vadd.f32 0.0, %v1717
        %v1719 = vpop.f32.mrf.mxu0
        %1720 = vdwg.mxu0
        %v1721 = vadd.f32 %v1560, %v1647
        %v1722 = vadd.f32 %v1561, %v1649
        %v1723 = vadd.f32 %v1562, %v1718
        %s1724 = scalar_lea.vmem %s5, 12
        %v1725 = vld [vmem:[%s1724] sm:$0xf]
        %1726 = vrot.lane.b32.xlu0 %v766, 110
        %v1727 = vpop.permute.xlu0 %1726
        %1728 = vrot.lane.b32.xlu0 %v767, 110
        %v1729 = vpop.permute.xlu0 %1728
        %1730 = vrot.lane.b32.xlu0 %v768, 110
        %v1731 = vpop.permute.xlu0 %1730
        %v1732 = vsel %vm1571, %v1727, %v1729
        %v1733 = vsel %vm1571, %v1729, %v1731
        %v1738 = vsel %vm420, %v1725, 0
        %1740 = vmatprep.subr.mxu0 0.0
        %1741 = vmatpush1.msra.mxu0 0.0
        %1742 = vmatprep.subr.mxu0 0.0
        %1743 = vmatpush1.msra.mxu0 0.0
        %1744 = vmatprep.subr.mxu0 0.0
        %1745 = vmatpush1.msra.mxu0 0.0
        %1746 = vmatprep.subr.mxu0 0.0
        %1747 = vmatpush1.msra.mxu0 0.0
        %1748 = vmatprep.subr.mxu0 0.0
        %1749 = vmatpush1.msra.mxu0 0.0
        %1750 = vmatprep.subr.mxu0 0.0
        %1751 = vmatpush1.msra.mxu0 0.0
        %1752 = vmatprep.subr.mxu0 0.0
        %1753 = vmatpush1.msra.mxu0 0.0
        %1754 = vmatprep.subr.mxu0 0.0
        %1755 = vmatpush1.msra.mxu0 0.0
        %1756 = vmatprep.subr.mxu0 0.0
        %1757 = vmatpush1.msra.mxu0 0.0
        %1758 = vmatprep.subr.mxu0 0.0
        %1759 = vmatpush1.msra.mxu0 0.0
        %1760 = vmatprep.subr.mxu0 0.0
        %1761 = vmatpush1.msra.mxu0 0.0
        %1762 = vmatprep.subr.mxu0 0.0
        %1763 = vmatpush1.msra.mxu0 0.0
        %1764 = vmatprep.subr.mxu0 0.0
        %1765 = vmatpush1.msra.mxu0 0.0
        %1766 = vmatprep.subr.mxu0 0.0
        %1767 = vmatpush1.msra.mxu0 0.0
        %1768 = vmatprep.subr.mxu0 0.0
        %1769 = vmatpush1.msra.mxu0 0.0
        %1770 = vmatprep.subr.mxu0 %v1733
        %1771 = vmatpush1.msra.mxu0 %v1732
        %1772 = vmatprep.subr.mxu0 0.0
        %1773 = vmatpush2.msra.mxu0 0.0
        %1774 = vmatprep.subr.mxu0 0.0
        %1775 = vmatpush2.msra.mxu0 0.0
        %1776 = vmatprep.subr.mxu0 0.0
        %1777 = vmatpush2.msra.mxu0 0.0
        %1778 = vmatprep.subr.mxu0 0.0
        %1779 = vmatpush2.msra.mxu0 0.0
        %1780 = vmatprep.subr.mxu0 0.0
        %1781 = vmatpush2.msra.mxu0 0.0
        %1782 = vmatprep.subr.mxu0 0.0
        %1783 = vmatpush2.msra.mxu0 0.0
        %1784 = vmatprep.subr.mxu0 0.0
        %1785 = vmatpush2.msra.mxu0 0.0
        %1786 = vmatprep.subr.mxu0 0.0
        %1787 = vmatpush2.msra.mxu0 0.0
        %1788 = vmatprep.subr.mxu0 0.0
        %1789 = vmatpush2.msra.mxu0 0.0
        %1790 = vmatprep.subr.mxu0 0.0
        %1791 = vmatpush2.msra.mxu0 0.0
        %1792 = vmatprep.subr.mxu0 0.0
        %1793 = vmatpush2.msra.mxu0 0.0
        %1794 = vmatprep.subr.mxu0 0.0
        %1795 = vmatpush2.msra.mxu0 0.0
        %1796 = vmatprep.subr.mxu0 0.0
        %1797 = vmatpush2.msra.mxu0 0.0
        %1798 = vmatprep.subr.mxu0 0.0
        %1799 = vmatpush2.msra.mxu0 0.0
        %1800 = vmatprep.subr.mxu0 0.0
        %1801 = vmatpush2.msra.mxu0 0.0
        %1802 = vmatprep.subr.mxu0 0.0
        %1803 = vmatpush2.msra.mxu0 0.0
        %1804 = vmatprep.mubr.f32.mxu0 0.0
        %1805 = vmatmul.mubr.f32.gmra.mxu0 %v1738
        %v1806 = vpop.f32.mrf.mxu0
        %v1807 = vadd.f32 0.0, %v1806
        %v1808 = vpop.f32.mrf.mxu0
        %v1809 = vadd.f32 0.0, %v1808
        %1810 = vdwg.mxu0
        %1811 = vmatprep.subr.mxu0 0.0
        %1812 = vmatpush1.msra.mxu0 0.0
        %1813 = vmatprep.subr.mxu0 0.0
        %1814 = vmatpush1.msra.mxu0 0.0
        %1815 = vmatprep.subr.mxu0 0.0
        %1816 = vmatpush1.msra.mxu0 0.0
        %1817 = vmatprep.subr.mxu0 0.0
        %1818 = vmatpush1.msra.mxu0 0.0
        %1819 = vmatprep.subr.mxu0 0.0
        %1820 = vmatpush1.msra.mxu0 0.0
        %1821 = vmatprep.subr.mxu0 0.0
        %1822 = vmatpush1.msra.mxu0 0.0
        %1823 = vmatprep.subr.mxu0 0.0
        %1824 = vmatpush1.msra.mxu0 0.0
        %1825 = vmatprep.subr.mxu0 0.0
        %1826 = vmatpush1.msra.mxu0 0.0
        %1827 = vmatprep.subr.mxu0 0.0
        %1828 = vmatpush1.msra.mxu0 0.0
        %1829 = vmatprep.subr.mxu0 0.0
        %1830 = vmatpush1.msra.mxu0 0.0
        %1831 = vmatprep.subr.mxu0 0.0
        %1832 = vmatpush1.msra.mxu0 0.0
        %1833 = vmatprep.subr.mxu0 0.0
        %1834 = vmatpush1.msra.mxu0 0.0
        %1835 = vmatprep.subr.mxu0 0.0
        %1836 = vmatpush1.msra.mxu0 0.0
        %1837 = vmatprep.subr.mxu0 0.0
        %1838 = vmatpush1.msra.mxu0 0.0
        %1839 = vmatprep.subr.mxu0 0.0
        %1840 = vmatpush1.msra.mxu0 0.0
        %1841 = vmatprep.subr.mxu0 0.0
        %1842 = vmatpush1.msra.mxu0 %v1731
        %1843 = vmatprep.subr.mxu0 0.0
        %1844 = vmatpush2.msra.mxu0 0.0
        %1845 = vmatprep.subr.mxu0 0.0
        %1846 = vmatpush2.msra.mxu0 0.0
        %1847 = vmatprep.subr.mxu0 0.0
        %1848 = vmatpush2.msra.mxu0 0.0
        %1849 = vmatprep.subr.mxu0 0.0
        %1850 = vmatpush2.msra.mxu0 0.0
        %1851 = vmatprep.subr.mxu0 0.0
        %1852 = vmatpush2.msra.mxu0 0.0
        %1853 = vmatprep.subr.mxu0 0.0
        %1854 = vmatpush2.msra.mxu0 0.0
        %1855 = vmatprep.subr.mxu0 0.0
        %1856 = vmatpush2.msra.mxu0 0.0
        %1857 = vmatprep.subr.mxu0 0.0
        %1858 = vmatpush2.msra.mxu0 0.0
        %1859 = vmatprep.subr.mxu0 0.0
        %1860 = vmatpush2.msra.mxu0 0.0
        %1861 = vmatprep.subr.mxu0 0.0
        %1862 = vmatpush2.msra.mxu0 0.0
        %1863 = vmatprep.subr.mxu0 0.0
        %1864 = vmatpush2.msra.mxu0 0.0
        %1865 = vmatprep.subr.mxu0 0.0
        %1866 = vmatpush2.msra.mxu0 0.0
        %1867 = vmatprep.subr.mxu0 0.0
        %1868 = vmatpush2.msra.mxu0 0.0
        %1869 = vmatprep.subr.mxu0 0.0
        %1870 = vmatpush2.msra.mxu0 0.0
        %1871 = vmatprep.subr.mxu0 0.0
        %1872 = vmatpush2.msra.mxu0 0.0
        %1873 = vmatprep.subr.mxu0 0.0
        %1874 = vmatpush2.msra.mxu0 0.0
        %1875 = vmatprep.mubr.f32.mxu0 0.0
        %1876 = vmatmul.mubr.f32.gmra.mxu0 %v1738
        %v1877 = vpop.f32.mrf.mxu0
        %v1878 = vadd.f32 0.0, %v1877
        %v1879 = vpop.f32.mrf.mxu0
        %1880 = vdwg.mxu0
        %v1881 = vadd.f32 %v1721, %v1807
        %v1882 = vadd.f32 %v1722, %v1809
        %v1883 = vadd.f32 %v1723, %v1878
        %s1884 = scalar_lea.vmem %s2, 16
        %v1885 = vld [vmem:[%s1884] sm:$0xf]
        %1886 = vrot.lane.b32.xlu0 %v610, 109
        %v1887 = vpop.permute.xlu0 %1886
        %1888 = vrot.lane.b32.xlu0 %v611, 109
        %v1889 = vpop.permute.xlu0 %1888
        %1890 = vrot.lane.b32.xlu0 %v612, 109
        %v1891 = vpop.permute.xlu0 %1890
        %vm1892 = vcmask 891904
        %v1893 = vsel %vm1892, %v1887, %v1889
        %v1894 = vsel %vm1892, %v1889, %v1891
        %v1899 = vsel %vm420, %v1885, 0
        %1901 = vmatprep.subr.mxu0 0.0
        %1902 = vmatpush1.msra.mxu0 0.0
        %1903 = vmatprep.subr.mxu0 0.0
        %1904 = vmatpush1.msra.mxu0 0.0
        %1905 = vmatprep.subr.mxu0 0.0
        %1906 = vmatpush1.msra.mxu0 0.0
        %1907 = vmatprep.subr.mxu0 0.0
        %1908 = vmatpush1.msra.mxu0 0.0
        %1909 = vmatprep.subr.mxu0 0.0
        %1910 = vmatpush1.msra.mxu0 0.0
        %1911 = vmatprep.subr.mxu0 0.0
        %1912 = vmatpush1.msra.mxu0 0.0
        %1913 = vmatprep.subr.mxu0 0.0
        %1914 = vmatpush1.msra.mxu0 0.0
        %1915 = vmatprep.subr.mxu0 0.0
        %1916 = vmatpush1.msra.mxu0 0.0
        %1917 = vmatprep.subr.mxu0 0.0
        %1918 = vmatpush1.msra.mxu0 0.0
        %1919 = vmatprep.subr.mxu0 0.0
        %1920 = vmatpush1.msra.mxu0 0.0
        %1921 = vmatprep.subr.mxu0 0.0
        %1922 = vmatpush1.msra.mxu0 0.0
        %1923 = vmatprep.subr.mxu0 0.0
        %1924 = vmatpush1.msra.mxu0 0.0
        %1925 = vmatprep.subr.mxu0 0.0
        %1926 = vmatpush1.msra.mxu0 0.0
        %1927 = vmatprep.subr.mxu0 0.0
        %1928 = vmatpush1.msra.mxu0 0.0
        %1929 = vmatprep.subr.mxu0 0.0
        %1930 = vmatpush1.msra.mxu0 0.0
        %1931 = vmatprep.subr.mxu0 %v1894
        %1932 = vmatpush1.msra.mxu0 %v1893
        %1933 = vmatprep.subr.mxu0 0.0
        %1934 = vmatpush2.msra.mxu0 0.0
        %1935 = vmatprep.subr.mxu0 0.0
        %1936 = vmatpush2.msra.mxu0 0.0
        %1937 = vmatprep.subr.mxu0 0.0
        %1938 = vmatpush2.msra.mxu0 0.0
        %1939 = vmatprep.subr.mxu0 0.0
        %1940 = vmatpush2.msra.mxu0 0.0
        %1941 = vmatprep.subr.mxu0 0.0
        %1942 = vmatpush2.msra.mxu0 0.0
        %1943 = vmatprep.subr.mxu0 0.0
        %1944 = vmatpush2.msra.mxu0 0.0
        %1945 = vmatprep.subr.mxu0 0.0
        %1946 = vmatpush2.msra.mxu0 0.0
        %1947 = vmatprep.subr.mxu0 0.0
        %1948 = vmatpush2.msra.mxu0 0.0
        %1949 = vmatprep.subr.mxu0 0.0
        %1950 = vmatpush2.msra.mxu0 0.0
        %1951 = vmatprep.subr.mxu0 0.0
        %1952 = vmatpush2.msra.mxu0 0.0
        %1953 = vmatprep.subr.mxu0 0.0
        %1954 = vmatpush2.msra.mxu0 0.0
        %1955 = vmatprep.subr.mxu0 0.0
        %1956 = vmatpush2.msra.mxu0 0.0
        %1957 = vmatprep.subr.mxu0 0.0
        %1958 = vmatpush2.msra.mxu0 0.0
        %1959 = vmatprep.subr.mxu0 0.0
        %1960 = vmatpush2.msra.mxu0 0.0
        %1961 = vmatprep.subr.mxu0 0.0
        %1962 = vmatpush2.msra.mxu0 0.0
        %1963 = vmatprep.subr.mxu0 0.0
        %1964 = vmatpush2.msra.mxu0 0.0
        %1965 = vmatprep.mubr.f32.mxu0 0.0
        %1966 = vmatmul.mubr.f32.gmra.mxu0 %v1899
        %v1967 = vpop.f32.mrf.mxu0
        %v1968 = vadd.f32 0.0, %v1967
        %v1969 = vpop.f32.mrf.mxu0
        %v1970 = vadd.f32 0.0, %v1969
        %1971 = vdwg.mxu0
        %1972 = vmatprep.subr.mxu0 0.0
        %1973 = vmatpush1.msra.mxu0 0.0
        %1974 = vmatprep.subr.mxu0 0.0
        %1975 = vmatpush1.msra.mxu0 0.0
        %1976 = vmatprep.subr.mxu0 0.0
        %1977 = vmatpush1.msra.mxu0 0.0
        %1978 = vmatprep.subr.mxu0 0.0
        %1979 = vmatpush1.msra.mxu0 0.0
        %1980 = vmatprep.subr.mxu0 0.0
        %1981 = vmatpush1.msra.mxu0 0.0
        %1982 = vmatprep.subr.mxu0 0.0
        %1983 = vmatpush1.msra.mxu0 0.0
        %1984 = vmatprep.subr.mxu0 0.0
        %1985 = vmatpush1.msra.mxu0 0.0
        %1986 = vmatprep.subr.mxu0 0.0
        %1987 = vmatpush1.msra.mxu0 0.0
        %1988 = vmatprep.subr.mxu0 0.0
        %1989 = vmatpush1.msra.mxu0 0.0
        %1990 = vmatprep.subr.mxu0 0.0
        %1991 = vmatpush1.msra.mxu0 0.0
        %1992 = vmatprep.subr.mxu0 0.0
        %1993 = vmatpush1.msra.mxu0 0.0
        %1994 = vmatprep.subr.mxu0 0.0
        %1995 = vmatpush1.msra.mxu0 0.0
        %1996 = vmatprep.subr.mxu0 0.0
        %1997 = vmatpush1.msra.mxu0 0.0
        %1998 = vmatprep.subr.mxu0 0.0
        %1999 = vmatpush1.msra.mxu0 0.0
        %2000 = vmatprep.subr.mxu0 0.0
        %2001 = vmatpush1.msra.mxu0 0.0
        %2002 = vmatprep.subr.mxu0 0.0
        %2003 = vmatpush1.msra.mxu0 %v1891
        %2004 = vmatprep.subr.mxu0 0.0
        %2005 = vmatpush2.msra.mxu0 0.0
        %2006 = vmatprep.subr.mxu0 0.0
        %2007 = vmatpush2.msra.mxu0 0.0
        %2008 = vmatprep.subr.mxu0 0.0
        %2009 = vmatpush2.msra.mxu0 0.0
        %2010 = vmatprep.subr.mxu0 0.0
        %2011 = vmatpush2.msra.mxu0 0.0
        %2012 = vmatprep.subr.mxu0 0.0
        %2013 = vmatpush2.msra.mxu0 0.0
        %2014 = vmatprep.subr.mxu0 0.0
        %2015 = vmatpush2.msra.mxu0 0.0
        %2016 = vmatprep.subr.mxu0 0.0
        %2017 = vmatpush2.msra.mxu0 0.0
        %2018 = vmatprep.subr.mxu0 0.0
        %2019 = vmatpush2.msra.mxu0 0.0
        %2020 = vmatprep.subr.mxu0 0.0
        %2021 = vmatpush2.msra.mxu0 0.0
        %2022 = vmatprep.subr.mxu0 0.0
        %2023 = vmatpush2.msra.mxu0 0.0
        %2024 = vmatprep.subr.mxu0 0.0
        %2025 = vmatpush2.msra.mxu0 0.0
        %2026 = vmatprep.subr.mxu0 0.0
        %2027 = vmatpush2.msra.mxu0 0.0
        %2028 = vmatprep.subr.mxu0 0.0
        %2029 = vmatpush2.msra.mxu0 0.0
        %2030 = vmatprep.subr.mxu0 0.0
        %2031 = vmatpush2.msra.mxu0 0.0
        %2032 = vmatprep.subr.mxu0 0.0
        %2033 = vmatpush2.msra.mxu0 0.0
        %2034 = vmatprep.subr.mxu0 0.0
        %2035 = vmatpush2.msra.mxu0 0.0
        %2036 = vmatprep.mubr.f32.mxu0 0.0
        %2037 = vmatmul.mubr.f32.gmra.mxu0 %v1899
        %v2038 = vpop.f32.mrf.mxu0
        %v2039 = vadd.f32 0.0, %v2038
        %v2040 = vpop.f32.mrf.mxu0
        %2041 = vdwg.mxu0
        %v2042 = vadd.f32 %v1881, %v1968
        %v2043 = vadd.f32 %v1882, %v1970
        %v2044 = vadd.f32 %v1883, %v2039
        %s2045 = scalar_lea.vmem %s5, 16
        %v2046 = vld [vmem:[%s2045] sm:$0xf]
        %2047 = vrot.lane.b32.xlu0 %v766, 109
        %v2048 = vpop.permute.xlu0 %2047
        %2049 = vrot.lane.b32.xlu0 %v767, 109
        %v2050 = vpop.permute.xlu0 %2049
        %2051 = vrot.lane.b32.xlu0 %v768, 109
        %v2052 = vpop.permute.xlu0 %2051
        %v2053 = vsel %vm1892, %v2048, %v2050
        %v2054 = vsel %vm1892, %v2050, %v2052
        %v2059 = vsel %vm420, %v2046, 0
        %2061 = vmatprep.subr.mxu0 0.0
        %2062 = vmatpush1.msra.mxu0 0.0
        %2063 = vmatprep.subr.mxu0 0.0
        %2064 = vmatpush1.msra.mxu0 0.0
        %2065 = vmatprep.subr.mxu0 0.0
        %2066 = vmatpush1.msra.mxu0 0.0
        %2067 = vmatprep.subr.mxu0 0.0
        %2068 = vmatpush1.msra.mxu0 0.0
        %2069 = vmatprep.subr.mxu0 0.0
        %2070 = vmatpush1.msra.mxu0 0.0
        %2071 = vmatprep.subr.mxu0 0.0
        %2072 = vmatpush1.msra.mxu0 0.0
        %2073 = vmatprep.subr.mxu0 0.0
        %2074 = vmatpush1.msra.mxu0 0.0
        %2075 = vmatprep.subr.mxu0 0.0
        %2076 = vmatpush1.msra.mxu0 0.0
        %2077 = vmatprep.subr.mxu0 0.0
        %2078 = vmatpush1.msra.mxu0 0.0
        %2079 = vmatprep.subr.mxu0 0.0
        %2080 = vmatpush1.msra.mxu0 0.0
        %2081 = vmatprep.subr.mxu0 0.0
        %2082 = vmatpush1.msra.mxu0 0.0
        %2083 = vmatprep.subr.mxu0 0.0
        %2084 = vmatpush1.msra.mxu0 0.0
        %2085 = vmatprep.subr.mxu0 0.0
        %2086 = vmatpush1.msra.mxu0 0.0
        %2087 = vmatprep.subr.mxu0 0.0
        %2088 = vmatpush1.msra.mxu0 0.0
        %2089 = vmatprep.subr.mxu0 0.0
        %2090 = vmatpush1.msra.mxu0 0.0
        %2091 = vmatprep.subr.mxu0 %v2054
        %2092 = vmatpush1.msra.mxu0 %v2053
        %2093 = vmatprep.subr.mxu0 0.0
        %2094 = vmatpush2.msra.mxu0 0.0
        %2095 = vmatprep.subr.mxu0 0.0
        %2096 = vmatpush2.msra.mxu0 0.0
        %2097 = vmatprep.subr.mxu0 0.0
        %2098 = vmatpush2.msra.mxu0 0.0
        %2099 = vmatprep.subr.mxu0 0.0
        %2100 = vmatpush2.msra.mxu0 0.0
        %2101 = vmatprep.subr.mxu0 0.0
        %2102 = vmatpush2.msra.mxu0 0.0
        %2103 = vmatprep.subr.mxu0 0.0
        %2104 = vmatpush2.msra.mxu0 0.0
        %2105 = vmatprep.subr.mxu0 0.0
        %2106 = vmatpush2.msra.mxu0 0.0
        %2107 = vmatprep.subr.mxu0 0.0
        %2108 = vmatpush2.msra.mxu0 0.0
        %2109 = vmatprep.subr.mxu0 0.0
        %2110 = vmatpush2.msra.mxu0 0.0
        %2111 = vmatprep.subr.mxu0 0.0
        %2112 = vmatpush2.msra.mxu0 0.0
        %2113 = vmatprep.subr.mxu0 0.0
        %2114 = vmatpush2.msra.mxu0 0.0
        %2115 = vmatprep.subr.mxu0 0.0
        %2116 = vmatpush2.msra.mxu0 0.0
        %2117 = vmatprep.subr.mxu0 0.0
        %2118 = vmatpush2.msra.mxu0 0.0
        %2119 = vmatprep.subr.mxu0 0.0
        %2120 = vmatpush2.msra.mxu0 0.0
        %2121 = vmatprep.subr.mxu0 0.0
        %2122 = vmatpush2.msra.mxu0 0.0
        %2123 = vmatprep.subr.mxu0 0.0
        %2124 = vmatpush2.msra.mxu0 0.0
        %2125 = vmatprep.mubr.f32.mxu0 0.0
        %2126 = vmatmul.mubr.f32.gmra.mxu0 %v2059
        %v2127 = vpop.f32.mrf.mxu0
        %v2128 = vadd.f32 0.0, %v2127
        %v2129 = vpop.f32.mrf.mxu0
        %v2130 = vadd.f32 0.0, %v2129
        %2131 = vdwg.mxu0
        %2132 = vmatprep.subr.mxu0 0.0
        %2133 = vmatpush1.msra.mxu0 0.0
        %2134 = vmatprep.subr.mxu0 0.0
        %2135 = vmatpush1.msra.mxu0 0.0
        %2136 = vmatprep.subr.mxu0 0.0
        %2137 = vmatpush1.msra.mxu0 0.0
        %2138 = vmatprep.subr.mxu0 0.0
        %2139 = vmatpush1.msra.mxu0 0.0
        %2140 = vmatprep.subr.mxu0 0.0
        %2141 = vmatpush1.msra.mxu0 0.0
        %2142 = vmatprep.subr.mxu0 0.0
        %2143 = vmatpush1.msra.mxu0 0.0
        %2144 = vmatprep.subr.mxu0 0.0
        %2145 = vmatpush1.msra.mxu0 0.0
        %2146 = vmatprep.subr.mxu0 0.0
        %2147 = vmatpush1.msra.mxu0 0.0
        %2148 = vmatprep.subr.mxu0 0.0
        %2149 = vmatpush1.msra.mxu0 0.0
        %2150 = vmatprep.subr.mxu0 0.0
        %2151 = vmatpush1.msra.mxu0 0.0
        %2152 = vmatprep.subr.mxu0 0.0
        %2153 = vmatpush1.msra.mxu0 0.0
        %2154 = vmatprep.subr.mxu0 0.0
        %2155 = vmatpush1.msra.mxu0 0.0
        %2156 = vmatprep.subr.mxu0 0.0
        %2157 = vmatpush1.msra.mxu0 0.0
        %2158 = vmatprep.subr.mxu0 0.0
        %2159 = vmatpush1.msra.mxu0 0.0
        %2160 = vmatprep.subr.mxu0 0.0
        %2161 = vmatpush1.msra.mxu0 0.0
        %2162 = vmatprep.subr.mxu0 0.0
        %2163 = vmatpush1.msra.mxu0 %v2052
        %2164 = vmatprep.subr.mxu0 0.0
        %2165 = vmatpush2.msra.mxu0 0.0
        %2166 = vmatprep.subr.mxu0 0.0
        %2167 = vmatpush2.msra.mxu0 0.0
        %2168 = vmatprep.subr.mxu0 0.0
        %2169 = vmatpush2.msra.mxu0 0.0
        %2170 = vmatprep.subr.mxu0 0.0
        %2171 = vmatpush2.msra.mxu0 0.0
        %2172 = vmatprep.subr.mxu0 0.0
        %2173 = vmatpush2.msra.mxu0 0.0
        %2174 = vmatprep.subr.mxu0 0.0
        %2175 = vmatpush2.msra.mxu0 0.0
        %2176 = vmatprep.subr.mxu0 0.0
        %2177 = vmatpush2.msra.mxu0 0.0
        %2178 = vmatprep.subr.mxu0 0.0
        %2179 = vmatpush2.msra.mxu0 0.0
        %2180 = vmatprep.subr.mxu0 0.0
        %2181 = vmatpush2.msra.mxu0 0.0
        %2182 = vmatprep.subr.mxu0 0.0
        %2183 = vmatpush2.msra.mxu0 0.0
        %2184 = vmatprep.subr.mxu0 0.0
        %2185 = vmatpush2.msra.mxu0 0.0
        %2186 = vmatprep.subr.mxu0 0.0
        %2187 = vmatpush2.msra.mxu0 0.0
        %2188 = vmatprep.subr.mxu0 0.0
        %2189 = vmatpush2.msra.mxu0 0.0
        %2190 = vmatprep.subr.mxu0 0.0
        %2191 = vmatpush2.msra.mxu0 0.0
        %2192 = vmatprep.subr.mxu0 0.0
        %2193 = vmatpush2.msra.mxu0 0.0
        %2194 = vmatprep.subr.mxu0 0.0
        %2195 = vmatpush2.msra.mxu0 0.0
        %2196 = vmatprep.mubr.f32.mxu0 0.0
        %2197 = vmatmul.mubr.f32.gmra.mxu0 %v2059
        %v2198 = vpop.f32.mrf.mxu0
        %v2199 = vadd.f32 0.0, %v2198
        %v2200 = vpop.f32.mrf.mxu0
        %2201 = vdwg.mxu0
        %v2202 = vadd.f32 %v2042, %v2128
        %v2203 = vadd.f32 %v2043, %v2130
        %v2204 = vadd.f32 %v2044, %v2199
        %s2205 = scalar_lea.vmem %s2, 20
        %v2206 = vld [vmem:[%s2205] sm:$0xf]
        %2207 = vrot.lane.b32.xlu0 %v610, 108
        %v2208 = vpop.permute.xlu0 %2207
        %2209 = vrot.lane.b32.xlu0 %v611, 108
        %v2210 = vpop.permute.xlu0 %2209
        %2211 = vrot.lane.b32.xlu0 %v612, 108
        %v2212 = vpop.permute.xlu0 %2211
        %vm2213 = vcmask 883712
        %v2214 = vsel %vm2213, %v2208, %v2210
        %v2215 = vsel %vm2213, %v2210, %v2212
        %v2220 = vsel %vm420, %v2206, 0
        %2222 = vmatprep.subr.mxu0 0.0
        %2223 = vmatpush1.msra.mxu0 0.0
        %2224 = vmatprep.subr.mxu0 0.0
        %2225 = vmatpush1.msra.mxu0 0.0
        %2226 = vmatprep.subr.mxu0 0.0
        %2227 = vmatpush1.msra.mxu0 0.0
        %2228 = vmatprep.subr.mxu0 0.0
        %2229 = vmatpush1.msra.mxu0 0.0
        %2230 = vmatprep.subr.mxu0 0.0
        %2231 = vmatpush1.msra.mxu0 0.0
        %2232 = vmatprep.subr.mxu0 0.0
        %2233 = vmatpush1.msra.mxu0 0.0
        %2234 = vmatprep.subr.mxu0 0.0
        %2235 = vmatpush1.msra.mxu0 0.0
        %2236 = vmatprep.subr.mxu0 0.0
        %2237 = vmatpush1.msra.mxu0 0.0
        %2238 = vmatprep.subr.mxu0 0.0
        %2239 = vmatpush1.msra.mxu0 0.0
        %2240 = vmatprep.subr.mxu0 0.0
        %2241 = vmatpush1.msra.mxu0 0.0
        %2242 = vmatprep.subr.mxu0 0.0
        %2243 = vmatpush1.msra.mxu0 0.0
        %2244 = vmatprep.subr.mxu0 0.0
        %2245 = vmatpush1.msra.mxu0 0.0
        %2246 = vmatprep.subr.mxu0 0.0
        %2247 = vmatpush1.msra.mxu0 0.0
        %2248 = vmatprep.subr.mxu0 0.0
        %2249 = vmatpush1.msra.mxu0 0.0
        %2250 = vmatprep.subr.mxu0 0.0
        %2251 = vmatpush1.msra.mxu0 0.0
        %2252 = vmatprep.subr.mxu0 %v2215
        %2253 = vmatpush1.msra.mxu0 %v2214
        %2254 = vmatprep.subr.mxu0 0.0
        %2255 = vmatpush2.msra.mxu0 0.0
        %2256 = vmatprep.subr.mxu0 0.0
        %2257 = vmatpush2.msra.mxu0 0.0
        %2258 = vmatprep.subr.mxu0 0.0
        %2259 = vmatpush2.msra.mxu0 0.0
        %2260 = vmatprep.subr.mxu0 0.0
        %2261 = vmatpush2.msra.mxu0 0.0
        %2262 = vmatprep.subr.mxu0 0.0
        %2263 = vmatpush2.msra.mxu0 0.0
        %2264 = vmatprep.subr.mxu0 0.0
        %2265 = vmatpush2.msra.mxu0 0.0
        %2266 = vmatprep.subr.mxu0 0.0
        %2267 = vmatpush2.msra.mxu0 0.0
        %2268 = vmatprep.subr.mxu0 0.0
        %2269 = vmatpush2.msra.mxu0 0.0
        %2270 = vmatprep.subr.mxu0 0.0
        %2271 = vmatpush2.msra.mxu0 0.0
        %2272 = vmatprep.subr.mxu0 0.0
        %2273 = vmatpush2.msra.mxu0 0.0
        %2274 = vmatprep.subr.mxu0 0.0
        %2275 = vmatpush2.msra.mxu0 0.0
        %2276 = vmatprep.subr.mxu0 0.0
        %2277 = vmatpush2.msra.mxu0 0.0
        %2278 = vmatprep.subr.mxu0 0.0
        %2279 = vmatpush2.msra.mxu0 0.0
        %2280 = vmatprep.subr.mxu0 0.0
        %2281 = vmatpush2.msra.mxu0 0.0
        %2282 = vmatprep.subr.mxu0 0.0
        %2283 = vmatpush2.msra.mxu0 0.0
        %2284 = vmatprep.subr.mxu0 0.0
        %2285 = vmatpush2.msra.mxu0 0.0
        %2286 = vmatprep.mubr.f32.mxu0 0.0
        %2287 = vmatmul.mubr.f32.gmra.mxu0 %v2220
        %v2288 = vpop.f32.mrf.mxu0
        %v2289 = vadd.f32 0.0, %v2288
        %v2290 = vpop.f32.mrf.mxu0
        %v2291 = vadd.f32 0.0, %v2290
        %2292 = vdwg.mxu0
        %2293 = vmatprep.subr.mxu0 0.0
        %2294 = vmatpush1.msra.mxu0 0.0
        %2295 = vmatprep.subr.mxu0 0.0
        %2296 = vmatpush1.msra.mxu0 0.0
        %2297 = vmatprep.subr.mxu0 0.0
        %2298 = vmatpush1.msra.mxu0 0.0
        %2299 = vmatprep.subr.mxu0 0.0
        %2300 = vmatpush1.msra.mxu0 0.0
        %2301 = vmatprep.subr.mxu0 0.0
        %2302 = vmatpush1.msra.mxu0 0.0
        %2303 = vmatprep.subr.mxu0 0.0
        %2304 = vmatpush1.msra.mxu0 0.0
        %2305 = vmatprep.subr.mxu0 0.0
        %2306 = vmatpush1.msra.mxu0 0.0
        %2307 = vmatprep.subr.mxu0 0.0
        %2308 = vmatpush1.msra.mxu0 0.0
        %2309 = vmatprep.subr.mxu0 0.0
        %2310 = vmatpush1.msra.mxu0 0.0
        %2311 = vmatprep.subr.mxu0 0.0
        %2312 = vmatpush1.msra.mxu0 0.0
        %2313 = vmatprep.subr.mxu0 0.0
        %2314 = vmatpush1.msra.mxu0 0.0
        %2315 = vmatprep.subr.mxu0 0.0
        %2316 = vmatpush1.msra.mxu0 0.0
        %2317 = vmatprep.subr.mxu0 0.0
        %2318 = vmatpush1.msra.mxu0 0.0
        %2319 = vmatprep.subr.mxu0 0.0
        %2320 = vmatpush1.msra.mxu0 0.0
        %2321 = vmatprep.subr.mxu0 0.0
        %2322 = vmatpush1.msra.mxu0 0.0
        %2323 = vmatprep.subr.mxu0 0.0
        %2324 = vmatpush1.msra.mxu0 %v2212
        %2325 = vmatprep.subr.mxu0 0.0
        %2326 = vmatpush2.msra.mxu0 0.0
        %2327 = vmatprep.subr.mxu0 0.0
        %2328 = vmatpush2.msra.mxu0 0.0
        %2329 = vmatprep.subr.mxu0 0.0
        %2330 = vmatpush2.msra.mxu0 0.0
        %2331 = vmatprep.subr.mxu0 0.0
        %2332 = vmatpush2.msra.mxu0 0.0
        %2333 = vmatprep.subr.mxu0 0.0
        %2334 = vmatpush2.msra.mxu0 0.0
        %2335 = vmatprep.subr.mxu0 0.0
        %2336 = vmatpush2.msra.mxu0 0.0
        %2337 = vmatprep.subr.mxu0 0.0
        %2338 = vmatpush2.msra.mxu0 0.0
        %2339 = vmatprep.subr.mxu0 0.0
        %2340 = vmatpush2.msra.mxu0 0.0
        %2341 = vmatprep.subr.mxu0 0.0
        %2342 = vmatpush2.msra.mxu0 0.0
        %2343 = vmatprep.subr.mxu0 0.0
        %2344 = vmatpush2.msra.mxu0 0.0
        %2345 = vmatprep.subr.mxu0 0.0
        %2346 = vmatpush2.msra.mxu0 0.0
        %2347 = vmatprep.subr.mxu0 0.0
        %2348 = vmatpush2.msra.mxu0 0.0
        %2349 = vmatprep.subr.mxu0 0.0
        %2350 = vmatpush2.msra.mxu0 0.0
        %2351 = vmatprep.subr.mxu0 0.0
        %2352 = vmatpush2.msra.mxu0 0.0
        %2353 = vmatprep.subr.mxu0 0.0
        %2354 = vmatpush2.msra.mxu0 0.0
        %2355 = vmatprep.subr.mxu0 0.0
        %2356 = vmatpush2.msra.mxu0 0.0
        %2357 = vmatprep.mubr.f32.mxu0 0.0
        %2358 = vmatmul.mubr.f32.gmra.mxu0 %v2220
        %v2359 = vpop.f32.mrf.mxu0
        %v2360 = vadd.f32 0.0, %v2359
        %v2361 = vpop.f32.mrf.mxu0
        %2362 = vdwg.mxu0
        %v2363 = vadd.f32 %v2202, %v2289
        %v2364 = vadd.f32 %v2203, %v2291
        %v2365 = vadd.f32 %v2204, %v2360
        %s2366 = scalar_lea.vmem %s5, 20
        %v2367 = vld [vmem:[%s2366] sm:$0xf]
        %2368 = vrot.lane.b32.xlu0 %v766, 108
        %v2369 = vpop.permute.xlu0 %2368
        %2370 = vrot.lane.b32.xlu0 %v767, 108
        %v2371 = vpop.permute.xlu0 %2370
        %2372 = vrot.lane.b32.xlu0 %v768, 108
        %v2373 = vpop.permute.xlu0 %2372
        %v2374 = vsel %vm2213, %v2369, %v2371
        %v2375 = vsel %vm2213, %v2371, %v2373
        %v2380 = vsel %vm420, %v2367, 0
        %2382 = vmatprep.subr.mxu0 0.0
        %2383 = vmatpush1.msra.mxu0 0.0
        %2384 = vmatprep.subr.mxu0 0.0
        %2385 = vmatpush1.msra.mxu0 0.0
        %2386 = vmatprep.subr.mxu0 0.0
        %2387 = vmatpush1.msra.mxu0 0.0
        %2388 = vmatprep.subr.mxu0 0.0
        %2389 = vmatpush1.msra.mxu0 0.0
        %2390 = vmatprep.subr.mxu0 0.0
        %2391 = vmatpush1.msra.mxu0 0.0
        %2392 = vmatprep.subr.mxu0 0.0
        %2393 = vmatpush1.msra.mxu0 0.0
        %2394 = vmatprep.subr.mxu0 0.0
        %2395 = vmatpush1.msra.mxu0 0.0
        %2396 = vmatprep.subr.mxu0 0.0
        %2397 = vmatpush1.msra.mxu0 0.0
        %2398 = vmatprep.subr.mxu0 0.0
        %2399 = vmatpush1.msra.mxu0 0.0
        %2400 = vmatprep.subr.mxu0 0.0
        %2401 = vmatpush1.msra.mxu0 0.0
        %2402 = vmatprep.subr.mxu0 0.0
        %2403 = vmatpush1.msra.mxu0 0.0
        %2404 = vmatprep.subr.mxu0 0.0
        %2405 = vmatpush1.msra.mxu0 0.0
        %2406 = vmatprep.subr.mxu0 0.0
        %2407 = vmatpush1.msra.mxu0 0.0
        %2408 = vmatprep.subr.mxu0 0.0
        %2409 = vmatpush1.msra.mxu0 0.0
        %2410 = vmatprep.subr.mxu0 0.0
        %2411 = vmatpush1.msra.mxu0 0.0
        %2412 = vmatprep.subr.mxu0 %v2375
        %2413 = vmatpush1.msra.mxu0 %v2374
        %2414 = vmatprep.subr.mxu0 0.0
        %2415 = vmatpush2.msra.mxu0 0.0
        %2416 = vmatprep.subr.mxu0 0.0
        %2417 = vmatpush2.msra.mxu0 0.0
        %2418 = vmatprep.subr.mxu0 0.0
        %2419 = vmatpush2.msra.mxu0 0.0
        %2420 = vmatprep.subr.mxu0 0.0
        %2421 = vmatpush2.msra.mxu0 0.0
        %2422 = vmatprep.subr.mxu0 0.0
        %2423 = vmatpush2.msra.mxu0 0.0
        %2424 = vmatprep.subr.mxu0 0.0
        %2425 = vmatpush2.msra.mxu0 0.0
        %2426 = vmatprep.subr.mxu0 0.0
        %2427 = vmatpush2.msra.mxu0 0.0
        %2428 = vmatprep.subr.mxu0 0.0
        %2429 = vmatpush2.msra.mxu0 0.0
        %2430 = vmatprep.subr.mxu0 0.0
        %2431 = vmatpush2.msra.mxu0 0.0
        %2432 = vmatprep.subr.mxu0 0.0
        %2433 = vmatpush2.msra.mxu0 0.0
        %2434 = vmatprep.subr.mxu0 0.0
        %2435 = vmatpush2.msra.mxu0 0.0
        %2436 = vmatprep.subr.mxu0 0.0
        %2437 = vmatpush2.msra.mxu0 0.0
        %2438 = vmatprep.subr.mxu0 0.0
        %2439 = vmatpush2.msra.mxu0 0.0
        %2440 = vmatprep.subr.mxu0 0.0
        %2441 = vmatpush2.msra.mxu0 0.0
        %2442 = vmatprep.subr.mxu0 0.0
        %2443 = vmatpush2.msra.mxu0 0.0
        %2444 = vmatprep.subr.mxu0 0.0
        %2445 = vmatpush2.msra.mxu0 0.0
        %2446 = vmatprep.mubr.f32.mxu0 0.0
        %2447 = vmatmul.mubr.f32.gmra.mxu0 %v2380
        %v2448 = vpop.f32.mrf.mxu0
        %v2449 = vadd.f32 0.0, %v2448
        %v2450 = vpop.f32.mrf.mxu0
        %v2451 = vadd.f32 0.0, %v2450
        %2452 = vdwg.mxu0
        %2453 = vmatprep.subr.mxu0 0.0
        %2454 = vmatpush1.msra.mxu0 0.0
        %2455 = vmatprep.subr.mxu0 0.0
        %2456 = vmatpush1.msra.mxu0 0.0
        %2457 = vmatprep.subr.mxu0 0.0
        %2458 = vmatpush1.msra.mxu0 0.0
        %2459 = vmatprep.subr.mxu0 0.0
        %2460 = vmatpush1.msra.mxu0 0.0
        %2461 = vmatprep.subr.mxu0 0.0
        %2462 = vmatpush1.msra.mxu0 0.0
        %2463 = vmatprep.subr.mxu0 0.0
        %2464 = vmatpush1.msra.mxu0 0.0
        %2465 = vmatprep.subr.mxu0 0.0
        %2466 = vmatpush1.msra.mxu0 0.0
        %2467 = vmatprep.subr.mxu0 0.0
        %2468 = vmatpush1.msra.mxu0 0.0
        %2469 = vmatprep.subr.mxu0 0.0
        %2470 = vmatpush1.msra.mxu0 0.0
        %2471 = vmatprep.subr.mxu0 0.0
        %2472 = vmatpush1.msra.mxu0 0.0
        %2473 = vmatprep.subr.mxu0 0.0
        %2474 = vmatpush1.msra.mxu0 0.0
        %2475 = vmatprep.subr.mxu0 0.0
        %2476 = vmatpush1.msra.mxu0 0.0
        %2477 = vmatprep.subr.mxu0 0.0
        %2478 = vmatpush1.msra.mxu0 0.0
        %2479 = vmatprep.subr.mxu0 0.0
        %2480 = vmatpush1.msra.mxu0 0.0
        %2481 = vmatprep.subr.mxu0 0.0
        %2482 = vmatpush1.msra.mxu0 0.0
        %2483 = vmatprep.subr.mxu0 0.0
        %2484 = vmatpush1.msra.mxu0 %v2373
        %2485 = vmatprep.subr.mxu0 0.0
        %2486 = vmatpush2.msra.mxu0 0.0
        %2487 = vmatprep.subr.mxu0 0.0
        %2488 = vmatpush2.msra.mxu0 0.0
        %2489 = vmatprep.subr.mxu0 0.0
        %2490 = vmatpush2.msra.mxu0 0.0
        %2491 = vmatprep.subr.mxu0 0.0
        %2492 = vmatpush2.msra.mxu0 0.0
        %2493 = vmatprep.subr.mxu0 0.0
        %2494 = vmatpush2.msra.mxu0 0.0
        %2495 = vmatprep.subr.mxu0 0.0
        %2496 = vmatpush2.msra.mxu0 0.0
        %2497 = vmatprep.subr.mxu0 0.0
        %2498 = vmatpush2.msra.mxu0 0.0
        %2499 = vmatprep.subr.mxu0 0.0
        %2500 = vmatpush2.msra.mxu0 0.0
        %2501 = vmatprep.subr.mxu0 0.0
        %2502 = vmatpush2.msra.mxu0 0.0
        %2503 = vmatprep.subr.mxu0 0.0
        %2504 = vmatpush2.msra.mxu0 0.0
        %2505 = vmatprep.subr.mxu0 0.0
        %2506 = vmatpush2.msra.mxu0 0.0
        %2507 = vmatprep.subr.mxu0 0.0
        %2508 = vmatpush2.msra.mxu0 0.0
        %2509 = vmatprep.subr.mxu0 0.0
        %2510 = vmatpush2.msra.mxu0 0.0
        %2511 = vmatprep.subr.mxu0 0.0
        %2512 = vmatpush2.msra.mxu0 0.0
        %2513 = vmatprep.subr.mxu0 0.0
        %2514 = vmatpush2.msra.mxu0 0.0
        %2515 = vmatprep.subr.mxu0 0.0
        %2516 = vmatpush2.msra.mxu0 0.0
        %2517 = vmatprep.mubr.f32.mxu0 0.0
        %2518 = vmatmul.mubr.f32.gmra.mxu0 %v2380
        %v2519 = vpop.f32.mrf.mxu0
        %v2520 = vadd.f32 0.0, %v2519
        %v2521 = vpop.f32.mrf.mxu0
        %2522 = vdwg.mxu0
        %v2523 = vadd.f32 %v2363, %v2449
        %v2524 = vadd.f32 %v2364, %v2451
        %v2525 = vadd.f32 %v2365, %v2520
        %s2526 = scalar_lea.vmem %s2, 24
        %v2527 = vld [vmem:[%s2526] sm:$0xf]
        %2528 = vrot.lane.b32.xlu0 %v610, 92
        %v2529 = vpop.permute.xlu0 %2528
        %2530 = vrot.lane.b32.xlu0 %v611, 92
        %v2531 = vpop.permute.xlu0 %2530
        %2532 = vrot.lane.b32.xlu0 %v612, 92
        %v2533 = vpop.permute.xlu0 %2532
        %vm2534 = vcmask 752640
        %v2535 = vsel %vm2534, %v2529, %v2531
        %v2536 = vsel %vm2534, %v2531, %v2533
        %v2541 = vsel %vm420, %v2527, 0
        %2543 = vmatprep.subr.mxu0 0.0
        %2544 = vmatpush1.msra.mxu0 0.0
        %2545 = vmatprep.subr.mxu0 0.0
        %2546 = vmatpush1.msra.mxu0 0.0
        %2547 = vmatprep.subr.mxu0 0.0
        %2548 = vmatpush1.msra.mxu0 0.0
        %2549 = vmatprep.subr.mxu0 0.0
        %2550 = vmatpush1.msra.mxu0 0.0
        %2551 = vmatprep.subr.mxu0 0.0
        %2552 = vmatpush1.msra.mxu0 0.0
        %2553 = vmatprep.subr.mxu0 0.0
        %2554 = vmatpush1.msra.mxu0 0.0
        %2555 = vmatprep.subr.mxu0 0.0
        %2556 = vmatpush1.msra.mxu0 0.0
        %2557 = vmatprep.subr.mxu0 0.0
        %2558 = vmatpush1.msra.mxu0 0.0
        %2559 = vmatprep.subr.mxu0 0.0
        %2560 = vmatpush1.msra.mxu0 0.0
        %2561 = vmatprep.subr.mxu0 0.0
        %2562 = vmatpush1.msra.mxu0 0.0
        %2563 = vmatprep.subr.mxu0 0.0
        %2564 = vmatpush1.msra.mxu0 0.0
        %2565 = vmatprep.subr.mxu0 0.0
        %2566 = vmatpush1.msra.mxu0 0.0
        %2567 = vmatprep.subr.mxu0 0.0
        %2568 = vmatpush1.msra.mxu0 0.0
        %2569 = vmatprep.subr.mxu0 0.0
        %2570 = vmatpush1.msra.mxu0 0.0
        %2571 = vmatprep.subr.mxu0 0.0
        %2572 = vmatpush1.msra.mxu0 0.0
        %2573 = vmatprep.subr.mxu0 %v2536
        %2574 = vmatpush1.msra.mxu0 %v2535
        %2575 = vmatprep.subr.mxu0 0.0
        %2576 = vmatpush2.msra.mxu0 0.0
        %2577 = vmatprep.subr.mxu0 0.0
        %2578 = vmatpush2.msra.mxu0 0.0
        %2579 = vmatprep.subr.mxu0 0.0
        %2580 = vmatpush2.msra.mxu0 0.0
        %2581 = vmatprep.subr.mxu0 0.0
        %2582 = vmatpush2.msra.mxu0 0.0
        %2583 = vmatprep.subr.mxu0 0.0
        %2584 = vmatpush2.msra.mxu0 0.0
        %2585 = vmatprep.subr.mxu0 0.0
        %2586 = vmatpush2.msra.mxu0 0.0
        %2587 = vmatprep.subr.mxu0 0.0
        %2588 = vmatpush2.msra.mxu0 0.0
        %2589 = vmatprep.subr.mxu0 0.0
        %2590 = vmatpush2.msra.mxu0 0.0
        %2591 = vmatprep.subr.mxu0 0.0
        %2592 = vmatpush2.msra.mxu0 0.0
        %2593 = vmatprep.subr.mxu0 0.0
        %2594 = vmatpush2.msra.mxu0 0.0
        %2595 = vmatprep.subr.mxu0 0.0
        %2596 = vmatpush2.msra.mxu0 0.0
        %2597 = vmatprep.subr.mxu0 0.0
        %2598 = vmatpush2.msra.mxu0 0.0
        %2599 = vmatprep.subr.mxu0 0.0
        %2600 = vmatpush2.msra.mxu0 0.0
        %2601 = vmatprep.subr.mxu0 0.0
        %2602 = vmatpush2.msra.mxu0 0.0
        %2603 = vmatprep.subr.mxu0 0.0
        %2604 = vmatpush2.msra.mxu0 0.0
        %2605 = vmatprep.subr.mxu0 0.0
        %2606 = vmatpush2.msra.mxu0 0.0
        %2607 = vmatprep.mubr.f32.mxu0 0.0
        %2608 = vmatmul.mubr.f32.gmra.mxu0 %v2541
        %v2609 = vpop.f32.mrf.mxu0
        %v2610 = vadd.f32 0.0, %v2609
        %v2611 = vpop.f32.mrf.mxu0
        %v2612 = vadd.f32 0.0, %v2611
        %2613 = vdwg.mxu0
        %2614 = vmatprep.subr.mxu0 0.0
        %2615 = vmatpush1.msra.mxu0 0.0
        %2616 = vmatprep.subr.mxu0 0.0
        %2617 = vmatpush1.msra.mxu0 0.0
        %2618 = vmatprep.subr.mxu0 0.0
        %2619 = vmatpush1.msra.mxu0 0.0
        %2620 = vmatprep.subr.mxu0 0.0
        %2621 = vmatpush1.msra.mxu0 0.0
        %2622 = vmatprep.subr.mxu0 0.0
        %2623 = vmatpush1.msra.mxu0 0.0
        %2624 = vmatprep.subr.mxu0 0.0
        %2625 = vmatpush1.msra.mxu0 0.0
        %2626 = vmatprep.subr.mxu0 0.0
        %2627 = vmatpush1.msra.mxu0 0.0
        %2628 = vmatprep.subr.mxu0 0.0
        %2629 = vmatpush1.msra.mxu0 0.0
        %2630 = vmatprep.subr.mxu0 0.0
        %2631 = vmatpush1.msra.mxu0 0.0
        %2632 = vmatprep.subr.mxu0 0.0
        %2633 = vmatpush1.msra.mxu0 0.0
        %2634 = vmatprep.subr.mxu0 0.0
        %2635 = vmatpush1.msra.mxu0 0.0
        %2636 = vmatprep.subr.mxu0 0.0
        %2637 = vmatpush1.msra.mxu0 0.0
        %2638 = vmatprep.subr.mxu0 0.0
        %2639 = vmatpush1.msra.mxu0 0.0
        %2640 = vmatprep.subr.mxu0 0.0
        %2641 = vmatpush1.msra.mxu0 0.0
        %2642 = vmatprep.subr.mxu0 0.0
        %2643 = vmatpush1.msra.mxu0 0.0
        %2644 = vmatprep.subr.mxu0 0.0
        %2645 = vmatpush1.msra.mxu0 %v2533
        %2646 = vmatprep.subr.mxu0 0.0
        %2647 = vmatpush2.msra.mxu0 0.0
        %2648 = vmatprep.subr.mxu0 0.0
        %2649 = vmatpush2.msra.mxu0 0.0
        %2650 = vmatprep.subr.mxu0 0.0
        %2651 = vmatpush2.msra.mxu0 0.0
        %2652 = vmatprep.subr.mxu0 0.0
        %2653 = vmatpush2.msra.mxu0 0.0
        %2654 = vmatprep.subr.mxu0 0.0
        %2655 = vmatpush2.msra.mxu0 0.0
        %2656 = vmatprep.subr.mxu0 0.0
        %2657 = vmatpush2.msra.mxu0 0.0
        %2658 = vmatprep.subr.mxu0 0.0
        %2659 = vmatpush2.msra.mxu0 0.0
        %2660 = vmatprep.subr.mxu0 0.0
        %2661 = vmatpush2.msra.mxu0 0.0
        %2662 = vmatprep.subr.mxu0 0.0
        %2663 = vmatpush2.msra.mxu0 0.0
        %2664 = vmatprep.subr.mxu0 0.0
        %2665 = vmatpush2.msra.mxu0 0.0
        %2666 = vmatprep.subr.mxu0 0.0
        %2667 = vmatpush2.msra.mxu0 0.0
        %2668 = vmatprep.subr.mxu0 0.0
        %2669 = vmatpush2.msra.mxu0 0.0
        %2670 = vmatprep.subr.mxu0 0.0
        %2671 = vmatpush2.msra.mxu0 0.0
        %2672 = vmatprep.subr.mxu0 0.0
        %2673 = vmatpush2.msra.mxu0 0.0
        %2674 = vmatprep.subr.mxu0 0.0
        %2675 = vmatpush2.msra.mxu0 0.0
        %2676 = vmatprep.subr.mxu0 0.0
        %2677 = vmatpush2.msra.mxu0 0.0
        %2678 = vmatprep.mubr.f32.mxu0 0.0
        %2679 = vmatmul.mubr.f32.gmra.mxu0 %v2541
        %v2680 = vpop.f32.mrf.mxu0
        %v2681 = vadd.f32 0.0, %v2680
        %v2682 = vpop.f32.mrf.mxu0
        %2683 = vdwg.mxu0
        %v2684 = vadd.f32 %v2523, %v2610
        %v2685 = vadd.f32 %v2524, %v2612
        %v2686 = vadd.f32 %v2525, %v2681
        %s2687 = scalar_lea.vmem %s5, 24
        %v2688 = vld [vmem:[%s2687] sm:$0xf]
        %2689 = vrot.lane.b32.xlu0 %v766, 92
        %v2690 = vpop.permute.xlu0 %2689
        %2691 = vrot.lane.b32.xlu0 %v767, 92
        %v2692 = vpop.permute.xlu0 %2691
        %2693 = vrot.lane.b32.xlu0 %v768, 92
        %v2694 = vpop.permute.xlu0 %2693
        %v2695 = vsel %vm2534, %v2690, %v2692
        %v2696 = vsel %vm2534, %v2692, %v2694
        %v2701 = vsel %vm420, %v2688, 0
        %2703 = vmatprep.subr.mxu0 0.0
        %2704 = vmatpush1.msra.mxu0 0.0
        %2705 = vmatprep.subr.mxu0 0.0
        %2706 = vmatpush1.msra.mxu0 0.0
        %2707 = vmatprep.subr.mxu0 0.0
        %2708 = vmatpush1.msra.mxu0 0.0
        %2709 = vmatprep.subr.mxu0 0.0
        %2710 = vmatpush1.msra.mxu0 0.0
        %2711 = vmatprep.subr.mxu0 0.0
        %2712 = vmatpush1.msra.mxu0 0.0
        %2713 = vmatprep.subr.mxu0 0.0
        %2714 = vmatpush1.msra.mxu0 0.0
        %2715 = vmatprep.subr.mxu0 0.0
        %2716 = vmatpush1.msra.mxu0 0.0
        %2717 = vmatprep.subr.mxu0 0.0
        %2718 = vmatpush1.msra.mxu0 0.0
        %2719 = vmatprep.subr.mxu0 0.0
        %2720 = vmatpush1.msra.mxu0 0.0
        %2721 = vmatprep.subr.mxu0 0.0
        %2722 = vmatpush1.msra.mxu0 0.0
        %2723 = vmatprep.subr.mxu0 0.0
        %2724 = vmatpush1.msra.mxu0 0.0
        %2725 = vmatprep.subr.mxu0 0.0
        %2726 = vmatpush1.msra.mxu0 0.0
        %2727 = vmatprep.subr.mxu0 0.0
        %2728 = vmatpush1.msra.mxu0 0.0
        %2729 = vmatprep.subr.mxu0 0.0
        %2730 = vmatpush1.msra.mxu0 0.0
        %2731 = vmatprep.subr.mxu0 0.0
        %2732 = vmatpush1.msra.mxu0 0.0
        %2733 = vmatprep.subr.mxu0 %v2696
        %2734 = vmatpush1.msra.mxu0 %v2695
        %2735 = vmatprep.subr.mxu0 0.0
        %2736 = vmatpush2.msra.mxu0 0.0
        %2737 = vmatprep.subr.mxu0 0.0
        %2738 = vmatpush2.msra.mxu0 0.0
        %2739 = vmatprep.subr.mxu0 0.0
        %2740 = vmatpush2.msra.mxu0 0.0
        %2741 = vmatprep.subr.mxu0 0.0
        %2742 = vmatpush2.msra.mxu0 0.0
        %2743 = vmatprep.subr.mxu0 0.0
        %2744 = vmatpush2.msra.mxu0 0.0
        %2745 = vmatprep.subr.mxu0 0.0
        %2746 = vmatpush2.msra.mxu0 0.0
        %2747 = vmatprep.subr.mxu0 0.0
        %2748 = vmatpush2.msra.mxu0 0.0
        %2749 = vmatprep.subr.mxu0 0.0
        %2750 = vmatpush2.msra.mxu0 0.0
        %2751 = vmatprep.subr.mxu0 0.0
        %2752 = vmatpush2.msra.mxu0 0.0
        %2753 = vmatprep.subr.mxu0 0.0
        %2754 = vmatpush2.msra.mxu0 0.0
        %2755 = vmatprep.subr.mxu0 0.0
        %2756 = vmatpush2.msra.mxu0 0.0
        %2757 = vmatprep.subr.mxu0 0.0
        %2758 = vmatpush2.msra.mxu0 0.0
        %2759 = vmatprep.subr.mxu0 0.0
        %2760 = vmatpush2.msra.mxu0 0.0
        %2761 = vmatprep.subr.mxu0 0.0
        %2762 = vmatpush2.msra.mxu0 0.0
        %2763 = vmatprep.subr.mxu0 0.0
        %2764 = vmatpush2.msra.mxu0 0.0
        %2765 = vmatprep.subr.mxu0 0.0
        %2766 = vmatpush2.msra.mxu0 0.0
        %2767 = vmatprep.mubr.f32.mxu0 0.0
        %2768 = vmatmul.mubr.f32.gmra.mxu0 %v2701
        %v2769 = vpop.f32.mrf.mxu0
        %v2770 = vadd.f32 0.0, %v2769
        %v2771 = vpop.f32.mrf.mxu0
        %v2772 = vadd.f32 0.0, %v2771
        %2773 = vdwg.mxu0
        %2774 = vmatprep.subr.mxu0 0.0
        %2775 = vmatpush1.msra.mxu0 0.0
        %2776 = vmatprep.subr.mxu0 0.0
        %2777 = vmatpush1.msra.mxu0 0.0
        %2778 = vmatprep.subr.mxu0 0.0
        %2779 = vmatpush1.msra.mxu0 0.0
        %2780 = vmatprep.subr.mxu0 0.0
        %2781 = vmatpush1.msra.mxu0 0.0
        %2782 = vmatprep.subr.mxu0 0.0
        %2783 = vmatpush1.msra.mxu0 0.0
        %2784 = vmatprep.subr.mxu0 0.0
        %2785 = vmatpush1.msra.mxu0 0.0
        %2786 = vmatprep.subr.mxu0 0.0
        %2787 = vmatpush1.msra.mxu0 0.0
        %2788 = vmatprep.subr.mxu0 0.0
        %2789 = vmatpush1.msra.mxu0 0.0
        %2790 = vmatprep.subr.mxu0 0.0
        %2791 = vmatpush1.msra.mxu0 0.0
        %2792 = vmatprep.subr.mxu0 0.0
        %2793 = vmatpush1.msra.mxu0 0.0
        %2794 = vmatprep.subr.mxu0 0.0
        %2795 = vmatpush1.msra.mxu0 0.0
        %2796 = vmatprep.subr.mxu0 0.0
        %2797 = vmatpush1.msra.mxu0 0.0
        %2798 = vmatprep.subr.mxu0 0.0
        %2799 = vmatpush1.msra.mxu0 0.0
        %2800 = vmatprep.subr.mxu0 0.0
        %2801 = vmatpush1.msra.mxu0 0.0
        %2802 = vmatprep.subr.mxu0 0.0
        %2803 = vmatpush1.msra.mxu0 0.0
        %2804 = vmatprep.subr.mxu0 0.0
        %2805 = vmatpush1.msra.mxu0 %v2694
        %2806 = vmatprep.subr.mxu0 0.0
        %2807 = vmatpush2.msra.mxu0 0.0
        %2808 = vmatprep.subr.mxu0 0.0
        %2809 = vmatpush2.msra.mxu0 0.0
        %2810 = vmatprep.subr.mxu0 0.0
        %2811 = vmatpush2.msra.mxu0 0.0
        %2812 = vmatprep.subr.mxu0 0.0
        %2813 = vmatpush2.msra.mxu0 0.0
        %2814 = vmatprep.subr.mxu0 0.0
        %2815 = vmatpush2.msra.mxu0 0.0
        %2816 = vmatprep.subr.mxu0 0.0
        %2817 = vmatpush2.msra.mxu0 0.0
        %2818 = vmatprep.subr.mxu0 0.0
        %2819 = vmatpush2.msra.mxu0 0.0
        %2820 = vmatprep.subr.mxu0 0.0
        %2821 = vmatpush2.msra.mxu0 0.0
        %2822 = vmatprep.subr.mxu0 0.0
        %2823 = vmatpush2.msra.mxu0 0.0
        %2824 = vmatprep.subr.mxu0 0.0
        %2825 = vmatpush2.msra.mxu0 0.0
        %2826 = vmatprep.subr.mxu0 0.0
        %2827 = vmatpush2.msra.mxu0 0.0
        %2828 = vmatprep.subr.mxu0 0.0
        %2829 = vmatpush2.msra.mxu0 0.0
        %2830 = vmatprep.subr.mxu0 0.0
        %2831 = vmatpush2.msra.mxu0 0.0
        %2832 = vmatprep.subr.mxu0 0.0
        %2833 = vmatpush2.msra.mxu0 0.0
        %2834 = vmatprep.subr.mxu0 0.0
        %2835 = vmatpush2.msra.mxu0 0.0
        %2836 = vmatprep.subr.mxu0 0.0
        %2837 = vmatpush2.msra.mxu0 0.0
        %2838 = vmatprep.mubr.f32.mxu0 0.0
        %2839 = vmatmul.mubr.f32.gmra.mxu0 %v2701
        %v2840 = vpop.f32.mrf.mxu0
        %v2841 = vadd.f32 0.0, %v2840
        %v2842 = vpop.f32.mrf.mxu0
        %2843 = vdwg.mxu0
        %v2844 = vadd.f32 %v2684, %v2770
        %v2845 = vadd.f32 %v2685, %v2772
        %v2846 = vadd.f32 %v2686, %v2841
        %s2847 = scalar_lea.vmem %s2, 28
        %v2848 = vld [vmem:[%s2847] sm:$0xf]
        %2849 = vrot.lane.b32.xlu0 %v610, 91
        %v2850 = vpop.permute.xlu0 %2849
        %2851 = vrot.lane.b32.xlu0 %v611, 91
        %v2852 = vpop.permute.xlu0 %2851
        %2853 = vrot.lane.b32.xlu0 %v612, 91
        %v2854 = vpop.permute.xlu0 %2853
        %vm2855 = vcmask 744448
        %v2856 = vsel %vm2855, %v2850, %v2852
        %v2857 = vsel %vm2855, %v2852, %v2854
        %v2862 = vsel %vm420, %v2848, 0
        %2864 = vmatprep.subr.mxu0 0.0
        %2865 = vmatpush1.msra.mxu0 0.0
        %2866 = vmatprep.subr.mxu0 0.0
        %2867 = vmatpush1.msra.mxu0 0.0
        %2868 = vmatprep.subr.mxu0 0.0
        %2869 = vmatpush1.msra.mxu0 0.0
        %2870 = vmatprep.subr.mxu0 0.0
        %2871 = vmatpush1.msra.mxu0 0.0
        %2872 = vmatprep.subr.mxu0 0.0
        %2873 = vmatpush1.msra.mxu0 0.0
        %2874 = vmatprep.subr.mxu0 0.0
        %2875 = vmatpush1.msra.mxu0 0.0
        %2876 = vmatprep.subr.mxu0 0.0
        %2877 = vmatpush1.msra.mxu0 0.0
        %2878 = vmatprep.subr.mxu0 0.0
        %2879 = vmatpush1.msra.mxu0 0.0
        %2880 = vmatprep.subr.mxu0 0.0
        %2881 = vmatpush1.msra.mxu0 0.0
        %2882 = vmatprep.subr.mxu0 0.0
        %2883 = vmatpush1.msra.mxu0 0.0
        %2884 = vmatprep.subr.mxu0 0.0
        %2885 = vmatpush1.msra.mxu0 0.0
        %2886 = vmatprep.subr.mxu0 0.0
        %2887 = vmatpush1.msra.mxu0 0.0
        %2888 = vmatprep.subr.mxu0 0.0
        %2889 = vmatpush1.msra.mxu0 0.0
        %2890 = vmatprep.subr.mxu0 0.0
        %2891 = vmatpush1.msra.mxu0 0.0
        %2892 = vmatprep.subr.mxu0 0.0
        %2893 = vmatpush1.msra.mxu0 0.0
        %2894 = vmatprep.subr.mxu0 %v2857
        %2895 = vmatpush1.msra.mxu0 %v2856
        %2896 = vmatprep.subr.mxu0 0.0
        %2897 = vmatpush2.msra.mxu0 0.0
        %2898 = vmatprep.subr.mxu0 0.0
        %2899 = vmatpush2.msra.mxu0 0.0
        %2900 = vmatprep.subr.mxu0 0.0
        %2901 = vmatpush2.msra.mxu0 0.0
        %2902 = vmatprep.subr.mxu0 0.0
        %2903 = vmatpush2.msra.mxu0 0.0
        %2904 = vmatprep.subr.mxu0 0.0
        %2905 = vmatpush2.msra.mxu0 0.0
        %2906 = vmatprep.subr.mxu0 0.0
        %2907 = vmatpush2.msra.mxu0 0.0
        %2908 = vmatprep.subr.mxu0 0.0
        %2909 = vmatpush2.msra.mxu0 0.0
        %2910 = vmatprep.subr.mxu0 0.0
        %2911 = vmatpush2.msra.mxu0 0.0
        %2912 = vmatprep.subr.mxu0 0.0
        %2913 = vmatpush2.msra.mxu0 0.0
        %2914 = vmatprep.subr.mxu0 0.0
        %2915 = vmatpush2.msra.mxu0 0.0
        %2916 = vmatprep.subr.mxu0 0.0
        %2917 = vmatpush2.msra.mxu0 0.0
        %2918 = vmatprep.subr.mxu0 0.0
        %2919 = vmatpush2.msra.mxu0 0.0
        %2920 = vmatprep.subr.mxu0 0.0
        %2921 = vmatpush2.msra.mxu0 0.0
        %2922 = vmatprep.subr.mxu0 0.0
        %2923 = vmatpush2.msra.mxu0 0.0
        %2924 = vmatprep.subr.mxu0 0.0
        %2925 = vmatpush2.msra.mxu0 0.0
        %2926 = vmatprep.subr.mxu0 0.0
        %2927 = vmatpush2.msra.mxu0 0.0
        %2928 = vmatprep.mubr.f32.mxu0 0.0
        %2929 = vmatmul.mubr.f32.gmra.mxu0 %v2862
        %v2930 = vpop.f32.mrf.mxu0
        %v2931 = vadd.f32 0.0, %v2930
        %v2932 = vpop.f32.mrf.mxu0
        %v2933 = vadd.f32 0.0, %v2932
        %2934 = vdwg.mxu0
        %2935 = vmatprep.subr.mxu0 0.0
        %2936 = vmatpush1.msra.mxu0 0.0
        %2937 = vmatprep.subr.mxu0 0.0
        %2938 = vmatpush1.msra.mxu0 0.0
        %2939 = vmatprep.subr.mxu0 0.0
        %2940 = vmatpush1.msra.mxu0 0.0
        %2941 = vmatprep.subr.mxu0 0.0
        %2942 = vmatpush1.msra.mxu0 0.0
        %2943 = vmatprep.subr.mxu0 0.0
        %2944 = vmatpush1.msra.mxu0 0.0
        %2945 = vmatprep.subr.mxu0 0.0
        %2946 = vmatpush1.msra.mxu0 0.0
        %2947 = vmatprep.subr.mxu0 0.0
        %2948 = vmatpush1.msra.mxu0 0.0
        %2949 = vmatprep.subr.mxu0 0.0
        %2950 = vmatpush1.msra.mxu0 0.0
        %2951 = vmatprep.subr.mxu0 0.0
        %2952 = vmatpush1.msra.mxu0 0.0
        %2953 = vmatprep.subr.mxu0 0.0
        %2954 = vmatpush1.msra.mxu0 0.0
        %2955 = vmatprep.subr.mxu0 0.0
        %2956 = vmatpush1.msra.mxu0 0.0
        %2957 = vmatprep.subr.mxu0 0.0
        %2958 = vmatpush1.msra.mxu0 0.0
        %2959 = vmatprep.subr.mxu0 0.0
        %2960 = vmatpush1.msra.mxu0 0.0
        %2961 = vmatprep.subr.mxu0 0.0
        %2962 = vmatpush1.msra.mxu0 0.0
        %2963 = vmatprep.subr.mxu0 0.0
        %2964 = vmatpush1.msra.mxu0 0.0
        %2965 = vmatprep.subr.mxu0 0.0
        %2966 = vmatpush1.msra.mxu0 %v2854
        %2967 = vmatprep.subr.mxu0 0.0
        %2968 = vmatpush2.msra.mxu0 0.0
        %2969 = vmatprep.subr.mxu0 0.0
        %2970 = vmatpush2.msra.mxu0 0.0
        %2971 = vmatprep.subr.mxu0 0.0
        %2972 = vmatpush2.msra.mxu0 0.0
        %2973 = vmatprep.subr.mxu0 0.0
        %2974 = vmatpush2.msra.mxu0 0.0
        %2975 = vmatprep.subr.mxu0 0.0
        %2976 = vmatpush2.msra.mxu0 0.0
        %2977 = vmatprep.subr.mxu0 0.0
        %2978 = vmatpush2.msra.mxu0 0.0
        %2979 = vmatprep.subr.mxu0 0.0
        %2980 = vmatpush2.msra.mxu0 0.0
        %2981 = vmatprep.subr.mxu0 0.0
        %2982 = vmatpush2.msra.mxu0 0.0
        %2983 = vmatprep.subr.mxu0 0.0
        %2984 = vmatpush2.msra.mxu0 0.0
        %2985 = vmatprep.subr.mxu0 0.0
        %2986 = vmatpush2.msra.mxu0 0.0
        %2987 = vmatprep.subr.mxu0 0.0
        %2988 = vmatpush2.msra.mxu0 0.0
        %2989 = vmatprep.subr.mxu0 0.0
        %2990 = vmatpush2.msra.mxu0 0.0
        %2991 = vmatprep.subr.mxu0 0.0
        %2992 = vmatpush2.msra.mxu0 0.0
        %2993 = vmatprep.subr.mxu0 0.0
        %2994 = vmatpush2.msra.mxu0 0.0
        %2995 = vmatprep.subr.mxu0 0.0
        %2996 = vmatpush2.msra.mxu0 0.0
        %2997 = vmatprep.subr.mxu0 0.0
        %2998 = vmatpush2.msra.mxu0 0.0
        %2999 = vmatprep.mubr.f32.mxu0 0.0
        %3000 = vmatmul.mubr.f32.gmra.mxu0 %v2862
        %v3001 = vpop.f32.mrf.mxu0
        %v3002 = vadd.f32 0.0, %v3001
        %v3003 = vpop.f32.mrf.mxu0
        %3004 = vdwg.mxu0
        %v3005 = vadd.f32 %v2844, %v2931
        %v3006 = vadd.f32 %v2845, %v2933
        %v3007 = vadd.f32 %v2846, %v3002
        %s3008 = scalar_lea.vmem %s5, 28
        %v3009 = vld [vmem:[%s3008] sm:$0xf]
        %3010 = vrot.lane.b32.xlu0 %v766, 91
        %v3011 = vpop.permute.xlu0 %3010
        %3012 = vrot.lane.b32.xlu0 %v767, 91
        %v3013 = vpop.permute.xlu0 %3012
        %3014 = vrot.lane.b32.xlu0 %v768, 91
        %v3015 = vpop.permute.xlu0 %3014
        %v3016 = vsel %vm2855, %v3011, %v3013
        %v3017 = vsel %vm2855, %v3013, %v3015
        %v3022 = vsel %vm420, %v3009, 0
        %3024 = vmatprep.subr.mxu0 0.0
        %3025 = vmatpush1.msra.mxu0 0.0
        %3026 = vmatprep.subr.mxu0 0.0
        %3027 = vmatpush1.msra.mxu0 0.0
        %3028 = vmatprep.subr.mxu0 0.0
        %3029 = vmatpush1.msra.mxu0 0.0
        %3030 = vmatprep.subr.mxu0 0.0
        %3031 = vmatpush1.msra.mxu0 0.0
        %3032 = vmatprep.subr.mxu0 0.0
        %3033 = vmatpush1.msra.mxu0 0.0
        %3034 = vmatprep.subr.mxu0 0.0
        %3035 = vmatpush1.msra.mxu0 0.0
        %3036 = vmatprep.subr.mxu0 0.0
        %3037 = vmatpush1.msra.mxu0 0.0
        %3038 = vmatprep.subr.mxu0 0.0
        %3039 = vmatpush1.msra.mxu0 0.0
        %3040 = vmatprep.subr.mxu0 0.0
        %3041 = vmatpush1.msra.mxu0 0.0
        %3042 = vmatprep.subr.mxu0 0.0
        %3043 = vmatpush1.msra.mxu0 0.0
        %3044 = vmatprep.subr.mxu0 0.0
        %3045 = vmatpush1.msra.mxu0 0.0
        %3046 = vmatprep.subr.mxu0 0.0
        %3047 = vmatpush1.msra.mxu0 0.0
        %3048 = vmatprep.subr.mxu0 0.0
        %3049 = vmatpush1.msra.mxu0 0.0
        %3050 = vmatprep.subr.mxu0 0.0
        %3051 = vmatpush1.msra.mxu0 0.0
        %3052 = vmatprep.subr.mxu0 0.0
        %3053 = vmatpush1.msra.mxu0 0.0
        %3054 = vmatprep.subr.mxu0 %v3017
        %3055 = vmatpush1.msra.mxu0 %v3016
        %3056 = vmatprep.subr.mxu0 0.0
        %3057 = vmatpush2.msra.mxu0 0.0
        %3058 = vmatprep.subr.mxu0 0.0
        %3059 = vmatpush2.msra.mxu0 0.0
        %3060 = vmatprep.subr.mxu0 0.0
        %3061 = vmatpush2.msra.mxu0 0.0
        %3062 = vmatprep.subr.mxu0 0.0
        %3063 = vmatpush2.msra.mxu0 0.0
        %3064 = vmatprep.subr.mxu0 0.0
        %3065 = vmatpush2.msra.mxu0 0.0
        %3066 = vmatprep.subr.mxu0 0.0
        %3067 = vmatpush2.msra.mxu0 0.0
        %3068 = vmatprep.subr.mxu0 0.0
        %3069 = vmatpush2.msra.mxu0 0.0
        %3070 = vmatprep.subr.mxu0 0.0
        %3071 = vmatpush2.msra.mxu0 0.0
        %3072 = vmatprep.subr.mxu0 0.0
        %3073 = vmatpush2.msra.mxu0 0.0
        %3074 = vmatprep.subr.mxu0 0.0
        %3075 = vmatpush2.msra.mxu0 0.0
        %3076 = vmatprep.subr.mxu0 0.0
        %3077 = vmatpush2.msra.mxu0 0.0
        %3078 = vmatprep.subr.mxu0 0.0
        %3079 = vmatpush2.msra.mxu0 0.0
        %3080 = vmatprep.subr.mxu0 0.0
        %3081 = vmatpush2.msra.mxu0 0.0
        %3082 = vmatprep.subr.mxu0 0.0
        %3083 = vmatpush2.msra.mxu0 0.0
        %3084 = vmatprep.subr.mxu0 0.0
        %3085 = vmatpush2.msra.mxu0 0.0
        %3086 = vmatprep.subr.mxu0 0.0
        %3087 = vmatpush2.msra.mxu0 0.0
        %3088 = vmatprep.mubr.f32.mxu0 0.0
        %3089 = vmatmul.mubr.f32.gmra.mxu0 %v3022
        %v3090 = vpop.f32.mrf.mxu0
        %v3091 = vadd.f32 0.0, %v3090
        %v3092 = vpop.f32.mrf.mxu0
        %v3093 = vadd.f32 0.0, %v3092
        %3094 = vdwg.mxu0
        %3095 = vmatprep.subr.mxu0 0.0
        %3096 = vmatpush1.msra.mxu0 0.0
        %3097 = vmatprep.subr.mxu0 0.0
        %3098 = vmatpush1.msra.mxu0 0.0
        %3099 = vmatprep.subr.mxu0 0.0
        %3100 = vmatpush1.msra.mxu0 0.0
        %3101 = vmatprep.subr.mxu0 0.0
        %3102 = vmatpush1.msra.mxu0 0.0
        %3103 = vmatprep.subr.mxu0 0.0
        %3104 = vmatpush1.msra.mxu0 0.0
        %3105 = vmatprep.subr.mxu0 0.0
        %3106 = vmatpush1.msra.mxu0 0.0
        %3107 = vmatprep.subr.mxu0 0.0
        %3108 = vmatpush1.msra.mxu0 0.0
        %3109 = vmatprep.subr.mxu0 0.0
        %3110 = vmatpush1.msra.mxu0 0.0
        %3111 = vmatprep.subr.mxu0 0.0
        %3112 = vmatpush1.msra.mxu0 0.0
        %3113 = vmatprep.subr.mxu0 0.0
        %3114 = vmatpush1.msra.mxu0 0.0
        %3115 = vmatprep.subr.mxu0 0.0
        %3116 = vmatpush1.msra.mxu0 0.0
        %3117 = vmatprep.subr.mxu0 0.0
        %3118 = vmatpush1.msra.mxu0 0.0
        %3119 = vmatprep.subr.mxu0 0.0
        %3120 = vmatpush1.msra.mxu0 0.0
        %3121 = vmatprep.subr.mxu0 0.0
        %3122 = vmatpush1.msra.mxu0 0.0
        %3123 = vmatprep.subr.mxu0 0.0
        %3124 = vmatpush1.msra.mxu0 0.0
        %3125 = vmatprep.subr.mxu0 0.0
        %3126 = vmatpush1.msra.mxu0 %v3015
        %3127 = vmatprep.subr.mxu0 0.0
        %3128 = vmatpush2.msra.mxu0 0.0
        %3129 = vmatprep.subr.mxu0 0.0
        %3130 = vmatpush2.msra.mxu0 0.0
        %3131 = vmatprep.subr.mxu0 0.0
        %3132 = vmatpush2.msra.mxu0 0.0
        %3133 = vmatprep.subr.mxu0 0.0
        %3134 = vmatpush2.msra.mxu0 0.0
        %3135 = vmatprep.subr.mxu0 0.0
        %3136 = vmatpush2.msra.mxu0 0.0
        %3137 = vmatprep.subr.mxu0 0.0
        %3138 = vmatpush2.msra.mxu0 0.0
        %3139 = vmatprep.subr.mxu0 0.0
        %3140 = vmatpush2.msra.mxu0 0.0
        %3141 = vmatprep.subr.mxu0 0.0
        %3142 = vmatpush2.msra.mxu0 0.0
        %3143 = vmatprep.subr.mxu0 0.0
        %3144 = vmatpush2.msra.mxu0 0.0
        %3145 = vmatprep.subr.mxu0 0.0
        %3146 = vmatpush2.msra.mxu0 0.0
        %3147 = vmatprep.subr.mxu0 0.0
        %3148 = vmatpush2.msra.mxu0 0.0
        %3149 = vmatprep.subr.mxu0 0.0
        %3150 = vmatpush2.msra.mxu0 0.0
        %3151 = vmatprep.subr.mxu0 0.0
        %3152 = vmatpush2.msra.mxu0 0.0
        %3153 = vmatprep.subr.mxu0 0.0
        %3154 = vmatpush2.msra.mxu0 0.0
        %3155 = vmatprep.subr.mxu0 0.0
        %3156 = vmatpush2.msra.mxu0 0.0
        %3157 = vmatprep.subr.mxu0 0.0
        %3158 = vmatpush2.msra.mxu0 0.0
        %3159 = vmatprep.mubr.f32.mxu0 0.0
        %3160 = vmatmul.mubr.f32.gmra.mxu0 %v3022
        %v3161 = vpop.f32.mrf.mxu0
        %v3162 = vadd.f32 0.0, %v3161
        %v3163 = vpop.f32.mrf.mxu0
        %3164 = vdwg.mxu0
        %v3165 = vadd.f32 %v3005, %v3091
        %v3166 = vadd.f32 %v3006, %v3093
        %v3167 = vadd.f32 %v3007, %v3162
        %s3168 = scalar_lea.vmem %s2, 32
        %v3169 = vld [vmem:[%s3168] sm:$0xf]
        %3170 = vrot.lane.b32.xlu0 %v610, 90
        %v3171 = vpop.permute.xlu0 %3170
        %3172 = vrot.lane.b32.xlu0 %v611, 90
        %v3173 = vpop.permute.xlu0 %3172
        %3174 = vrot.lane.b32.xlu0 %v612, 90
        %v3175 = vpop.permute.xlu0 %3174
        %vm3176 = vcmask 736256
        %v3177 = vsel %vm3176, %v3171, %v3173
        %v3178 = vsel %vm3176, %v3173, %v3175
        %v3183 = vsel %vm420, %v3169, 0
        %3185 = vmatprep.subr.mxu0 0.0
        %3186 = vmatpush1.msra.mxu0 0.0
        %3187 = vmatprep.subr.mxu0 0.0
        %3188 = vmatpush1.msra.mxu0 0.0
        %3189 = vmatprep.subr.mxu0 0.0
        %3190 = vmatpush1.msra.mxu0 0.0
        %3191 = vmatprep.subr.mxu0 0.0
        %3192 = vmatpush1.msra.mxu0 0.0
        %3193 = vmatprep.subr.mxu0 0.0
        %3194 = vmatpush1.msra.mxu0 0.0
        %3195 = vmatprep.subr.mxu0 0.0
        %3196 = vmatpush1.msra.mxu0 0.0
        %3197 = vmatprep.subr.mxu0 0.0
        %3198 = vmatpush1.msra.mxu0 0.0
        %3199 = vmatprep.subr.mxu0 0.0
        %3200 = vmatpush1.msra.mxu0 0.0
        %3201 = vmatprep.subr.mxu0 0.0
        %3202 = vmatpush1.msra.mxu0 0.0
        %3203 = vmatprep.subr.mxu0 0.0
        %3204 = vmatpush1.msra.mxu0 0.0
        %3205 = vmatprep.subr.mxu0 0.0
        %3206 = vmatpush1.msra.mxu0 0.0
        %3207 = vmatprep.subr.mxu0 0.0
        %3208 = vmatpush1.msra.mxu0 0.0
        %3209 = vmatprep.subr.mxu0 0.0
        %3210 = vmatpush1.msra.mxu0 0.0
        %3211 = vmatprep.subr.mxu0 0.0
        %3212 = vmatpush1.msra.mxu0 0.0
        %3213 = vmatprep.subr.mxu0 0.0
        %3214 = vmatpush1.msra.mxu0 0.0
        %3215 = vmatprep.subr.mxu0 %v3178
        %3216 = vmatpush1.msra.mxu0 %v3177
        %3217 = vmatprep.subr.mxu0 0.0
        %3218 = vmatpush2.msra.mxu0 0.0
        %3219 = vmatprep.subr.mxu0 0.0
        %3220 = vmatpush2.msra.mxu0 0.0
        %3221 = vmatprep.subr.mxu0 0.0
        %3222 = vmatpush2.msra.mxu0 0.0
        %3223 = vmatprep.subr.mxu0 0.0
        %3224 = vmatpush2.msra.mxu0 0.0
        %3225 = vmatprep.subr.mxu0 0.0
        %3226 = vmatpush2.msra.mxu0 0.0
        %3227 = vmatprep.subr.mxu0 0.0
        %3228 = vmatpush2.msra.mxu0 0.0
        %3229 = vmatprep.subr.mxu0 0.0
        %3230 = vmatpush2.msra.mxu0 0.0
        %3231 = vmatprep.subr.mxu0 0.0
        %3232 = vmatpush2.msra.mxu0 0.0
        %3233 = vmatprep.subr.mxu0 0.0
        %3234 = vmatpush2.msra.mxu0 0.0
        %3235 = vmatprep.subr.mxu0 0.0
        %3236 = vmatpush2.msra.mxu0 0.0
        %3237 = vmatprep.subr.mxu0 0.0
        %3238 = vmatpush2.msra.mxu0 0.0
        %3239 = vmatprep.subr.mxu0 0.0
        %3240 = vmatpush2.msra.mxu0 0.0
        %3241 = vmatprep.subr.mxu0 0.0
        %3242 = vmatpush2.msra.mxu0 0.0
        %3243 = vmatprep.subr.mxu0 0.0
        %3244 = vmatpush2.msra.mxu0 0.0
        %3245 = vmatprep.subr.mxu0 0.0
        %3246 = vmatpush2.msra.mxu0 0.0
        %3247 = vmatprep.subr.mxu0 0.0
        %3248 = vmatpush2.msra.mxu0 0.0
        %3249 = vmatprep.mubr.f32.mxu0 0.0
        %3250 = vmatmul.mubr.f32.gmra.mxu0 %v3183
        %v3251 = vpop.f32.mrf.mxu0
        %v3252 = vadd.f32 0.0, %v3251
        %v3253 = vpop.f32.mrf.mxu0
        %v3254 = vadd.f32 0.0, %v3253
        %3255 = vdwg.mxu0
        %3256 = vmatprep.subr.mxu0 0.0
        %3257 = vmatpush1.msra.mxu0 0.0
        %3258 = vmatprep.subr.mxu0 0.0
        %3259 = vmatpush1.msra.mxu0 0.0
        %3260 = vmatprep.subr.mxu0 0.0
        %3261 = vmatpush1.msra.mxu0 0.0
        %3262 = vmatprep.subr.mxu0 0.0
        %3263 = vmatpush1.msra.mxu0 0.0
        %3264 = vmatprep.subr.mxu0 0.0
        %3265 = vmatpush1.msra.mxu0 0.0
        %3266 = vmatprep.subr.mxu0 0.0
        %3267 = vmatpush1.msra.mxu0 0.0
        %3268 = vmatprep.subr.mxu0 0.0
        %3269 = vmatpush1.msra.mxu0 0.0
        %3270 = vmatprep.subr.mxu0 0.0
        %3271 = vmatpush1.msra.mxu0 0.0
        %3272 = vmatprep.subr.mxu0 0.0
        %3273 = vmatpush1.msra.mxu0 0.0
        %3274 = vmatprep.subr.mxu0 0.0
        %3275 = vmatpush1.msra.mxu0 0.0
        %3276 = vmatprep.subr.mxu0 0.0
        %3277 = vmatpush1.msra.mxu0 0.0
        %3278 = vmatprep.subr.mxu0 0.0
        %3279 = vmatpush1.msra.mxu0 0.0
        %3280 = vmatprep.subr.mxu0 0.0
        %3281 = vmatpush1.msra.mxu0 0.0
        %3282 = vmatprep.subr.mxu0 0.0
        %3283 = vmatpush1.msra.mxu0 0.0
        %3284 = vmatprep.subr.mxu0 0.0
        %3285 = vmatpush1.msra.mxu0 0.0
        %3286 = vmatprep.subr.mxu0 0.0
        %3287 = vmatpush1.msra.mxu0 %v3175
        %3288 = vmatprep.subr.mxu0 0.0
        %3289 = vmatpush2.msra.mxu0 0.0
        %3290 = vmatprep.subr.mxu0 0.0
        %3291 = vmatpush2.msra.mxu0 0.0
        %3292 = vmatprep.subr.mxu0 0.0
        %3293 = vmatpush2.msra.mxu0 0.0
        %3294 = vmatprep.subr.mxu0 0.0
        %3295 = vmatpush2.msra.mxu0 0.0
        %3296 = vmatprep.subr.mxu0 0.0
        %3297 = vmatpush2.msra.mxu0 0.0
        %3298 = vmatprep.subr.mxu0 0.0
        %3299 = vmatpush2.msra.mxu0 0.0
        %3300 = vmatprep.subr.mxu0 0.0
        %3301 = vmatpush2.msra.mxu0 0.0
        %3302 = vmatprep.subr.mxu0 0.0
        %3303 = vmatpush2.msra.mxu0 0.0
        %3304 = vmatprep.subr.mxu0 0.0
        %3305 = vmatpush2.msra.mxu0 0.0
        %3306 = vmatprep.subr.mxu0 0.0
        %3307 = vmatpush2.msra.mxu0 0.0
        %3308 = vmatprep.subr.mxu0 0.0
        %3309 = vmatpush2.msra.mxu0 0.0
        %3310 = vmatprep.subr.mxu0 0.0
        %3311 = vmatpush2.msra.mxu0 0.0
        %3312 = vmatprep.subr.mxu0 0.0
        %3313 = vmatpush2.msra.mxu0 0.0
        %3314 = vmatprep.subr.mxu0 0.0
        %3315 = vmatpush2.msra.mxu0 0.0
        %3316 = vmatprep.subr.mxu0 0.0
        %3317 = vmatpush2.msra.mxu0 0.0
        %3318 = vmatprep.subr.mxu0 0.0
        %3319 = vmatpush2.msra.mxu0 0.0
        %3320 = vmatprep.mubr.f32.mxu0 0.0
        %3321 = vmatmul.mubr.f32.gmra.mxu0 %v3183
        %v3322 = vpop.f32.mrf.mxu0
        %v3323 = vadd.f32 0.0, %v3322
        %v3324 = vpop.f32.mrf.mxu0
        %3325 = vdwg.mxu0
        %v3326 = vadd.f32 %v3165, %v3252
        %v3327 = vadd.f32 %v3166, %v3254
        %v3328 = vadd.f32 %v3167, %v3323
        %s3329 = scalar_lea.vmem %s5, 32
        %v3330 = vld [vmem:[%s3329] sm:$0xf]
        %3331 = vrot.lane.b32.xlu0 %v766, 90
        %v3332 = vpop.permute.xlu0 %3331
        %3333 = vrot.lane.b32.xlu0 %v767, 90
        %v3334 = vpop.permute.xlu0 %3333
        %3335 = vrot.lane.b32.xlu0 %v768, 90
        %v3336 = vpop.permute.xlu0 %3335
        %v3337 = vsel %vm3176, %v3332, %v3334
        %v3338 = vsel %vm3176, %v3334, %v3336
        %v3343 = vsel %vm420, %v3330, 0
        %3345 = vmatprep.subr.mxu0 0.0
        %3346 = vmatpush1.msra.mxu0 0.0
        %3347 = vmatprep.subr.mxu0 0.0
        %3348 = vmatpush1.msra.mxu0 0.0
        %3349 = vmatprep.subr.mxu0 0.0
        %3350 = vmatpush1.msra.mxu0 0.0
        %3351 = vmatprep.subr.mxu0 0.0
        %3352 = vmatpush1.msra.mxu0 0.0
        %3353 = vmatprep.subr.mxu0 0.0
        %3354 = vmatpush1.msra.mxu0 0.0
        %3355 = vmatprep.subr.mxu0 0.0
        %3356 = vmatpush1.msra.mxu0 0.0
        %3357 = vmatprep.subr.mxu0 0.0
        %3358 = vmatpush1.msra.mxu0 0.0
        %3359 = vmatprep.subr.mxu0 0.0
        %3360 = vmatpush1.msra.mxu0 0.0
        %3361 = vmatprep.subr.mxu0 0.0
        %3362 = vmatpush1.msra.mxu0 0.0
        %3363 = vmatprep.subr.mxu0 0.0
        %3364 = vmatpush1.msra.mxu0 0.0
        %3365 = vmatprep.subr.mxu0 0.0
        %3366 = vmatpush1.msra.mxu0 0.0
        %3367 = vmatprep.subr.mxu0 0.0
        %3368 = vmatpush1.msra.mxu0 0.0
        %3369 = vmatprep.subr.mxu0 0.0
        %3370 = vmatpush1.msra.mxu0 0.0
        %3371 = vmatprep.subr.mxu0 0.0
        %3372 = vmatpush1.msra.mxu0 0.0
        %3373 = vmatprep.subr.mxu0 0.0
        %3374 = vmatpush1.msra.mxu0 0.0
        %3375 = vmatprep.subr.mxu0 %v3338
        %3376 = vmatpush1.msra.mxu0 %v3337
        %3377 = vmatprep.subr.mxu0 0.0
        %3378 = vmatpush2.msra.mxu0 0.0
        %3379 = vmatprep.subr.mxu0 0.0
        %3380 = vmatpush2.msra.mxu0 0.0
        %3381 = vmatprep.subr.mxu0 0.0
        %3382 = vmatpush2.msra.mxu0 0.0
        %3383 = vmatprep.subr.mxu0 0.0
        %3384 = vmatpush2.msra.mxu0 0.0
        %3385 = vmatprep.subr.mxu0 0.0
        %3386 = vmatpush2.msra.mxu0 0.0
        %3387 = vmatprep.subr.mxu0 0.0
        %3388 = vmatpush2.msra.mxu0 0.0
        %3389 = vmatprep.subr.mxu0 0.0
        %3390 = vmatpush2.msra.mxu0 0.0
        %3391 = vmatprep.subr.mxu0 0.0
        %3392 = vmatpush2.msra.mxu0 0.0
        %3393 = vmatprep.subr.mxu0 0.0
        %3394 = vmatpush2.msra.mxu0 0.0
        %3395 = vmatprep.subr.mxu0 0.0
        %3396 = vmatpush2.msra.mxu0 0.0
        %3397 = vmatprep.subr.mxu0 0.0
        %3398 = vmatpush2.msra.mxu0 0.0
        %3399 = vmatprep.subr.mxu0 0.0
        %3400 = vmatpush2.msra.mxu0 0.0
        %3401 = vmatprep.subr.mxu0 0.0
        %3402 = vmatpush2.msra.mxu0 0.0
        %3403 = vmatprep.subr.mxu0 0.0
        %3404 = vmatpush2.msra.mxu0 0.0
        %3405 = vmatprep.subr.mxu0 0.0
        %3406 = vmatpush2.msra.mxu0 0.0
        %3407 = vmatprep.subr.mxu0 0.0
        %3408 = vmatpush2.msra.mxu0 0.0
        %3409 = vmatprep.mubr.f32.mxu0 0.0
        %3410 = vmatmul.mubr.f32.gmra.mxu0 %v3343
        %v3411 = vpop.f32.mrf.mxu0
        %v3412 = vadd.f32 0.0, %v3411
        %v3413 = vpop.f32.mrf.mxu0
        %v3414 = vadd.f32 0.0, %v3413
        %3415 = vdwg.mxu0
        %3416 = vmatprep.subr.mxu0 0.0
        %3417 = vmatpush1.msra.mxu0 0.0
        %3418 = vmatprep.subr.mxu0 0.0
        %3419 = vmatpush1.msra.mxu0 0.0
        %3420 = vmatprep.subr.mxu0 0.0
        %3421 = vmatpush1.msra.mxu0 0.0
        %3422 = vmatprep.subr.mxu0 0.0
        %3423 = vmatpush1.msra.mxu0 0.0
        %3424 = vmatprep.subr.mxu0 0.0
        %3425 = vmatpush1.msra.mxu0 0.0
        %3426 = vmatprep.subr.mxu0 0.0
        %3427 = vmatpush1.msra.mxu0 0.0
        %3428 = vmatprep.subr.mxu0 0.0
        %3429 = vmatpush1.msra.mxu0 0.0
        %3430 = vmatprep.subr.mxu0 0.0
        %3431 = vmatpush1.msra.mxu0 0.0
        %3432 = vmatprep.subr.mxu0 0.0
        %3433 = vmatpush1.msra.mxu0 0.0
        %3434 = vmatprep.subr.mxu0 0.0
        %3435 = vmatpush1.msra.mxu0 0.0
        %3436 = vmatprep.subr.mxu0 0.0
        %3437 = vmatpush1.msra.mxu0 0.0
        %3438 = vmatprep.subr.mxu0 0.0
        %3439 = vmatpush1.msra.mxu0 0.0
        %3440 = vmatprep.subr.mxu0 0.0
        %3441 = vmatpush1.msra.mxu0 0.0
        %3442 = vmatprep.subr.mxu0 0.0
        %3443 = vmatpush1.msra.mxu0 0.0
        %3444 = vmatprep.subr.mxu0 0.0
        %3445 = vmatpush1.msra.mxu0 0.0
        %3446 = vmatprep.subr.mxu0 0.0
        %3447 = vmatpush1.msra.mxu0 %v3336
        %3448 = vmatprep.subr.mxu0 0.0
        %3449 = vmatpush2.msra.mxu0 0.0
        %3450 = vmatprep.subr.mxu0 0.0
        %3451 = vmatpush2.msra.mxu0 0.0
        %3452 = vmatprep.subr.mxu0 0.0
        %3453 = vmatpush2.msra.mxu0 0.0
        %3454 = vmatprep.subr.mxu0 0.0
        %3455 = vmatpush2.msra.mxu0 0.0
        %3456 = vmatprep.subr.mxu0 0.0
        %3457 = vmatpush2.msra.mxu0 0.0
        %3458 = vmatprep.subr.mxu0 0.0
        %3459 = vmatpush2.msra.mxu0 0.0
        %3460 = vmatprep.subr.mxu0 0.0
        %3461 = vmatpush2.msra.mxu0 0.0
        %3462 = vmatprep.subr.mxu0 0.0
        %3463 = vmatpush2.msra.mxu0 0.0
        %3464 = vmatprep.subr.mxu0 0.0
        %3465 = vmatpush2.msra.mxu0 0.0
        %3466 = vmatprep.subr.mxu0 0.0
        %3467 = vmatpush2.msra.mxu0 0.0
        %3468 = vmatprep.subr.mxu0 0.0
        %3469 = vmatpush2.msra.mxu0 0.0
        %3470 = vmatprep.subr.mxu0 0.0
        %3471 = vmatpush2.msra.mxu0 0.0
        %3472 = vmatprep.subr.mxu0 0.0
        %3473 = vmatpush2.msra.mxu0 0.0
        %3474 = vmatprep.subr.mxu0 0.0
        %3475 = vmatpush2.msra.mxu0 0.0
        %3476 = vmatprep.subr.mxu0 0.0
        %3477 = vmatpush2.msra.mxu0 0.0
        %3478 = vmatprep.subr.mxu0 0.0
        %3479 = vmatpush2.msra.mxu0 0.0
        %3480 = vmatprep.mubr.f32.mxu0 0.0
        %3481 = vmatmul.mubr.f32.gmra.mxu0 %v3343
        %v3482 = vpop.f32.mrf.mxu0
        %v3483 = vadd.f32 0.0, %v3482
        %v3484 = vpop.f32.mrf.mxu0
        %3485 = vdwg.mxu0
        %v3486 = vadd.f32 %v3326, %v3412
        %v3487 = vadd.f32 %v3327, %v3414
        %v3488 = vadd.f32 %v3328, %v3483
        %v3491 = vcombine.low %v3486, %v3487
        %3493 = vst [vmem:[%s271] sm:$0xff] %v3491
        %vm3494 = vcmask 257024
        %3495 = vst.msk [vmem:[%s271 + $0x8] sm:$0xf] %vm3494, %v3488
        %s3496 = sand.u32 %s181, 1
        %s3497 = scalar_lea.sflag [#allocation5], %s3496
        %s3498 = sand.u32 %s181, 1
        %s3499 = smul.addr %s3498, 12
        %s3500 = scalar_lea.vmem [#allocation4], %s3499
        // Predicated region
        $region49: #{tpu_custom_call.1} parent=47 // pred_check
          %p3501 = pneg %p191
        $region50: #{tpu_custom_call.1} parent=47 // pred_check_branch
          %3503 = sbr.rel (%p3501) target = $region52
        $region51: #{tpu_custom_call.1} parent=47 // pred_region
          %s3505 = ssub.s32 192, 192
          %3506 = vsyncadd %s3497, %s3505
          %s3507 = smul.addr %s21, 3
          %s3508 = smul.addr %s3507, 64
          %s3509 = scalar_lea.hbm %s7, %s3508
          %s3511 = sshll.u32 %s3500, 4
          %s3512 = int_to_ptr.vmem [resolvable:$true] %s3511
          %3514 = dma.vmem_to_hbm [thread:$0]  %s3512, 192, %s3509, %s3497
        $region52: #{tpu_custom_call.1} parent=47 // pred_fallthru
          _
      $region48: #{tpu_custom_call.1} parent=5 // pred_fallthru
        _
      %p3515 = scmp.le.s32.totalorder 2, %s16
      // Predicated region
      $region53: #{tpu_custom_call.1} parent=5 // pred_check
        %p3516 = pneg %p3515
      $region54: #{tpu_custom_call.1} parent=5 // pred_check_branch
        %3518 = sbr.rel (%p3516) target = $region56
      $region55: #{tpu_custom_call.1} parent=5 // pred_region
        %s3519 = ssub.s32 %s16, 2
        // Predicated region
        $region57: #{tpu_custom_call.1} parent=55 // pred_check
          %p3520 = pneg %p197
        $region58: #{tpu_custom_call.1} parent=55 // pred_check_branch
          %3522 = sbr.rel (%p3520) target = $region60
        $region59: #{tpu_custom_call.1} parent=55 // pred_region
          %s3523 = sand.u32 %s182, 1
          %s3524 = scalar_lea.sflag [#allocation5], %s3523
          %s3525 = sand.u32 %s182, 1
          %s3526 = smul.addr %s3525, 12
          %s3527 = scalar_lea.vmem [#allocation4], %s3526
          %3528 = dma.done %s3524, 192
        $region60: #{tpu_custom_call.1} parent=55 // pred_fallthru
          _
      $region56: #{tpu_custom_call.1} parent=5 // pred_fallthru
        _
    $region6: #{tpu_custom_call.1} parent=1 // loop_footer
      %s20 = sadd.s32 1, %s16
    $region7: #{tpu_custom_call.1} parent=1 // loop_footer_branch
      %15 = sbr.rel target = $region3
    $region8: #{tpu_custom_call.1} parent=1 // loop_exit
      _
    %3529 = vsyncpa [#allocation5], 1
    %s3530 = scalar_lea.sflag [#allocation5], 1
    %3531 = vsyncpa %s3530, 1

</llo_original>
